<compile_context>
chip_gen: v7x
topology: tpu7x:2x2x1
jax: 0.10.0
libtpu: 0.0.40
codegen_flags: <defaults>
</compile_context>

<pallas_src>
import functools

import jax
import jax.numpy as jnp
from jax.experimental import pallas as pl
from jax.experimental.pallas import tpu as pltpu

LN_EPS = 1e-5  # nn.LayerNorm default


# ----------------------------------------------------------------------------- glue
def position_encoding(seq_len: int, dim_model: int) -> jnp.ndarray:
    # Faithful to the torch reference: `dim // dim_model` is 0.0 for every dim in
    # [0, dim_model), so pe[s, d] = sin(s) if d is even else cos(s).
    pos = jnp.arange(seq_len, dtype=jnp.float32).reshape(-1, 1)
    dim = jnp.arange(dim_model, dtype=jnp.float32).reshape(1, -1)
    phase = pos / (10000.0 ** jnp.floor(dim / dim_model))
    return jnp.where(dim.astype(jnp.int32) % 2 == 0, jnp.sin(phase), jnp.cos(phase))


def _layer_norm(z, g, beta):
    mu = jnp.mean(z, axis=-1, keepdims=True)
    var = jnp.mean((z - mu) ** 2, axis=-1, keepdims=True)  # biased var (torch)
    return (z - mu) * jax.lax.rsqrt(var + LN_EPS) * g + beta


# ----------------------------------------------------------------------------- kernel
def encoder_kernel(x_ref, pe_ref, w_in_ref, b_in_ref,
                   wq_ref, bq_ref, wk_ref, bk_ref, wv_ref, bv_ref,
                   wo_ref, bo_ref, w1_ref, b1_ref, w2_ref, b2_ref,
                   g1_ref, beta1_ref, g2_ref, beta2_ref,
                   o_ref, *, num_layers, num_heads, dim_q, batch, seq):
    # TODO(synk): dropout omitted (eval-mode identity).
    x = x_ref[...]                                                 # (B*S, K)
    h = jnp.dot(x, w_in_ref[...], preferred_element_type=jnp.float32)
    h = h + b_in_ref[...] + pe_ref[...]                            # (B*S, D)

    inv_scale = 1.0 / (float(dim_q) ** 0.5)
    hd = num_heads * dim_q

    for l in range(num_layers):                                    # static unroll
        # --- multi-head attention (Q/K/V projections batched over heads) ---
        q = (jnp.dot(h, wq_ref[l], preferred_element_type=jnp.float32)
             + bq_ref[l]) * inv_scale                              # scale folded into q
        k = jnp.dot(h, wk_ref[l], preferred_element_type=jnp.float32) + bk_ref[l]
        v = jnp.dot(h, wv_ref[l], preferred_element_type=jnp.float32) + bv_ref[l]
        q3 = q.reshape(batch, seq, hd)
        k3 = k.reshape(batch, seq, hd)
        v3 = v.reshape(batch, seq, hd)

        ctx = []
        for hh in range(num_heads):                                # static unroll
            sl = slice(hh * dim_q, (hh + 1) * dim_q)
            s = jnp.einsum('bqd,bkd->bqk', q3[:, :, sl], k3[:, :, sl],
                           preferred_element_type=jnp.float32)
            s = s - jnp.max(s, axis=-1, keepdims=True)             # stable softmax
            p = jnp.exp(s)
            p = p * pl.reciprocal(jnp.sum(p, axis=-1, keepdims=True), approx=True)
            ctx.append(jnp.einsum('bqk,bkd->bqd', p, v3[:, :, sl],
                                  preferred_element_type=jnp.float32))
        cat = jnp.concatenate(ctx, axis=-1).reshape(batch * seq, hd)

        mha = jnp.dot(cat, wo_ref[l], preferred_element_type=jnp.float32) + bo_ref[l]
        h = _layer_norm(h + mha, g1_ref[l], beta1_ref[l])

        # --- feed-forward block ---
        f = jnp.maximum(
            jnp.dot(h, w1_ref[l], preferred_element_type=jnp.float32) + b1_ref[l], 0.0)
        y = jnp.dot(f, w2_ref[l], preferred_element_type=jnp.float32) + b2_ref[l]
        h = _layer_norm(h + y, g2_ref[l], beta2_ref[l])

    o_ref[...] = h


# ----------------------------------------------------------------------------- wrapper
def run_encoder(x, params, *, num_heads, dim_q):
    B, S, K = x.shape
    D = params["w_in"].shape[1]
    L = params["wq"].shape[0]

    pe = position_encoding(S, D)                 # (S, D)
    pe_flat = jnp.tile(pe, (B, 1))               # (B*S, D) -- row b*S+s == position s
    x2 = x.reshape(B * S, K)

    kernel = functools.partial(encoder_kernel, num_layers=L, num_heads=num_heads,
                               dim_q=dim_q, batch=B, seq=S)
    out = pl.pallas_call(
        kernel,
        out_shape=jax.ShapeDtypeStruct((B * S, D), jnp.float32),
        compiler_params=pltpu.CompilerParams(vmem_limit_bytes=32 * 1024 * 1024),
    )(x2, pe_flat, params["w_in"], params["b_in"],
      params["wq"], params["bq"], params["wk"], params["bk"],
      params["wv"], params["bv"], params["wo"], params["bo"],
      params["w1"], params["b1"], params["w2"], params["b2"],
      params["ln1_g"], params["ln1_b"], params["ln2_g"], params["ln2_b"])
    return out.reshape(B, S, D)


# ----------------------------------------------------------------------------- params
def init_params(key, *, input_size, num_layers, dim_model, num_heads, dim_q, dim_ff):
    def linear(k, fan_in, fan_out):
        kw, kb = jax.random.split(k)
        bound = 1.0 / jnp.sqrt(jnp.float32(fan_in))
        w = jax.random.uniform(kw, (fan_in, fan_out), jnp.float32, -bound, bound)
        b = jax.random.uniform(kb, (1, fan_out), jnp.float32, -bound, bound)
        return w, b

    keys = jax.random.split(key, num_layers + 1)
    w_in, b_in = linear(keys[0], input_size, dim_model)

    names = ["wq", "bq", "wk", "bk", "wv", "bv", "wo", "bo",
             "w1", "b1", "w2", "b2", "ln1_g", "ln1_b", "ln2_g", "ln2_b"]
    acc = {n: [] for n in names}

    for li in range(num_layers):
        lkeys = jax.random.split(keys[li + 1], 4)
        hkeys = jax.random.split(lkeys[0], num_heads * 3)
        wq, bq, wk, bk, wv, bv = [], [], [], [], [], []
        for hi in range(num_heads):
            w, b = linear(hkeys[3 * hi + 0], dim_model, dim_q); wq.append(w); bq.append(b)
            w, b = linear(hkeys[3 * hi + 1], dim_model, dim_q); wk.append(w); bk.append(b)
            w, b = linear(hkeys[3 * hi + 2], dim_model, dim_q); wv.append(w); bv.append(b)
        # Concatenate per-head projection weights column-wise -> one (D, H*dq) matmul.
        acc["wq"].append(jnp.concatenate(wq, axis=1)); acc["bq"].append(jnp.concatenate(bq, axis=1))
        acc["wk"].append(jnp.concatenate(wk, axis=1)); acc["bk"].append(jnp.concatenate(bk, axis=1))
        acc["wv"].append(jnp.concatenate(wv, axis=1)); acc["bv"].append(jnp.concatenate(bv, axis=1))

        wo, bo = linear(lkeys[1], num_heads * dim_q, dim_model)
        w1, b1 = linear(lkeys[2], dim_model, dim_ff)
        w2, b2 = linear(lkeys[3], dim_ff, dim_model)
        acc["wo"].append(wo); acc["bo"].append(bo)
        acc["w1"].append(w1); acc["b1"].append(b1)
        acc["w2"].append(w2); acc["b2"].append(b2)
        acc["ln1_g"].append(jnp.ones((1, dim_model), jnp.float32))
        acc["ln1_b"].append(jnp.zeros((1, dim_model), jnp.float32))
        acc["ln2_g"].append(jnp.ones((1, dim_model), jnp.float32))
        acc["ln2_b"].append(jnp.zeros((1, dim_model), jnp.float32))

    params = {n: jnp.stack(v) for n, v in acc.items()}
    params["w_in"] = w_in
    params["b_in"] = b_in
    return params


# ----------------------------------------------------------------------------- main
if __name__ == "__main__":
    B, S = 2, 8
    input_size = 4
    dim_model = 32
    num_heads = 3
    dim_feedforward = 64
    num_layers = 3
    dim_q = max(dim_model // num_heads, 1)  # == dim_k, matches the torch module

    key = jax.random.PRNGKey(0)
    kx, kp = jax.random.split(key)
    x = jax.random.normal(kx, (B, S, input_size), jnp.float32)
    params = init_params(kp, input_size=input_size, num_layers=num_layers,
                         dim_model=dim_model, num_heads=num_heads,
                         dim_q=dim_q, dim_ff=dim_feedforward)

    out = run_encoder(x, params, num_heads=num_heads, dim_q=dim_q)
    out = jax.block_until_ready(out)
    assert out.shape == (B, S, dim_model), out.shape
    assert bool(jnp.all(jnp.isfinite(out)))
    print("KERNEL_OK")
</pallas_src>

<mosaic_0001>
module attributes {stable_mosaic.version = 11 : i64} {
  func.func @encoder_kernel(%arg0: memref<16x4xf32, #tpu.memory_space<vmem>>, %arg1: memref<16x32xf32, #tpu.memory_space<vmem>>, %arg2: memref<4x32xf32, #tpu.memory_space<vmem>>, %arg3: memref<1x32xf32, #tpu.memory_space<vmem>>, %arg4: memref<3x32x30xf32, #tpu.memory_space<vmem>>, %arg5: memref<3x1x30xf32, #tpu.memory_space<vmem>>, %arg6: memref<3x32x30xf32, #tpu.memory_space<vmem>>, %arg7: memref<3x1x30xf32, #tpu.memory_space<vmem>>, %arg8: memref<3x32x30xf32, #tpu.memory_space<vmem>>, %arg9: memref<3x1x30xf32, #tpu.memory_space<vmem>>, %arg10: memref<3x30x32xf32, #tpu.memory_space<vmem>>, %arg11: memref<3x1x32xf32, #tpu.memory_space<vmem>>, %arg12: memref<3x32x64xf32, #tpu.memory_space<vmem>>, %arg13: memref<3x1x64xf32, #tpu.memory_space<vmem>>, %arg14: memref<3x64x32xf32, #tpu.memory_space<vmem>>, %arg15: memref<3x1x32xf32, #tpu.memory_space<vmem>>, %arg16: memref<3x1x32xf32, #tpu.memory_space<vmem>>, %arg17: memref<3x1x32xf32, #tpu.memory_space<vmem>>, %arg18: memref<3x1x32xf32, #tpu.memory_space<vmem>>, %arg19: memref<3x1x32xf32, #tpu.memory_space<vmem>>, %arg20: memref<16x32xf32, #tpu.memory_space<vmem>>) attributes {dimension_semantics = [], scalar_prefetch = 0 : i64, scratch_operands = 0 : i64, tpu.core_type = #tpu.core_type<tc>} {
    %c0 = arith.constant 0 : index
    %c0_0 = arith.constant 0 : index
    %0 = vector.load %arg0[%c0, %c0_0] : memref<16x4xf32, #tpu.memory_space<vmem>>, vector<16x4xf32>
    %c0_1 = arith.constant 0 : index
    %c0_2 = arith.constant 0 : index
    %1 = vector.load %arg2[%c0_1, %c0_2] : memref<4x32xf32, #tpu.memory_space<vmem>>, vector<4x32xf32>
    %cst = arith.constant dense<0.000000e+00> : vector<16x32xf32>
    %2 = tpu.matmul %0, %1, %cst {dimension_numbers = #tpu.dot_dimension_numbers<[1], [0], [0], [1], [0, 0, 1, 1], [], []>} : vector<16x4xf32>, vector<4x32xf32>, vector<16x32xf32> -> vector<16x32xf32>
    %c0_3 = arith.constant 0 : index
    %c0_4 = arith.constant 0 : index
    %3 = vector.load %arg3[%c0_3, %c0_4] : memref<1x32xf32, #tpu.memory_space<vmem>>, vector<1x32xf32>
    %4 = vector.broadcast %3 : vector<1x32xf32> to vector<16x32xf32>
    %5 = arith.addf %2, %4 : vector<16x32xf32>
    %c0_5 = arith.constant 0 : index
    %c0_6 = arith.constant 0 : index
    %6 = vector.load %arg1[%c0_5, %c0_6] : memref<16x32xf32, #tpu.memory_space<vmem>>, vector<16x32xf32>
    %7 = arith.addf %5, %6 : vector<16x32xf32>
    %c0_7 = arith.constant 0 : index
    %c0_8 = arith.constant 0 : index
    %c0_9 = arith.constant 0 : index
    %8 = vector.load %arg4[%c0_7, %c0_8, %c0_9] : memref<3x32x30xf32, #tpu.memory_space<vmem>>, vector<1x32x30xf32>
    %9 = vector.shape_cast %8 : vector<1x32x30xf32> to vector<32x30xf32>
    %cst_10 = arith.constant dense<0.000000e+00> : vector<16x30xf32>
    %10 = tpu.matmul %7, %9, %cst_10 {dimension_numbers = #tpu.dot_dimension_numbers<[1], [0], [0], [1], [0, 0, 1, 1], [], []>} : vector<16x32xf32>, vector<32x30xf32>, vector<16x30xf32> -> vector<16x30xf32>
    %c0_11 = arith.constant 0 : index
    %c0_12 = arith.constant 0 : index
    %c0_13 = arith.constant 0 : index
    %11 = vector.load %arg5[%c0_11, %c0_12, %c0_13] : memref<3x1x30xf32, #tpu.memory_space<vmem>>, vector<1x1x30xf32>
    %12 = vector.shape_cast %11 : vector<1x1x30xf32> to vector<1x30xf32>
    %13 = vector.broadcast %12 : vector<1x30xf32> to vector<16x30xf32>
    %14 = arith.addf %10, %13 : vector<16x30xf32>
    %cst_14 = arith.constant 0.316227764 : f32
    %15 = vector.broadcast %cst_14 : f32 to vector<16x30xf32>
    %16 = arith.mulf %14, %15 : vector<16x30xf32>
    %c0_15 = arith.constant 0 : index
    %c0_16 = arith.constant 0 : index
    %c0_17 = arith.constant 0 : index
    %17 = vector.load %arg6[%c0_15, %c0_16, %c0_17] : memref<3x32x30xf32, #tpu.memory_space<vmem>>, vector<1x32x30xf32>
    %18 = vector.shape_cast %17 : vector<1x32x30xf32> to vector<32x30xf32>
    %cst_18 = arith.constant dense<0.000000e+00> : vector<16x30xf32>
    %19 = tpu.matmul %7, %18, %cst_18 {dimension_numbers = #tpu.dot_dimension_numbers<[1], [0], [0], [1], [0, 0, 1, 1], [], []>} : vector<16x32xf32>, vector<32x30xf32>, vector<16x30xf32> -> vector<16x30xf32>
    %c0_19 = arith.constant 0 : index
    %c0_20 = arith.constant 0 : index
    %c0_21 = arith.constant 0 : index
    %20 = vector.load %arg7[%c0_19, %c0_20, %c0_21] : memref<3x1x30xf32, #tpu.memory_space<vmem>>, vector<1x1x30xf32>
    %21 = vector.shape_cast %20 : vector<1x1x30xf32> to vector<1x30xf32>
    %22 = vector.broadcast %21 : vector<1x30xf32> to vector<16x30xf32>
    %23 = arith.addf %19, %22 : vector<16x30xf32>
    %c0_22 = arith.constant 0 : index
    %c0_23 = arith.constant 0 : index
    %c0_24 = arith.constant 0 : index
    %24 = vector.load %arg8[%c0_22, %c0_23, %c0_24] : memref<3x32x30xf32, #tpu.memory_space<vmem>>, vector<1x32x30xf32>
    %25 = vector.shape_cast %24 : vector<1x32x30xf32> to vector<32x30xf32>
    %cst_25 = arith.constant dense<0.000000e+00> : vector<16x30xf32>
    %26 = tpu.matmul %7, %25, %cst_25 {dimension_numbers = #tpu.dot_dimension_numbers<[1], [0], [0], [1], [0, 0, 1, 1], [], []>} : vector<16x32xf32>, vector<32x30xf32>, vector<16x30xf32> -> vector<16x30xf32>
    %c0_26 = arith.constant 0 : index
    %c0_27 = arith.constant 0 : index
    %c0_28 = arith.constant 0 : index
    %27 = vector.load %arg9[%c0_26, %c0_27, %c0_28] : memref<3x1x30xf32, #tpu.memory_space<vmem>>, vector<1x1x30xf32>
    %28 = vector.shape_cast %27 : vector<1x1x30xf32> to vector<1x30xf32>
    %29 = vector.broadcast %28 : vector<1x30xf32> to vector<16x30xf32>
    %30 = arith.addf %26, %29 : vector<16x30xf32>
    %31 = vector.shape_cast %16 : vector<16x30xf32> to vector<2x8x30xf32>
    %32 = vector.shape_cast %23 : vector<16x30xf32> to vector<2x8x30xf32>
    %33 = vector.shape_cast %30 : vector<16x30xf32> to vector<2x8x30xf32>
    %34 = vector.extract_strided_slice %31 {offsets = [0, 0, 0], sizes = [2, 8, 10], strides = [1, 1, 1]} : vector<2x8x30xf32> to vector<2x8x10xf32>
    %35 = vector.extract_strided_slice %32 {offsets = [0, 0, 0], sizes = [2, 8, 10], strides = [1, 1, 1]} : vector<2x8x30xf32> to vector<2x8x10xf32>
    "tpu.trace_start"() <{level = 10 : i32, message = "bqd,bkd->bqk"}> : () -> ()
    %cst_29 = arith.constant dense<0.000000e+00> : vector<2x8x8xf32>
    %36 = tpu.matmul %34, %35, %cst_29 {dimension_numbers = #tpu.dot_dimension_numbers<[2], [2], [1], [1], [0, 0, 0, 1, 1, 1], [0], [0]>} : vector<2x8x10xf32>, vector<2x8x10xf32>, vector<2x8x8xf32> -> vector<2x8x8xf32>
    "tpu.trace_stop"() : () -> ()
    %cst_30 = arith.constant dense<0xFF800000> : vector<2x8xf32>
    %37 = vector.multi_reduction <maximumf>, %36, %cst_30 [2] : vector<2x8x8xf32> to vector<2x8xf32>
    %38 = vector.shape_cast %37 : vector<2x8xf32> to vector<2x8x1xf32>
    %39 = vector.broadcast %38 : vector<2x8x1xf32> to vector<2x8x8xf32>
    %40 = arith.subf %36, %39 : vector<2x8x8xf32>
    %41 = math.exp %40 : vector<2x8x8xf32>
    %cst_31 = arith.constant dense<0.000000e+00> : vector<2x8xf32>
    %42 = vector.multi_reduction <add>, %41, %cst_31 [2] : vector<2x8x8xf32> to vector<2x8xf32>
    %43 = vector.shape_cast %42 : vector<2x8xf32> to vector<2x8x1xf32>
    %44 = tpu.reciprocal %43 {approx = true} : vector<2x8x1xf32> -> vector<2x8x1xf32>
    %45 = vector.broadcast %44 : vector<2x8x1xf32> to vector<2x8x8xf32>
    %46 = arith.mulf %41, %45 : vector<2x8x8xf32>
    %47 = vector.extract_strided_slice %33 {offsets = [0, 0, 0], sizes = [2, 8, 10], strides = [1, 1, 1]} : vector<2x8x30xf32> to vector<2x8x10xf32>
    "tpu.trace_start"() <{level = 10 : i32, message = "bqk,bkd->bqd"}> : () -> ()
    %cst_32 = arith.constant dense<0.000000e+00> : vector<2x8x10xf32>
    %48 = tpu.matmul %46, %47, %cst_32 {dimension_numbers = #tpu.dot_dimension_numbers<[2], [1], [1], [2], [0, 0, 0, 1, 1, 2], [0], [0]>} : vector<2x8x8xf32>, vector<2x8x10xf32>, vector<2x8x10xf32> -> vector<2x8x10xf32>
    "tpu.trace_stop"() : () -> ()
    %49 = vector.extract_strided_slice %31 {offsets = [0, 0, 10], sizes = [2, 8, 10], strides = [1, 1, 1]} : vector<2x8x30xf32> to vector<2x8x10xf32>
    %50 = vector.extract_strided_slice %32 {offsets = [0, 0, 10], sizes = [2, 8, 10], strides = [1, 1, 1]} : vector<2x8x30xf32> to vector<2x8x10xf32>
    "tpu.trace_start"() <{level = 10 : i32, message = "bqd,bkd->bqk"}> : () -> ()
    %cst_33 = arith.constant dense<0.000000e+00> : vector<2x8x8xf32>
    %51 = tpu.matmul %49, %50, %cst_33 {dimension_numbers = #tpu.dot_dimension_numbers<[2], [2], [1], [1], [0, 0, 0, 1, 1, 1], [0], [0]>} : vector<2x8x10xf32>, vector<2x8x10xf32>, vector<2x8x8xf32> -> vector<2x8x8xf32>
    "tpu.trace_stop"() : () -> ()
    %cst_34 = arith.constant dense<0xFF800000> : vector<2x8xf32>
    %52 = vector.multi_reduction <maximumf>, %51, %cst_34 [2] : vector<2x8x8xf32> to vector<2x8xf32>
    %53 = vector.shape_cast %52 : vector<2x8xf32> to vector<2x8x1xf32>
    %54 = vector.broadcast %53 : vector<2x8x1xf32> to vector<2x8x8xf32>
    %55 = arith.subf %51, %54 : vector<2x8x8xf32>
    %56 = math.exp %55 : vector<2x8x8xf32>
    %cst_35 = arith.constant dense<0.000000e+00> : vector<2x8xf32>
    %57 = vector.multi_reduction <add>, %56, %cst_35 [2] : vector<2x8x8xf32> to vector<2x8xf32>
    %58 = vector.shape_cast %57 : vector<2x8xf32> to vector<2x8x1xf32>
    %59 = tpu.reciprocal %58 {approx = true} : vector<2x8x1xf32> -> vector<2x8x1xf32>
    %60 = vector.broadcast %59 : vector<2x8x1xf32> to vector<2x8x8xf32>
    %61 = arith.mulf %56, %60 : vector<2x8x8xf32>
    %62 = vector.extract_strided_slice %33 {offsets = [0, 0, 10], sizes = [2, 8, 10], strides = [1, 1, 1]} : vector<2x8x30xf32> to vector<2x8x10xf32>
    "tpu.trace_start"() <{level = 10 : i32, message = "bqk,bkd->bqd"}> : () -> ()
    %cst_36 = arith.constant dense<0.000000e+00> : vector<2x8x10xf32>
    %63 = tpu.matmul %61, %62, %cst_36 {dimension_numbers = #tpu.dot_dimension_numbers<[2], [1], [1], [2], [0, 0, 0, 1, 1, 2], [0], [0]>} : vector<2x8x8xf32>, vector<2x8x10xf32>, vector<2x8x10xf32> -> vector<2x8x10xf32>
    "tpu.trace_stop"() : () -> ()
    %64 = vector.extract_strided_slice %31 {offsets = [0, 0, 20], sizes = [2, 8, 10], strides = [1, 1, 1]} : vector<2x8x30xf32> to vector<2x8x10xf32>
    %65 = vector.extract_strided_slice %32 {offsets = [0, 0, 20], sizes = [2, 8, 10], strides = [1, 1, 1]} : vector<2x8x30xf32> to vector<2x8x10xf32>
    "tpu.trace_start"() <{level = 10 : i32, message = "bqd,bkd->bqk"}> : () -> ()
    %cst_37 = arith.constant dense<0.000000e+00> : vector<2x8x8xf32>
    %66 = tpu.matmul %64, %65, %cst_37 {dimension_numbers = #tpu.dot_dimension_numbers<[2], [2], [1], [1], [0, 0, 0, 1, 1, 1], [0], [0]>} : vector<2x8x10xf32>, vector<2x8x10xf32>, vector<2x8x8xf32> -> vector<2x8x8xf32>
    "tpu.trace_stop"() : () -> ()
    %cst_38 = arith.constant dense<0xFF800000> : vector<2x8xf32>
    %67 = vector.multi_reduction <maximumf>, %66, %cst_38 [2] : vector<2x8x8xf32> to vector<2x8xf32>
    %68 = vector.shape_cast %67 : vector<2x8xf32> to vector<2x8x1xf32>
    %69 = vector.broadcast %68 : vector<2x8x1xf32> to vector<2x8x8xf32>
    %70 = arith.subf %66, %69 : vector<2x8x8xf32>
    %71 = math.exp %70 : vector<2x8x8xf32>
    %cst_39 = arith.constant dense<0.000000e+00> : vector<2x8xf32>
    %72 = vector.multi_reduction <add>, %71, %cst_39 [2] : vector<2x8x8xf32> to vector<2x8xf32>
    %73 = vector.shape_cast %72 : vector<2x8xf32> to vector<2x8x1xf32>
    %74 = tpu.reciprocal %73 {approx = true} : vector<2x8x1xf32> -> vector<2x8x1xf32>
    %75 = vector.broadcast %74 : vector<2x8x1xf32> to vector<2x8x8xf32>
    %76 = arith.mulf %71, %75 : vector<2x8x8xf32>
    %77 = vector.extract_strided_slice %33 {offsets = [0, 0, 20], sizes = [2, 8, 10], strides = [1, 1, 1]} : vector<2x8x30xf32> to vector<2x8x10xf32>
    "tpu.trace_start"() <{level = 10 : i32, message = "bqk,bkd->bqd"}> : () -> ()
    %cst_40 = arith.constant dense<0.000000e+00> : vector<2x8x10xf32>
    %78 = tpu.matmul %76, %77, %cst_40 {dimension_numbers = #tpu.dot_dimension_numbers<[2], [1], [1], [2], [0, 0, 0, 1, 1, 2], [0], [0]>} : vector<2x8x8xf32>, vector<2x8x10xf32>, vector<2x8x10xf32> -> vector<2x8x10xf32>
    "tpu.trace_stop"() : () -> ()
    %79 = tpu.concatenate %48, %63, %78 in 2 : vector<2x8x10xf32>, vector<2x8x10xf32>, vector<2x8x10xf32> -> vector<2x8x30xf32>
    %80 = vector.shape_cast %79 : vector<2x8x30xf32> to vector<16x30xf32>
    %c0_41 = arith.constant 0 : index
    %c0_42 = arith.constant 0 : index
    %c0_43 = arith.constant 0 : index
    %81 = vector.load %arg10[%c0_41, %c0_42, %c0_43] : memref<3x30x32xf32, #tpu.memory_space<vmem>>, vector<1x30x32xf32>
    %82 = vector.shape_cast %81 : vector<1x30x32xf32> to vector<30x32xf32>
    %cst_44 = arith.constant dense<0.000000e+00> : vector<16x32xf32>
    %83 = tpu.matmul %80, %82, %cst_44 {dimension_numbers = #tpu.dot_dimension_numbers<[1], [0], [0], [1], [0, 0, 1, 1], [], []>} : vector<16x30xf32>, vector<30x32xf32>, vector<16x32xf32> -> vector<16x32xf32>
    %c0_45 = arith.constant 0 : index
    %c0_46 = arith.constant 0 : index
    %c0_47 = arith.constant 0 : index
    %84 = vector.load %arg11[%c0_45, %c0_46, %c0_47] : memref<3x1x32xf32, #tpu.memory_space<vmem>>, vector<1x1x32xf32>
    %85 = vector.shape_cast %84 : vector<1x1x32xf32> to vector<1x32xf32>
    %86 = vector.broadcast %85 : vector<1x32xf32> to vector<16x32xf32>
    %87 = arith.addf %83, %86 : vector<16x32xf32>
    %88 = arith.addf %7, %87 : vector<16x32xf32>
    %c0_48 = arith.constant 0 : index
    %c0_49 = arith.constant 0 : index
    %c0_50 = arith.constant 0 : index
    %89 = vector.load %arg16[%c0_48, %c0_49, %c0_50] : memref<3x1x32xf32, #tpu.memory_space<vmem>>, vector<1x1x32xf32>
    %90 = vector.shape_cast %89 : vector<1x1x32xf32> to vector<1x32xf32>
    %c0_51 = arith.constant 0 : index
    %c0_52 = arith.constant 0 : index
    %c0_53 = arith.constant 0 : index
    %91 = vector.load %arg17[%c0_51, %c0_52, %c0_53] : memref<3x1x32xf32, #tpu.memory_space<vmem>>, vector<1x1x32xf32>
    %92 = vector.shape_cast %91 : vector<1x1x32xf32> to vector<1x32xf32>
    %cst_54 = arith.constant dense<0.000000e+00> : vector<16xf32>
    %93 = vector.multi_reduction <add>, %88, %cst_54 [1] : vector<16x32xf32> to vector<16xf32>
    %94 = vector.shape_cast %93 : vector<16xf32> to vector<16x1xf32>
    %cst_55 = arith.constant 3.200000e+01 : f32
    %95 = vector.broadcast %cst_55 : f32 to vector<16x1xf32>
    %96 = arith.divf %94, %95 : vector<16x1xf32>
    %97 = vector.broadcast %96 : vector<16x1xf32> to vector<16x32xf32>
    %98 = arith.subf %88, %97 : vector<16x32xf32>
    %99 = arith.mulf %98, %98 : vector<16x32xf32>
    %cst_56 = arith.constant dense<0.000000e+00> : vector<16xf32>
    %100 = vector.multi_reduction <add>, %99, %cst_56 [1] : vector<16x32xf32> to vector<16xf32>
    %101 = vector.shape_cast %100 : vector<16xf32> to vector<16x1xf32>
    %cst_57 = arith.constant 3.200000e+01 : f32
    %102 = vector.broadcast %cst_57 : f32 to vector<16x1xf32>
    %103 = arith.divf %101, %102 : vector<16x1xf32>
    %104 = vector.broadcast %96 : vector<16x1xf32> to vector<16x32xf32>
    %105 = arith.subf %88, %104 : vector<16x32xf32>
    %cst_58 = arith.constant 9.99999974E-6 : f32
    %106 = vector.broadcast %cst_58 : f32 to vector<16x1xf32>
    %107 = arith.addf %103, %106 : vector<16x1xf32>
    %108 = math.rsqrt %107 : vector<16x1xf32>
    %109 = vector.broadcast %108 : vector<16x1xf32> to vector<16x32xf32>
    %110 = arith.mulf %105, %109 : vector<16x32xf32>
    %111 = vector.broadcast %90 : vector<1x32xf32> to vector<16x32xf32>
    %112 = arith.mulf %110, %111 : vector<16x32xf32>
    %113 = vector.broadcast %92 : vector<1x32xf32> to vector<16x32xf32>
    %114 = arith.addf %112, %113 : vector<16x32xf32>
    %c0_59 = arith.constant 0 : index
    %c0_60 = arith.constant 0 : index
    %c0_61 = arith.constant 0 : index
    %115 = vector.load %arg12[%c0_59, %c0_60, %c0_61] : memref<3x32x64xf32, #tpu.memory_space<vmem>>, vector<1x32x64xf32>
    %116 = vector.shape_cast %115 : vector<1x32x64xf32> to vector<32x64xf32>
    %cst_62 = arith.constant dense<0.000000e+00> : vector<16x64xf32>
    %117 = tpu.matmul %114, %116, %cst_62 {dimension_numbers = #tpu.dot_dimension_numbers<[1], [0], [0], [1], [0, 0, 1, 1], [], []>} : vector<16x32xf32>, vector<32x64xf32>, vector<16x64xf32> -> vector<16x64xf32>
    %c0_63 = arith.constant 0 : index
    %c0_64 = arith.constant 0 : index
    %c0_65 = arith.constant 0 : index
    %118 = vector.load %arg13[%c0_63, %c0_64, %c0_65] : memref<3x1x64xf32, #tpu.memory_space<vmem>>, vector<1x1x64xf32>
    %119 = vector.shape_cast %118 : vector<1x1x64xf32> to vector<1x64xf32>
    %120 = vector.broadcast %119 : vector<1x64xf32> to vector<16x64xf32>
    %121 = arith.addf %117, %120 : vector<16x64xf32>
    %cst_66 = arith.constant 0.000000e+00 : f32
    %122 = vector.broadcast %cst_66 : f32 to vector<16x64xf32>
    %123 = arith.maximumf %121, %122 : vector<16x64xf32>
    %c0_67 = arith.constant 0 : index
    %c0_68 = arith.constant 0 : index
    %c0_69 = arith.constant 0 : index
    %124 = vector.load %arg14[%c0_67, %c0_68, %c0_69] : memref<3x64x32xf32, #tpu.memory_space<vmem>>, vector<1x64x32xf32>
    %125 = vector.shape_cast %124 : vector<1x64x32xf32> to vector<64x32xf32>
    %cst_70 = arith.constant dense<0.000000e+00> : vector<16x32xf32>
    %126 = tpu.matmul %123, %125, %cst_70 {dimension_numbers = #tpu.dot_dimension_numbers<[1], [0], [0], [1], [0, 0, 1, 1], [], []>} : vector<16x64xf32>, vector<64x32xf32>, vector<16x32xf32> -> vector<16x32xf32>
    %c0_71 = arith.constant 0 : index
    %c0_72 = arith.constant 0 : index
    %c0_73 = arith.constant 0 : index
    %127 = vector.load %arg15[%c0_71, %c0_72, %c0_73] : memref<3x1x32xf32, #tpu.memory_space<vmem>>, vector<1x1x32xf32>
    %128 = vector.shape_cast %127 : vector<1x1x32xf32> to vector<1x32xf32>
    %129 = vector.broadcast %128 : vector<1x32xf32> to vector<16x32xf32>
    %130 = arith.addf %126, %129 : vector<16x32xf32>
    %131 = arith.addf %114, %130 : vector<16x32xf32>
    %c0_74 = arith.constant 0 : index
    %c0_75 = arith.constant 0 : index
    %c0_76 = arith.constant 0 : index
    %132 = vector.load %arg18[%c0_74, %c0_75, %c0_76] : memref<3x1x32xf32, #tpu.memory_space<vmem>>, vector<1x1x32xf32>
    %133 = vector.shape_cast %132 : vector<1x1x32xf32> to vector<1x32xf32>
    %c0_77 = arith.constant 0 : index
    %c0_78 = arith.constant 0 : index
    %c0_79 = arith.constant 0 : index
    %134 = vector.load %arg19[%c0_77, %c0_78, %c0_79] : memref<3x1x32xf32, #tpu.memory_space<vmem>>, vector<1x1x32xf32>
    %135 = vector.shape_cast %134 : vector<1x1x32xf32> to vector<1x32xf32>
    %cst_80 = arith.constant dense<0.000000e+00> : vector<16xf32>
    %136 = vector.multi_reduction <add>, %131, %cst_80 [1] : vector<16x32xf32> to vector<16xf32>
    %137 = vector.shape_cast %136 : vector<16xf32> to vector<16x1xf32>
    %cst_81 = arith.constant 3.200000e+01 : f32
    %138 = vector.broadcast %cst_81 : f32 to vector<16x1xf32>
    %139 = arith.divf %137, %138 : vector<16x1xf32>
    %140 = vector.broadcast %139 : vector<16x1xf32> to vector<16x32xf32>
    %141 = arith.subf %131, %140 : vector<16x32xf32>
    %142 = arith.mulf %141, %141 : vector<16x32xf32>
    %cst_82 = arith.constant dense<0.000000e+00> : vector<16xf32>
    %143 = vector.multi_reduction <add>, %142, %cst_82 [1] : vector<16x32xf32> to vector<16xf32>
    %144 = vector.shape_cast %143 : vector<16xf32> to vector<16x1xf32>
    %cst_83 = arith.constant 3.200000e+01 : f32
    %145 = vector.broadcast %cst_83 : f32 to vector<16x1xf32>
    %146 = arith.divf %144, %145 : vector<16x1xf32>
    %147 = vector.broadcast %139 : vector<16x1xf32> to vector<16x32xf32>
    %148 = arith.subf %131, %147 : vector<16x32xf32>
    %cst_84 = arith.constant 9.99999974E-6 : f32
    %149 = vector.broadcast %cst_84 : f32 to vector<16x1xf32>
    %150 = arith.addf %146, %149 : vector<16x1xf32>
    %151 = math.rsqrt %150 : vector<16x1xf32>
    %152 = vector.broadcast %151 : vector<16x1xf32> to vector<16x32xf32>
    %153 = arith.mulf %148, %152 : vector<16x32xf32>
    %154 = vector.broadcast %133 : vector<1x32xf32> to vector<16x32xf32>
    %155 = arith.mulf %153, %154 : vector<16x32xf32>
    %156 = vector.broadcast %135 : vector<1x32xf32> to vector<16x32xf32>
    %157 = arith.addf %155, %156 : vector<16x32xf32>
    %c1 = arith.constant 1 : index
    %c0_85 = arith.constant 0 : index
    %c0_86 = arith.constant 0 : index
    %158 = vector.load %arg4[%c1, %c0_85, %c0_86] : memref<3x32x30xf32, #tpu.memory_space<vmem>>, vector<1x32x30xf32>
    %159 = vector.shape_cast %158 : vector<1x32x30xf32> to vector<32x30xf32>
    %cst_87 = arith.constant dense<0.000000e+00> : vector<16x30xf32>
    %160 = tpu.matmul %157, %159, %cst_87 {dimension_numbers = #tpu.dot_dimension_numbers<[1], [0], [0], [1], [0, 0, 1, 1], [], []>} : vector<16x32xf32>, vector<32x30xf32>, vector<16x30xf32> -> vector<16x30xf32>
    %c1_88 = arith.constant 1 : index
    %c0_89 = arith.constant 0 : index
    %c0_90 = arith.constant 0 : index
    %161 = vector.load %arg5[%c1_88, %c0_89, %c0_90] : memref<3x1x30xf32, #tpu.memory_space<vmem>>, vector<1x1x30xf32>
    %162 = vector.shape_cast %161 : vector<1x1x30xf32> to vector<1x30xf32>
    %163 = vector.broadcast %162 : vector<1x30xf32> to vector<16x30xf32>
    %164 = arith.addf %160, %163 : vector<16x30xf32>
    %cst_91 = arith.constant 0.316227764 : f32
    %165 = vector.broadcast %cst_91 : f32 to vector<16x30xf32>
    %166 = arith.mulf %164, %165 : vector<16x30xf32>
    %c1_92 = arith.constant 1 : index
    %c0_93 = arith.constant 0 : index
    %c0_94 = arith.constant 0 : index
    %167 = vector.load %arg6[%c1_92, %c0_93, %c0_94] : memref<3x32x30xf32, #tpu.memory_space<vmem>>, vector<1x32x30xf32>
    %168 = vector.shape_cast %167 : vector<1x32x30xf32> to vector<32x30xf32>
    %cst_95 = arith.constant dense<0.000000e+00> : vector<16x30xf32>
    %169 = tpu.matmul %157, %168, %cst_95 {dimension_numbers = #tpu.dot_dimension_numbers<[1], [0], [0], [1], [0, 0, 1, 1], [], []>} : vector<16x32xf32>, vector<32x30xf32>, vector<16x30xf32> -> vector<16x30xf32>
    %c1_96 = arith.constant 1 : index
    %c0_97 = arith.constant 0 : index
    %c0_98 = arith.constant 0 : index
    %170 = vector.load %arg7[%c1_96, %c0_97, %c0_98] : memref<3x1x30xf32, #tpu.memory_space<vmem>>, vector<1x1x30xf32>
    %171 = vector.shape_cast %170 : vector<1x1x30xf32> to vector<1x30xf32>
    %172 = vector.broadcast %171 : vector<1x30xf32> to vector<16x30xf32>
    %173 = arith.addf %169, %172 : vector<16x30xf32>
    %c1_99 = arith.constant 1 : index
    %c0_100 = arith.constant 0 : index
    %c0_101 = arith.constant 0 : index
    %174 = vector.load %arg8[%c1_99, %c0_100, %c0_101] : memref<3x32x30xf32, #tpu.memory_space<vmem>>, vector<1x32x30xf32>
    %175 = vector.shape_cast %174 : vector<1x32x30xf32> to vector<32x30xf32>
    %cst_102 = arith.constant dense<0.000000e+00> : vector<16x30xf32>
    %176 = tpu.matmul %157, %175, %cst_102 {dimension_numbers = #tpu.dot_dimension_numbers<[1], [0], [0], [1], [0, 0, 1, 1], [], []>} : vector<16x32xf32>, vector<32x30xf32>, vector<16x30xf32> -> vector<16x30xf32>
    %c1_103 = arith.constant 1 : index
    %c0_104 = arith.constant 0 : index
    %c0_105 = arith.constant 0 : index
    %177 = vector.load %arg9[%c1_103, %c0_104, %c0_105] : memref<3x1x30xf32, #tpu.memory_space<vmem>>, vector<1x1x30xf32>
    %178 = vector.shape_cast %177 : vector<1x1x30xf32> to vector<1x30xf32>
    %179 = vector.broadcast %178 : vector<1x30xf32> to vector<16x30xf32>
    %180 = arith.addf %176, %179 : vector<16x30xf32>
    %181 = vector.shape_cast %166 : vector<16x30xf32> to vector<2x8x30xf32>
    %182 = vector.shape_cast %173 : vector<16x30xf32> to vector<2x8x30xf32>
    %183 = vector.shape_cast %180 : vector<16x30xf32> to vector<2x8x30xf32>
    %184 = vector.extract_strided_slice %181 {offsets = [0, 0, 0], sizes = [2, 8, 10], strides = [1, 1, 1]} : vector<2x8x30xf32> to vector<2x8x10xf32>
    %185 = vector.extract_strided_slice %182 {offsets = [0, 0, 0], sizes = [2, 8, 10], strides = [1, 1, 1]} : vector<2x8x30xf32> to vector<2x8x10xf32>
    "tpu.trace_start"() <{level = 10 : i32, message = "bqd,bkd->bqk"}> : () -> ()
    %cst_106 = arith.constant dense<0.000000e+00> : vector<2x8x8xf32>
    %186 = tpu.matmul %184, %185, %cst_106 {dimension_numbers = #tpu.dot_dimension_numbers<[2], [2], [1], [1], [0, 0, 0, 1, 1, 1], [0], [0]>} : vector<2x8x10xf32>, vector<2x8x10xf32>, vector<2x8x8xf32> -> vector<2x8x8xf32>
    "tpu.trace_stop"() : () -> ()
    %cst_107 = arith.constant dense<0xFF800000> : vector<2x8xf32>
    %187 = vector.multi_reduction <maximumf>, %186, %cst_107 [2] : vector<2x8x8xf32> to vector<2x8xf32>
    %188 = vector.shape_cast %187 : vector<2x8xf32> to vector<2x8x1xf32>
    %189 = vector.broadcast %188 : vector<2x8x1xf32> to vector<2x8x8xf32>
    %190 = arith.subf %186, %189 : vector<2x8x8xf32>
    %191 = math.exp %190 : vector<2x8x8xf32>
    %cst_108 = arith.constant dense<0.000000e+00> : vector<2x8xf32>
    %192 = vector.multi_reduction <add>, %191, %cst_108 [2] : vector<2x8x8xf32> to vector<2x8xf32>
    %193 = vector.shape_cast %192 : vector<2x8xf32> to vector<2x8x1xf32>
    %194 = tpu.reciprocal %193 {approx = true} : vector<2x8x1xf32> -> vector<2x8x1xf32>
    %195 = vector.broadcast %194 : vector<2x8x1xf32> to vector<2x8x8xf32>
    %196 = arith.mulf %191, %195 : vector<2x8x8xf32>
    %197 = vector.extract_strided_slice %183 {offsets = [0, 0, 0], sizes = [2, 8, 10], strides = [1, 1, 1]} : vector<2x8x30xf32> to vector<2x8x10xf32>
    "tpu.trace_start"() <{level = 10 : i32, message = "bqk,bkd->bqd"}> : () -> ()
    %cst_109 = arith.constant dense<0.000000e+00> : vector<2x8x10xf32>
    %198 = tpu.matmul %196, %197, %cst_109 {dimension_numbers = #tpu.dot_dimension_numbers<[2], [1], [1], [2], [0, 0, 0, 1, 1, 2], [0], [0]>} : vector<2x8x8xf32>, vector<2x8x10xf32>, vector<2x8x10xf32> -> vector<2x8x10xf32>
    "tpu.trace_stop"() : () -> ()
    %199 = vector.extract_strided_slice %181 {offsets = [0, 0, 10], sizes = [2, 8, 10], strides = [1, 1, 1]} : vector<2x8x30xf32> to vector<2x8x10xf32>
    %200 = vector.extract_strided_slice %182 {offsets = [0, 0, 10], sizes = [2, 8, 10], strides = [1, 1, 1]} : vector<2x8x30xf32> to vector<2x8x10xf32>
    "tpu.trace_start"() <{level = 10 : i32, message = "bqd,bkd->bqk"}> : () -> ()
    %cst_110 = arith.constant dense<0.000000e+00> : vector<2x8x8xf32>
    %201 = tpu.matmul %199, %200, %cst_110 {dimension_numbers = #tpu.dot_dimension_numbers<[2], [2], [1], [1], [0, 0, 0, 1, 1, 1], [0], [0]>} : vector<2x8x10xf32>, vector<2x8x10xf32>, vector<2x8x8xf32> -> vector<2x8x8xf32>
    "tpu.trace_stop"() : () -> ()
    %cst_111 = arith.constant dense<0xFF800000> : vector<2x8xf32>
    %202 = vector.multi_reduction <maximumf>, %201, %cst_111 [2] : vector<2x8x8xf32> to vector<2x8xf32>
    %203 = vector.shape_cast %202 : vector<2x8xf32> to vector<2x8x1xf32>
    %204 = vector.broadcast %203 : vector<2x8x1xf32> to vector<2x8x8xf32>
    %205 = arith.subf %201, %204 : vector<2x8x8xf32>
    %206 = math.exp %205 : vector<2x8x8xf32>
    %cst_112 = arith.constant dense<0.000000e+00> : vector<2x8xf32>
    %207 = vector.multi_reduction <add>, %206, %cst_112 [2] : vector<2x8x8xf32> to vector<2x8xf32>
    %208 = vector.shape_cast %207 : vector<2x8xf32> to vector<2x8x1xf32>
    %209 = tpu.reciprocal %208 {approx = true} : vector<2x8x1xf32> -> vector<2x8x1xf32>
    %210 = vector.broadcast %209 : vector<2x8x1xf32> to vector<2x8x8xf32>
    %211 = arith.mulf %206, %210 : vector<2x8x8xf32>
    %212 = vector.extract_strided_slice %183 {offsets = [0, 0, 10], sizes = [2, 8, 10], strides = [1, 1, 1]} : vector<2x8x30xf32> to vector<2x8x10xf32>
    "tpu.trace_start"() <{level = 10 : i32, message = "bqk,bkd->bqd"}> : () -> ()
    %cst_113 = arith.constant dense<0.000000e+00> : vector<2x8x10xf32>
    %213 = tpu.matmul %211, %212, %cst_113 {dimension_numbers = #tpu.dot_dimension_numbers<[2], [1], [1], [2], [0, 0, 0, 1, 1, 2], [0], [0]>} : vector<2x8x8xf32>, vector<2x8x10xf32>, vector<2x8x10xf32> -> vector<2x8x10xf32>
    "tpu.trace_stop"() : () -> ()
    %214 = vector.extract_strided_slice %181 {offsets = [0, 0, 20], sizes = [2, 8, 10], strides = [1, 1, 1]} : vector<2x8x30xf32> to vector<2x8x10xf32>
    %215 = vector.extract_strided_slice %182 {offsets = [0, 0, 20], sizes = [2, 8, 10], strides = [1, 1, 1]} : vector<2x8x30xf32> to vector<2x8x10xf32>
    "tpu.trace_start"() <{level = 10 : i32, message = "bqd,bkd->bqk"}> : () -> ()
    %cst_114 = arith.constant dense<0.000000e+00> : vector<2x8x8xf32>
    %216 = tpu.matmul %214, %215, %cst_114 {dimension_numbers = #tpu.dot_dimension_numbers<[2], [2], [1], [1], [0, 0, 0, 1, 1, 1], [0], [0]>} : vector<2x8x10xf32>, vector<2x8x10xf32>, vector<2x8x8xf32> -> vector<2x8x8xf32>
    "tpu.trace_stop"() : () -> ()
    %cst_115 = arith.constant dense<0xFF800000> : vector<2x8xf32>
    %217 = vector.multi_reduction <maximumf>, %216, %cst_115 [2] : vector<2x8x8xf32> to vector<2x8xf32>
    %218 = vector.shape_cast %217 : vector<2x8xf32> to vector<2x8x1xf32>
    %219 = vector.broadcast %218 : vector<2x8x1xf32> to vector<2x8x8xf32>
    %220 = arith.subf %216, %219 : vector<2x8x8xf32>
    %221 = math.exp %220 : vector<2x8x8xf32>
    %cst_116 = arith.constant dense<0.000000e+00> : vector<2x8xf32>
    %222 = vector.multi_reduction <add>, %221, %cst_116 [2] : vector<2x8x8xf32> to vector<2x8xf32>
    %223 = vector.shape_cast %222 : vector<2x8xf32> to vector<2x8x1xf32>
    %224 = tpu.reciprocal %223 {approx = true} : vector<2x8x1xf32> -> vector<2x8x1xf32>
    %225 = vector.broadcast %224 : vector<2x8x1xf32> to vector<2x8x8xf32>
    %226 = arith.mulf %221, %225 : vector<2x8x8xf32>
    %227 = vector.extract_strided_slice %183 {offsets = [0, 0, 20], sizes = [2, 8, 10], strides = [1, 1, 1]} : vector<2x8x30xf32> to vector<2x8x10xf32>
    "tpu.trace_start"() <{level = 10 : i32, message = "bqk,bkd->bqd"}> : () -> ()
    %cst_117 = arith.constant dense<0.000000e+00> : vector<2x8x10xf32>
    %228 = tpu.matmul %226, %227, %cst_117 {dimension_numbers = #tpu.dot_dimension_numbers<[2], [1], [1], [2], [0, 0, 0, 1, 1, 2], [0], [0]>} : vector<2x8x8xf32>, vector<2x8x10xf32>, vector<2x8x10xf32> -> vector<2x8x10xf32>
    "tpu.trace_stop"() : () -> ()
    %229 = tpu.concatenate %198, %213, %228 in 2 : vector<2x8x10xf32>, vector<2x8x10xf32>, vector<2x8x10xf32> -> vector<2x8x30xf32>
    %230 = vector.shape_cast %229 : vector<2x8x30xf32> to vector<16x30xf32>
    %c1_118 = arith.constant 1 : index
    %c0_119 = arith.constant 0 : index
    %c0_120 = arith.constant 0 : index
    %231 = vector.load %arg10[%c1_118, %c0_119, %c0_120] : memref<3x30x32xf32, #tpu.memory_space<vmem>>, vector<1x30x32xf32>
    %232 = vector.shape_cast %231 : vector<1x30x32xf32> to vector<30x32xf32>
    %cst_121 = arith.constant dense<0.000000e+00> : vector<16x32xf32>
    %233 = tpu.matmul %230, %232, %cst_121 {dimension_numbers = #tpu.dot_dimension_numbers<[1], [0], [0], [1], [0, 0, 1, 1], [], []>} : vector<16x30xf32>, vector<30x32xf32>, vector<16x32xf32> -> vector<16x32xf32>
    %c1_122 = arith.constant 1 : index
    %c0_123 = arith.constant 0 : index
    %c0_124 = arith.constant 0 : index
    %234 = vector.load %arg11[%c1_122, %c0_123, %c0_124] : memref<3x1x32xf32, #tpu.memory_space<vmem>>, vector<1x1x32xf32>
    %235 = vector.shape_cast %234 : vector<1x1x32xf32> to vector<1x32xf32>
    %236 = vector.broadcast %235 : vector<1x32xf32> to vector<16x32xf32>
    %237 = arith.addf %233, %236 : vector<16x32xf32>
    %238 = arith.addf %157, %237 : vector<16x32xf32>
    %c1_125 = arith.constant 1 : index
    %c0_126 = arith.constant 0 : index
    %c0_127 = arith.constant 0 : index
    %239 = vector.load %arg16[%c1_125, %c0_126, %c0_127] : memref<3x1x32xf32, #tpu.memory_space<vmem>>, vector<1x1x32xf32>
    %240 = vector.shape_cast %239 : vector<1x1x32xf32> to vector<1x32xf32>
    %c1_128 = arith.constant 1 : index
    %c0_129 = arith.constant 0 : index
    %c0_130 = arith.constant 0 : index
    %241 = vector.load %arg17[%c1_128, %c0_129, %c0_130] : memref<3x1x32xf32, #tpu.memory_space<vmem>>, vector<1x1x32xf32>
    %242 = vector.shape_cast %241 : vector<1x1x32xf32> to vector<1x32xf32>
    %cst_131 = arith.constant dense<0.000000e+00> : vector<16xf32>
    %243 = vector.multi_reduction <add>, %238, %cst_131 [1] : vector<16x32xf32> to vector<16xf32>
    %244 = vector.shape_cast %243 : vector<16xf32> to vector<16x1xf32>
    %cst_132 = arith.constant 3.200000e+01 : f32
    %245 = vector.broadcast %cst_132 : f32 to vector<16x1xf32>
    %246 = arith.divf %244, %245 : vector<16x1xf32>
    %247 = vector.broadcast %246 : vector<16x1xf32> to vector<16x32xf32>
    %248 = arith.subf %238, %247 : vector<16x32xf32>
    %249 = arith.mulf %248, %248 : vector<16x32xf32>
    %cst_133 = arith.constant dense<0.000000e+00> : vector<16xf32>
    %250 = vector.multi_reduction <add>, %249, %cst_133 [1] : vector<16x32xf32> to vector<16xf32>
    %251 = vector.shape_cast %250 : vector<16xf32> to vector<16x1xf32>
    %cst_134 = arith.constant 3.200000e+01 : f32
    %252 = vector.broadcast %cst_134 : f32 to vector<16x1xf32>
    %253 = arith.divf %251, %252 : vector<16x1xf32>
    %254 = vector.broadcast %246 : vector<16x1xf32> to vector<16x32xf32>
    %255 = arith.subf %238, %254 : vector<16x32xf32>
    %cst_135 = arith.constant 9.99999974E-6 : f32
    %256 = vector.broadcast %cst_135 : f32 to vector<16x1xf32>
    %257 = arith.addf %253, %256 : vector<16x1xf32>
    %258 = math.rsqrt %257 : vector<16x1xf32>
    %259 = vector.broadcast %258 : vector<16x1xf32> to vector<16x32xf32>
    %260 = arith.mulf %255, %259 : vector<16x32xf32>
    %261 = vector.broadcast %240 : vector<1x32xf32> to vector<16x32xf32>
    %262 = arith.mulf %260, %261 : vector<16x32xf32>
    %263 = vector.broadcast %242 : vector<1x32xf32> to vector<16x32xf32>
    %264 = arith.addf %262, %263 : vector<16x32xf32>
    %c1_136 = arith.constant 1 : index
    %c0_137 = arith.constant 0 : index
    %c0_138 = arith.constant 0 : index
    %265 = vector.load %arg12[%c1_136, %c0_137, %c0_138] : memref<3x32x64xf32, #tpu.memory_space<vmem>>, vector<1x32x64xf32>
    %266 = vector.shape_cast %265 : vector<1x32x64xf32> to vector<32x64xf32>
    %cst_139 = arith.constant dense<0.000000e+00> : vector<16x64xf32>
    %267 = tpu.matmul %264, %266, %cst_139 {dimension_numbers = #tpu.dot_dimension_numbers<[1], [0], [0], [1], [0, 0, 1, 1], [], []>} : vector<16x32xf32>, vector<32x64xf32>, vector<16x64xf32> -> vector<16x64xf32>
    %c1_140 = arith.constant 1 : index
    %c0_141 = arith.constant 0 : index
    %c0_142 = arith.constant 0 : index
    %268 = vector.load %arg13[%c1_140, %c0_141, %c0_142] : memref<3x1x64xf32, #tpu.memory_space<vmem>>, vector<1x1x64xf32>
    %269 = vector.shape_cast %268 : vector<1x1x64xf32> to vector<1x64xf32>
    %270 = vector.broadcast %269 : vector<1x64xf32> to vector<16x64xf32>
    %271 = arith.addf %267, %270 : vector<16x64xf32>
    %cst_143 = arith.constant 0.000000e+00 : f32
    %272 = vector.broadcast %cst_143 : f32 to vector<16x64xf32>
    %273 = arith.maximumf %271, %272 : vector<16x64xf32>
    %c1_144 = arith.constant 1 : index
    %c0_145 = arith.constant 0 : index
    %c0_146 = arith.constant 0 : index
    %274 = vector.load %arg14[%c1_144, %c0_145, %c0_146] : memref<3x64x32xf32, #tpu.memory_space<vmem>>, vector<1x64x32xf32>
    %275 = vector.shape_cast %274 : vector<1x64x32xf32> to vector<64x32xf32>
    %cst_147 = arith.constant dense<0.000000e+00> : vector<16x32xf32>
    %276 = tpu.matmul %273, %275, %cst_147 {dimension_numbers = #tpu.dot_dimension_numbers<[1], [0], [0], [1], [0, 0, 1, 1], [], []>} : vector<16x64xf32>, vector<64x32xf32>, vector<16x32xf32> -> vector<16x32xf32>
    %c1_148 = arith.constant 1 : index
    %c0_149 = arith.constant 0 : index
    %c0_150 = arith.constant 0 : index
    %277 = vector.load %arg15[%c1_148, %c0_149, %c0_150] : memref<3x1x32xf32, #tpu.memory_space<vmem>>, vector<1x1x32xf32>
    %278 = vector.shape_cast %277 : vector<1x1x32xf32> to vector<1x32xf32>
    %279 = vector.broadcast %278 : vector<1x32xf32> to vector<16x32xf32>
    %280 = arith.addf %276, %279 : vector<16x32xf32>
    %281 = arith.addf %264, %280 : vector<16x32xf32>
    %c1_151 = arith.constant 1 : index
    %c0_152 = arith.constant 0 : index
    %c0_153 = arith.constant 0 : index
    %282 = vector.load %arg18[%c1_151, %c0_152, %c0_153] : memref<3x1x32xf32, #tpu.memory_space<vmem>>, vector<1x1x32xf32>
    %283 = vector.shape_cast %282 : vector<1x1x32xf32> to vector<1x32xf32>
    %c1_154 = arith.constant 1 : index
    %c0_155 = arith.constant 0 : index
    %c0_156 = arith.constant 0 : index
    %284 = vector.load %arg19[%c1_154, %c0_155, %c0_156] : memref<3x1x32xf32, #tpu.memory_space<vmem>>, vector<1x1x32xf32>
    %285 = vector.shape_cast %284 : vector<1x1x32xf32> to vector<1x32xf32>
    %cst_157 = arith.constant dense<0.000000e+00> : vector<16xf32>
    %286 = vector.multi_reduction <add>, %281, %cst_157 [1] : vector<16x32xf32> to vector<16xf32>
    %287 = vector.shape_cast %286 : vector<16xf32> to vector<16x1xf32>
    %cst_158 = arith.constant 3.200000e+01 : f32
    %288 = vector.broadcast %cst_158 : f32 to vector<16x1xf32>
    %289 = arith.divf %287, %288 : vector<16x1xf32>
    %290 = vector.broadcast %289 : vector<16x1xf32> to vector<16x32xf32>
    %291 = arith.subf %281, %290 : vector<16x32xf32>
    %292 = arith.mulf %291, %291 : vector<16x32xf32>
    %cst_159 = arith.constant dense<0.000000e+00> : vector<16xf32>
    %293 = vector.multi_reduction <add>, %292, %cst_159 [1] : vector<16x32xf32> to vector<16xf32>
    %294 = vector.shape_cast %293 : vector<16xf32> to vector<16x1xf32>
    %cst_160 = arith.constant 3.200000e+01 : f32
    %295 = vector.broadcast %cst_160 : f32 to vector<16x1xf32>
    %296 = arith.divf %294, %295 : vector<16x1xf32>
    %297 = vector.broadcast %289 : vector<16x1xf32> to vector<16x32xf32>
    %298 = arith.subf %281, %297 : vector<16x32xf32>
    %cst_161 = arith.constant 9.99999974E-6 : f32
    %299 = vector.broadcast %cst_161 : f32 to vector<16x1xf32>
    %300 = arith.addf %296, %299 : vector<16x1xf32>
    %301 = math.rsqrt %300 : vector<16x1xf32>
    %302 = vector.broadcast %301 : vector<16x1xf32> to vector<16x32xf32>
    %303 = arith.mulf %298, %302 : vector<16x32xf32>
    %304 = vector.broadcast %283 : vector<1x32xf32> to vector<16x32xf32>
    %305 = arith.mulf %303, %304 : vector<16x32xf32>
    %306 = vector.broadcast %285 : vector<1x32xf32> to vector<16x32xf32>
    %307 = arith.addf %305, %306 : vector<16x32xf32>
    %c2 = arith.constant 2 : index
    %c0_162 = arith.constant 0 : index
    %c0_163 = arith.constant 0 : index
    %308 = vector.load %arg4[%c2, %c0_162, %c0_163] : memref<3x32x30xf32, #tpu.memory_space<vmem>>, vector<1x32x30xf32>
    %309 = vector.shape_cast %308 : vector<1x32x30xf32> to vector<32x30xf32>
    %cst_164 = arith.constant dense<0.000000e+00> : vector<16x30xf32>
    %310 = tpu.matmul %307, %309, %cst_164 {dimension_numbers = #tpu.dot_dimension_numbers<[1], [0], [0], [1], [0, 0, 1, 1], [], []>} : vector<16x32xf32>, vector<32x30xf32>, vector<16x30xf32> -> vector<16x30xf32>
    %c2_165 = arith.constant 2 : index
    %c0_166 = arith.constant 0 : index
    %c0_167 = arith.constant 0 : index
    %311 = vector.load %arg5[%c2_165, %c0_166, %c0_167] : memref<3x1x30xf32, #tpu.memory_space<vmem>>, vector<1x1x30xf32>
    %312 = vector.shape_cast %311 : vector<1x1x30xf32> to vector<1x30xf32>
    %313 = vector.broadcast %312 : vector<1x30xf32> to vector<16x30xf32>
    %314 = arith.addf %310, %313 : vector<16x30xf32>
    %cst_168 = arith.constant 0.316227764 : f32
    %315 = vector.broadcast %cst_168 : f32 to vector<16x30xf32>
    %316 = arith.mulf %314, %315 : vector<16x30xf32>
    %c2_169 = arith.constant 2 : index
    %c0_170 = arith.constant 0 : index
    %c0_171 = arith.constant 0 : index
    %317 = vector.load %arg6[%c2_169, %c0_170, %c0_171] : memref<3x32x30xf32, #tpu.memory_space<vmem>>, vector<1x32x30xf32>
    %318 = vector.shape_cast %317 : vector<1x32x30xf32> to vector<32x30xf32>
    %cst_172 = arith.constant dense<0.000000e+00> : vector<16x30xf32>
    %319 = tpu.matmul %307, %318, %cst_172 {dimension_numbers = #tpu.dot_dimension_numbers<[1], [0], [0], [1], [0, 0, 1, 1], [], []>} : vector<16x32xf32>, vector<32x30xf32>, vector<16x30xf32> -> vector<16x30xf32>
    %c2_173 = arith.constant 2 : index
    %c0_174 = arith.constant 0 : index
    %c0_175 = arith.constant 0 : index
    %320 = vector.load %arg7[%c2_173, %c0_174, %c0_175] : memref<3x1x30xf32, #tpu.memory_space<vmem>>, vector<1x1x30xf32>
    %321 = vector.shape_cast %320 : vector<1x1x30xf32> to vector<1x30xf32>
    %322 = vector.broadcast %321 : vector<1x30xf32> to vector<16x30xf32>
    %323 = arith.addf %319, %322 : vector<16x30xf32>
    %c2_176 = arith.constant 2 : index
    %c0_177 = arith.constant 0 : index
    %c0_178 = arith.constant 0 : index
    %324 = vector.load %arg8[%c2_176, %c0_177, %c0_178] : memref<3x32x30xf32, #tpu.memory_space<vmem>>, vector<1x32x30xf32>
    %325 = vector.shape_cast %324 : vector<1x32x30xf32> to vector<32x30xf32>
    %cst_179 = arith.constant dense<0.000000e+00> : vector<16x30xf32>
    %326 = tpu.matmul %307, %325, %cst_179 {dimension_numbers = #tpu.dot_dimension_numbers<[1], [0], [0], [1], [0, 0, 1, 1], [], []>} : vector<16x32xf32>, vector<32x30xf32>, vector<16x30xf32> -> vector<16x30xf32>
    %c2_180 = arith.constant 2 : index
    %c0_181 = arith.constant 0 : index
    %c0_182 = arith.constant 0 : index
    %327 = vector.load %arg9[%c2_180, %c0_181, %c0_182] : memref<3x1x30xf32, #tpu.memory_space<vmem>>, vector<1x1x30xf32>
    %328 = vector.shape_cast %327 : vector<1x1x30xf32> to vector<1x30xf32>
    %329 = vector.broadcast %328 : vector<1x30xf32> to vector<16x30xf32>
    %330 = arith.addf %326, %329 : vector<16x30xf32>
    %331 = vector.shape_cast %316 : vector<16x30xf32> to vector<2x8x30xf32>
    %332 = vector.shape_cast %323 : vector<16x30xf32> to vector<2x8x30xf32>
    %333 = vector.shape_cast %330 : vector<16x30xf32> to vector<2x8x30xf32>
    %334 = vector.extract_strided_slice %331 {offsets = [0, 0, 0], sizes = [2, 8, 10], strides = [1, 1, 1]} : vector<2x8x30xf32> to vector<2x8x10xf32>
    %335 = vector.extract_strided_slice %332 {offsets = [0, 0, 0], sizes = [2, 8, 10], strides = [1, 1, 1]} : vector<2x8x30xf32> to vector<2x8x10xf32>
    "tpu.trace_start"() <{level = 10 : i32, message = "bqd,bkd->bqk"}> : () -> ()
    %cst_183 = arith.constant dense<0.000000e+00> : vector<2x8x8xf32>
    %336 = tpu.matmul %334, %335, %cst_183 {dimension_numbers = #tpu.dot_dimension_numbers<[2], [2], [1], [1], [0, 0, 0, 1, 1, 1], [0], [0]>} : vector<2x8x10xf32>, vector<2x8x10xf32>, vector<2x8x8xf32> -> vector<2x8x8xf32>
    "tpu.trace_stop"() : () -> ()
    %cst_184 = arith.constant dense<0xFF800000> : vector<2x8xf32>
    %337 = vector.multi_reduction <maximumf>, %336, %cst_184 [2] : vector<2x8x8xf32> to vector<2x8xf32>
    %338 = vector.shape_cast %337 : vector<2x8xf32> to vector<2x8x1xf32>
    %339 = vector.broadcast %338 : vector<2x8x1xf32> to vector<2x8x8xf32>
    %340 = arith.subf %336, %339 : vector<2x8x8xf32>
    %341 = math.exp %340 : vector<2x8x8xf32>
    %cst_185 = arith.constant dense<0.000000e+00> : vector<2x8xf32>
    %342 = vector.multi_reduction <add>, %341, %cst_185 [2] : vector<2x8x8xf32> to vector<2x8xf32>
    %343 = vector.shape_cast %342 : vector<2x8xf32> to vector<2x8x1xf32>
    %344 = tpu.reciprocal %343 {approx = true} : vector<2x8x1xf32> -> vector<2x8x1xf32>
    %345 = vector.broadcast %344 : vector<2x8x1xf32> to vector<2x8x8xf32>
    %346 = arith.mulf %341, %345 : vector<2x8x8xf32>
    %347 = vector.extract_strided_slice %333 {offsets = [0, 0, 0], sizes = [2, 8, 10], strides = [1, 1, 1]} : vector<2x8x30xf32> to vector<2x8x10xf32>
    "tpu.trace_start"() <{level = 10 : i32, message = "bqk,bkd->bqd"}> : () -> ()
    %cst_186 = arith.constant dense<0.000000e+00> : vector<2x8x10xf32>
    %348 = tpu.matmul %346, %347, %cst_186 {dimension_numbers = #tpu.dot_dimension_numbers<[2], [1], [1], [2], [0, 0, 0, 1, 1, 2], [0], [0]>} : vector<2x8x8xf32>, vector<2x8x10xf32>, vector<2x8x10xf32> -> vector<2x8x10xf32>
    "tpu.trace_stop"() : () -> ()
    %349 = vector.extract_strided_slice %331 {offsets = [0, 0, 10], sizes = [2, 8, 10], strides = [1, 1, 1]} : vector<2x8x30xf32> to vector<2x8x10xf32>
    %350 = vector.extract_strided_slice %332 {offsets = [0, 0, 10], sizes = [2, 8, 10], strides = [1, 1, 1]} : vector<2x8x30xf32> to vector<2x8x10xf32>
    "tpu.trace_start"() <{level = 10 : i32, message = "bqd,bkd->bqk"}> : () -> ()
    %cst_187 = arith.constant dense<0.000000e+00> : vector<2x8x8xf32>
    %351 = tpu.matmul %349, %350, %cst_187 {dimension_numbers = #tpu.dot_dimension_numbers<[2], [2], [1], [1], [0, 0, 0, 1, 1, 1], [0], [0]>} : vector<2x8x10xf32>, vector<2x8x10xf32>, vector<2x8x8xf32> -> vector<2x8x8xf32>
    "tpu.trace_stop"() : () -> ()
    %cst_188 = arith.constant dense<0xFF800000> : vector<2x8xf32>
    %352 = vector.multi_reduction <maximumf>, %351, %cst_188 [2] : vector<2x8x8xf32> to vector<2x8xf32>
    %353 = vector.shape_cast %352 : vector<2x8xf32> to vector<2x8x1xf32>
    %354 = vector.broadcast %353 : vector<2x8x1xf32> to vector<2x8x8xf32>
    %355 = arith.subf %351, %354 : vector<2x8x8xf32>
    %356 = math.exp %355 : vector<2x8x8xf32>
    %cst_189 = arith.constant dense<0.000000e+00> : vector<2x8xf32>
    %357 = vector.multi_reduction <add>, %356, %cst_189 [2] : vector<2x8x8xf32> to vector<2x8xf32>
    %358 = vector.shape_cast %357 : vector<2x8xf32> to vector<2x8x1xf32>
    %359 = tpu.reciprocal %358 {approx = true} : vector<2x8x1xf32> -> vector<2x8x1xf32>
    %360 = vector.broadcast %359 : vector<2x8x1xf32> to vector<2x8x8xf32>
    %361 = arith.mulf %356, %360 : vector<2x8x8xf32>
    %362 = vector.extract_strided_slice %333 {offsets = [0, 0, 10], sizes = [2, 8, 10], strides = [1, 1, 1]} : vector<2x8x30xf32> to vector<2x8x10xf32>
    "tpu.trace_start"() <{level = 10 : i32, message = "bqk,bkd->bqd"}> : () -> ()
    %cst_190 = arith.constant dense<0.000000e+00> : vector<2x8x10xf32>
    %363 = tpu.matmul %361, %362, %cst_190 {dimension_numbers = #tpu.dot_dimension_numbers<[2], [1], [1], [2], [0, 0, 0, 1, 1, 2], [0], [0]>} : vector<2x8x8xf32>, vector<2x8x10xf32>, vector<2x8x10xf32> -> vector<2x8x10xf32>
    "tpu.trace_stop"() : () -> ()
    %364 = vector.extract_strided_slice %331 {offsets = [0, 0, 20], sizes = [2, 8, 10], strides = [1, 1, 1]} : vector<2x8x30xf32> to vector<2x8x10xf32>
    %365 = vector.extract_strided_slice %332 {offsets = [0, 0, 20], sizes = [2, 8, 10], strides = [1, 1, 1]} : vector<2x8x30xf32> to vector<2x8x10xf32>
    "tpu.trace_start"() <{level = 10 : i32, message = "bqd,bkd->bqk"}> : () -> ()
    %cst_191 = arith.constant dense<0.000000e+00> : vector<2x8x8xf32>
    %366 = tpu.matmul %364, %365, %cst_191 {dimension_numbers = #tpu.dot_dimension_numbers<[2], [2], [1], [1], [0, 0, 0, 1, 1, 1], [0], [0]>} : vector<2x8x10xf32>, vector<2x8x10xf32>, vector<2x8x8xf32> -> vector<2x8x8xf32>
    "tpu.trace_stop"() : () -> ()
    %cst_192 = arith.constant dense<0xFF800000> : vector<2x8xf32>
    %367 = vector.multi_reduction <maximumf>, %366, %cst_192 [2] : vector<2x8x8xf32> to vector<2x8xf32>
    %368 = vector.shape_cast %367 : vector<2x8xf32> to vector<2x8x1xf32>
    %369 = vector.broadcast %368 : vector<2x8x1xf32> to vector<2x8x8xf32>
    %370 = arith.subf %366, %369 : vector<2x8x8xf32>
    %371 = math.exp %370 : vector<2x8x8xf32>
    %cst_193 = arith.constant dense<0.000000e+00> : vector<2x8xf32>
    %372 = vector.multi_reduction <add>, %371, %cst_193 [2] : vector<2x8x8xf32> to vector<2x8xf32>
    %373 = vector.shape_cast %372 : vector<2x8xf32> to vector<2x8x1xf32>
    %374 = tpu.reciprocal %373 {approx = true} : vector<2x8x1xf32> -> vector<2x8x1xf32>
    %375 = vector.broadcast %374 : vector<2x8x1xf32> to vector<2x8x8xf32>
    %376 = arith.mulf %371, %375 : vector<2x8x8xf32>
    %377 = vector.extract_strided_slice %333 {offsets = [0, 0, 20], sizes = [2, 8, 10], strides = [1, 1, 1]} : vector<2x8x30xf32> to vector<2x8x10xf32>
    "tpu.trace_start"() <{level = 10 : i32, message = "bqk,bkd->bqd"}> : () -> ()
    %cst_194 = arith.constant dense<0.000000e+00> : vector<2x8x10xf32>
    %378 = tpu.matmul %376, %377, %cst_194 {dimension_numbers = #tpu.dot_dimension_numbers<[2], [1], [1], [2], [0, 0, 0, 1, 1, 2], [0], [0]>} : vector<2x8x8xf32>, vector<2x8x10xf32>, vector<2x8x10xf32> -> vector<2x8x10xf32>
    "tpu.trace_stop"() : () -> ()
    %379 = tpu.concatenate %348, %363, %378 in 2 : vector<2x8x10xf32>, vector<2x8x10xf32>, vector<2x8x10xf32> -> vector<2x8x30xf32>
    %380 = vector.shape_cast %379 : vector<2x8x30xf32> to vector<16x30xf32>
    %c2_195 = arith.constant 2 : index
    %c0_196 = arith.constant 0 : index
    %c0_197 = arith.constant 0 : index
    %381 = vector.load %arg10[%c2_195, %c0_196, %c0_197] : memref<3x30x32xf32, #tpu.memory_space<vmem>>, vector<1x30x32xf32>
    %382 = vector.shape_cast %381 : vector<1x30x32xf32> to vector<30x32xf32>
    %cst_198 = arith.constant dense<0.000000e+00> : vector<16x32xf32>
    %383 = tpu.matmul %380, %382, %cst_198 {dimension_numbers = #tpu.dot_dimension_numbers<[1], [0], [0], [1], [0, 0, 1, 1], [], []>} : vector<16x30xf32>, vector<30x32xf32>, vector<16x32xf32> -> vector<16x32xf32>
    %c2_199 = arith.constant 2 : index
    %c0_200 = arith.constant 0 : index
    %c0_201 = arith.constant 0 : index
    %384 = vector.load %arg11[%c2_199, %c0_200, %c0_201] : memref<3x1x32xf32, #tpu.memory_space<vmem>>, vector<1x1x32xf32>
    %385 = vector.shape_cast %384 : vector<1x1x32xf32> to vector<1x32xf32>
    %386 = vector.broadcast %385 : vector<1x32xf32> to vector<16x32xf32>
    %387 = arith.addf %383, %386 : vector<16x32xf32>
    %388 = arith.addf %307, %387 : vector<16x32xf32>
    %c2_202 = arith.constant 2 : index
    %c0_203 = arith.constant 0 : index
    %c0_204 = arith.constant 0 : index
    %389 = vector.load %arg16[%c2_202, %c0_203, %c0_204] : memref<3x1x32xf32, #tpu.memory_space<vmem>>, vector<1x1x32xf32>
    %390 = vector.shape_cast %389 : vector<1x1x32xf32> to vector<1x32xf32>
    %c2_205 = arith.constant 2 : index
    %c0_206 = arith.constant 0 : index
    %c0_207 = arith.constant 0 : index
    %391 = vector.load %arg17[%c2_205, %c0_206, %c0_207] : memref<3x1x32xf32, #tpu.memory_space<vmem>>, vector<1x1x32xf32>
    %392 = vector.shape_cast %391 : vector<1x1x32xf32> to vector<1x32xf32>
    %cst_208 = arith.constant dense<0.000000e+00> : vector<16xf32>
    %393 = vector.multi_reduction <add>, %388, %cst_208 [1] : vector<16x32xf32> to vector<16xf32>
    %394 = vector.shape_cast %393 : vector<16xf32> to vector<16x1xf32>
    %cst_209 = arith.constant 3.200000e+01 : f32
    %395 = vector.broadcast %cst_209 : f32 to vector<16x1xf32>
    %396 = arith.divf %394, %395 : vector<16x1xf32>
    %397 = vector.broadcast %396 : vector<16x1xf32> to vector<16x32xf32>
    %398 = arith.subf %388, %397 : vector<16x32xf32>
    %399 = arith.mulf %398, %398 : vector<16x32xf32>
    %cst_210 = arith.constant dense<0.000000e+00> : vector<16xf32>
    %400 = vector.multi_reduction <add>, %399, %cst_210 [1] : vector<16x32xf32> to vector<16xf32>
    %401 = vector.shape_cast %400 : vector<16xf32> to vector<16x1xf32>
    %cst_211 = arith.constant 3.200000e+01 : f32
    %402 = vector.broadcast %cst_211 : f32 to vector<16x1xf32>
    %403 = arith.divf %401, %402 : vector<16x1xf32>
    %404 = vector.broadcast %396 : vector<16x1xf32> to vector<16x32xf32>
    %405 = arith.subf %388, %404 : vector<16x32xf32>
    %cst_212 = arith.constant 9.99999974E-6 : f32
    %406 = vector.broadcast %cst_212 : f32 to vector<16x1xf32>
    %407 = arith.addf %403, %406 : vector<16x1xf32>
    %408 = math.rsqrt %407 : vector<16x1xf32>
    %409 = vector.broadcast %408 : vector<16x1xf32> to vector<16x32xf32>
    %410 = arith.mulf %405, %409 : vector<16x32xf32>
    %411 = vector.broadcast %390 : vector<1x32xf32> to vector<16x32xf32>
    %412 = arith.mulf %410, %411 : vector<16x32xf32>
    %413 = vector.broadcast %392 : vector<1x32xf32> to vector<16x32xf32>
    %414 = arith.addf %412, %413 : vector<16x32xf32>
    %c2_213 = arith.constant 2 : index
    %c0_214 = arith.constant 0 : index
    %c0_215 = arith.constant 0 : index
    %415 = vector.load %arg12[%c2_213, %c0_214, %c0_215] : memref<3x32x64xf32, #tpu.memory_space<vmem>>, vector<1x32x64xf32>
    %416 = vector.shape_cast %415 : vector<1x32x64xf32> to vector<32x64xf32>
    %cst_216 = arith.constant dense<0.000000e+00> : vector<16x64xf32>
    %417 = tpu.matmul %414, %416, %cst_216 {dimension_numbers = #tpu.dot_dimension_numbers<[1], [0], [0], [1], [0, 0, 1, 1], [], []>} : vector<16x32xf32>, vector<32x64xf32>, vector<16x64xf32> -> vector<16x64xf32>
    %c2_217 = arith.constant 2 : index
    %c0_218 = arith.constant 0 : index
    %c0_219 = arith.constant 0 : index
    %418 = vector.load %arg13[%c2_217, %c0_218, %c0_219] : memref<3x1x64xf32, #tpu.memory_space<vmem>>, vector<1x1x64xf32>
    %419 = vector.shape_cast %418 : vector<1x1x64xf32> to vector<1x64xf32>
    %420 = vector.broadcast %419 : vector<1x64xf32> to vector<16x64xf32>
    %421 = arith.addf %417, %420 : vector<16x64xf32>
    %cst_220 = arith.constant 0.000000e+00 : f32
    %422 = vector.broadcast %cst_220 : f32 to vector<16x64xf32>
    %423 = arith.maximumf %421, %422 : vector<16x64xf32>
    %c2_221 = arith.constant 2 : index
    %c0_222 = arith.constant 0 : index
    %c0_223 = arith.constant 0 : index
    %424 = vector.load %arg14[%c2_221, %c0_222, %c0_223] : memref<3x64x32xf32, #tpu.memory_space<vmem>>, vector<1x64x32xf32>
    %425 = vector.shape_cast %424 : vector<1x64x32xf32> to vector<64x32xf32>
    %cst_224 = arith.constant dense<0.000000e+00> : vector<16x32xf32>
    %426 = tpu.matmul %423, %425, %cst_224 {dimension_numbers = #tpu.dot_dimension_numbers<[1], [0], [0], [1], [0, 0, 1, 1], [], []>} : vector<16x64xf32>, vector<64x32xf32>, vector<16x32xf32> -> vector<16x32xf32>
    %c2_225 = arith.constant 2 : index
    %c0_226 = arith.constant 0 : index
    %c0_227 = arith.constant 0 : index
    %427 = vector.load %arg15[%c2_225, %c0_226, %c0_227] : memref<3x1x32xf32, #tpu.memory_space<vmem>>, vector<1x1x32xf32>
    %428 = vector.shape_cast %427 : vector<1x1x32xf32> to vector<1x32xf32>
    %429 = vector.broadcast %428 : vector<1x32xf32> to vector<16x32xf32>
    %430 = arith.addf %426, %429 : vector<16x32xf32>
    %431 = arith.addf %414, %430 : vector<16x32xf32>
    %c2_228 = arith.constant 2 : index
    %c0_229 = arith.constant 0 : index
    %c0_230 = arith.constant 0 : index
    %432 = vector.load %arg18[%c2_228, %c0_229, %c0_230] : memref<3x1x32xf32, #tpu.memory_space<vmem>>, vector<1x1x32xf32>
    %433 = vector.shape_cast %432 : vector<1x1x32xf32> to vector<1x32xf32>
    %c2_231 = arith.constant 2 : index
    %c0_232 = arith.constant 0 : index
    %c0_233 = arith.constant 0 : index
    %434 = vector.load %arg19[%c2_231, %c0_232, %c0_233] : memref<3x1x32xf32, #tpu.memory_space<vmem>>, vector<1x1x32xf32>
    %435 = vector.shape_cast %434 : vector<1x1x32xf32> to vector<1x32xf32>
    %cst_234 = arith.constant dense<0.000000e+00> : vector<16xf32>
    %436 = vector.multi_reduction <add>, %431, %cst_234 [1] : vector<16x32xf32> to vector<16xf32>
    %437 = vector.shape_cast %436 : vector<16xf32> to vector<16x1xf32>
    %cst_235 = arith.constant 3.200000e+01 : f32
    %438 = vector.broadcast %cst_235 : f32 to vector<16x1xf32>
    %439 = arith.divf %437, %438 : vector<16x1xf32>
    %440 = vector.broadcast %439 : vector<16x1xf32> to vector<16x32xf32>
    %441 = arith.subf %431, %440 : vector<16x32xf32>
    %442 = arith.mulf %441, %441 : vector<16x32xf32>
    %cst_236 = arith.constant dense<0.000000e+00> : vector<16xf32>
    %443 = vector.multi_reduction <add>, %442, %cst_236 [1] : vector<16x32xf32> to vector<16xf32>
    %444 = vector.shape_cast %443 : vector<16xf32> to vector<16x1xf32>
    %cst_237 = arith.constant 3.200000e+01 : f32
    %445 = vector.broadcast %cst_237 : f32 to vector<16x1xf32>
    %446 = arith.divf %444, %445 : vector<16x1xf32>
    %447 = vector.broadcast %439 : vector<16x1xf32> to vector<16x32xf32>
    %448 = arith.subf %431, %447 : vector<16x32xf32>
    %cst_238 = arith.constant 9.99999974E-6 : f32
    %449 = vector.broadcast %cst_238 : f32 to vector<16x1xf32>
    %450 = arith.addf %446, %449 : vector<16x1xf32>
    %451 = math.rsqrt %450 : vector<16x1xf32>
    %452 = vector.broadcast %451 : vector<16x1xf32> to vector<16x32xf32>
    %453 = arith.mulf %448, %452 : vector<16x32xf32>
    %454 = vector.broadcast %433 : vector<1x32xf32> to vector<16x32xf32>
    %455 = arith.mulf %453, %454 : vector<16x32xf32>
    %456 = vector.broadcast %435 : vector<1x32xf32> to vector<16x32xf32>
    %457 = arith.addf %455, %456 : vector<16x32xf32>
    %c0_239 = arith.constant 0 : index
    %c0_240 = arith.constant 0 : index
    %458 = vector.load %arg20[%c0_239, %c0_240] : memref<16x32xf32, #tpu.memory_space<vmem>>, vector<16x32xf32>
    tpu.vector_store %arg20[%c0_239, %c0_240], %457 {strides = array<i32>} : memref<16x32xf32, #tpu.memory_space<vmem>>, vector<16x32xf32>,
    return
  }
}

</mosaic_0001>

<llo_original>
// kernel: tpu_custom_call.1
$region0: #{tpu_custom_call.1}
  #allocation0 [shape = 'u32[]', space=smem, size = 0x4, offset = 0x4, fixed_abs, tag = 'smem constant byte address 0x4 - core index']
  #allocation1 [shape = 'u32[144,128]{1,0:T(1,128)}', space=vmem, size = 0x12000, scoped, tag = 'internal scratch']
  %s0 = inlined_call_operand.vmem [shape: f32[16,4], index: 0, kind: input, shape index: {}]
  %s1 = inlined_call_operand.vmem [shape: f32[16,32], index: 1, kind: input, shape index: {}]
  %s2 = inlined_call_operand.vmem [shape: f32[4,32], index: 2, kind: input, shape index: {}]
  %s3 = inlined_call_operand.hbm [shape: f32[1,32], index: 3, kind: input, shape index: {}]
  %s4 = inlined_call_operand.vmem [shape: f32[3,32,30], index: 4, kind: input, shape index: {}]
  %s5 = inlined_call_operand.vmem [shape: f32[3,1,30], index: 5, kind: input, shape index: {}]
  %s6 = inlined_call_operand.vmem [shape: f32[3,32,30], index: 6, kind: input, shape index: {}]
  %s7 = inlined_call_operand.vmem [shape: f32[3,1,30], index: 7, kind: input, shape index: {}]
  %s8 = inlined_call_operand.vmem [shape: f32[3,32,30], index: 8, kind: input, shape index: {}]
  %s9 = inlined_call_operand.vmem [shape: f32[3,1,30], index: 9, kind: input, shape index: {}]
  %s10 = inlined_call_operand.hbm [shape: f32[3,30,32], index: 10, kind: input, shape index: {}]
  %s11 = inlined_call_operand.vmem [shape: f32[3,1,32], index: 11, kind: input, shape index: {}]
  %s12 = inlined_call_operand.hbm [shape: f32[3,32,64], index: 12, kind: input, shape index: {}]
  %s13 = inlined_call_operand.vmem [shape: f32[3,1,64], index: 13, kind: input, shape index: {}]
  %s14 = inlined_call_operand.vmem [shape: f32[3,64,32], index: 14, kind: input, shape index: {}]
  %s15 = inlined_call_operand.vmem [shape: f32[3,1,32], index: 15, kind: input, shape index: {}]
  %s16 = inlined_call_operand.vmem [shape: f32[3,1,32], index: 16, kind: input, shape index: {}]
  %s17 = inlined_call_operand.vmem [shape: f32[3,1,32], index: 17, kind: input, shape index: {}]
  %s18 = inlined_call_operand.vmem [shape: f32[3,1,32], index: 18, kind: input, shape index: {}]
  %s19 = inlined_call_operand.vmem [shape: f32[3,1,32], index: 19, kind: input, shape index: {}]
  %s20 = inlined_call_operand.hbm [shape: f32[16,32], index: 20, kind: output, shape index: {}]
  %s21 = sld [smem:[#allocation0]]
  $region102: #{tpu_custom_call.1} parent=0
    _
  %s23 = ssub.s32 1, %s21
  %s24 = scalar_select 0, %s23, %s21
  $region1: #{tpu_custom_call.1} parent=0
    #allocation2 [shape = 'u8[512]{0}', space=vmem, size = 0x400, scoped, tag = 'input window, operand 3, single buffered']
    #allocation3 [shape = 's32[1]{0}', space=sflag, size = 0x4, scoped, tag = 'scoped memory for tpu_custom_call.1']
    #allocation4 [shape = 's32[1]{0}', space=sflag, size = 0x4, scoped, tag = 'scoped memory for tpu_custom_call.1']
    #allocation5 [shape = 'u8[49152]{0}', space=vmem, size = 0xc000, scoped, tag = 'input window, operand 10, single buffered']
    #allocation6 [shape = 's32[1]{0}', space=sflag, size = 0x4, scoped, tag = 'scoped memory for tpu_custom_call.1']
    #allocation7 [shape = 'u8[49152]{0}', space=vmem, size = 0xc000, scoped, tag = 'input window, operand 12, single buffered']
    #allocation8 [shape = 'u8[8192]{0}', space=vmem, size = 0x2000, scoped, tag = 'output window, operand 0, single buffered']
    %25 = vsyncpa [#allocation3], 0
    %26 = vsyncpa [#allocation6], 0
    %27 = vsyncpa [#allocation4], 0
    // Predicated region
    $region2: #{tpu_custom_call.1} parent=1 // pred_check
      _
    $region3: #{tpu_custom_call.1} parent=1 // pred_check_branch
      %29 = sbr.rel (0) target = $region5
    $region4: #{tpu_custom_call.1} parent=1 // pred_region
      _
    $region5: #{tpu_custom_call.1} parent=1 // pred_fallthru
      _
    // Predicated region
    $region6: #{tpu_custom_call.1} parent=1 // pred_check
      _
    $region7: #{tpu_custom_call.1} parent=1 // pred_check_branch
      %31 = sbr.rel (0) target = $region9
    $region8: #{tpu_custom_call.1} parent=1 // pred_region
      _
    $region9: #{tpu_custom_call.1} parent=1 // pred_fallthru
      _
    // Predicated region
    $region10: #{tpu_custom_call.1} parent=1 // pred_check
      _
    $region11: #{tpu_custom_call.1} parent=1 // pred_check_branch
      %33 = sbr.rel (0) target = $region13
    $region12: #{tpu_custom_call.1} parent=1 // pred_region
      _
    $region13: #{tpu_custom_call.1} parent=1 // pred_fallthru
      _
    // Predicated region
    $region14: #{tpu_custom_call.1} parent=1 // pred_check
      _
    $region15: #{tpu_custom_call.1} parent=1 // pred_check_branch
      %35 = sbr.rel (0) target = $region17
    $region16: #{tpu_custom_call.1} parent=1 // pred_region
      %s37 = ssub.s32 16, 16
      %38 = vsyncadd [#allocation3], %s37
      %s40 = sshll.u32 [#allocation2], 4
      %s41 = int_to_ptr.vmem [resolvable:$true] %s40
      %43 = dma.hbm_to_vmem [thread:$0]  %s3, 16, %s41, [#allocation3]
    $region17: #{tpu_custom_call.1} parent=1 // pred_fallthru
      _
    // Predicated region
    $region18: #{tpu_custom_call.1} parent=1 // pred_check
      _
    $region19: #{tpu_custom_call.1} parent=1 // pred_check_branch
      %45 = sbr.rel (0) target = $region21
    $region20: #{tpu_custom_call.1} parent=1 // pred_region
      _
    $region21: #{tpu_custom_call.1} parent=1 // pred_fallthru
      _
    // Predicated region
    $region22: #{tpu_custom_call.1} parent=1 // pred_check
      _
    $region23: #{tpu_custom_call.1} parent=1 // pred_check_branch
      %47 = sbr.rel (0) target = $region25
    $region24: #{tpu_custom_call.1} parent=1 // pred_region
      _
    $region25: #{tpu_custom_call.1} parent=1 // pred_fallthru
      _
    // Predicated region
    $region26: #{tpu_custom_call.1} parent=1 // pred_check
      _
    $region27: #{tpu_custom_call.1} parent=1 // pred_check_branch
      %49 = sbr.rel (0) target = $region29
    $region28: #{tpu_custom_call.1} parent=1 // pred_region
      _
    $region29: #{tpu_custom_call.1} parent=1 // pred_fallthru
      _
    // Predicated region
    $region30: #{tpu_custom_call.1} parent=1 // pred_check
      _
    $region31: #{tpu_custom_call.1} parent=1 // pred_check_branch
      %51 = sbr.rel (0) target = $region33
    $region32: #{tpu_custom_call.1} parent=1 // pred_region
      _
    $region33: #{tpu_custom_call.1} parent=1 // pred_fallthru
      _
    // Predicated region
    $region34: #{tpu_custom_call.1} parent=1 // pred_check
      _
    $region35: #{tpu_custom_call.1} parent=1 // pred_check_branch
      %53 = sbr.rel (0) target = $region37
    $region36: #{tpu_custom_call.1} parent=1 // pred_region
      _
    $region37: #{tpu_custom_call.1} parent=1 // pred_fallthru
      _
    // Predicated region
    $region38: #{tpu_custom_call.1} parent=1 // pred_check
      _
    $region39: #{tpu_custom_call.1} parent=1 // pred_check_branch
      %55 = sbr.rel (0) target = $region41
    $region40: #{tpu_custom_call.1} parent=1 // pred_region
      _
    $region41: #{tpu_custom_call.1} parent=1 // pred_fallthru
      _
    // Predicated region
    $region42: #{tpu_custom_call.1} parent=1 // pred_check
      _
    $region43: #{tpu_custom_call.1} parent=1 // pred_check_branch
      %57 = sbr.rel (0) target = $region45
    $region44: #{tpu_custom_call.1} parent=1 // pred_region
      %s59 = ssub.s32 1536, 1536
      %60 = vsyncadd [#allocation6], %s59
      %s61 = sshll.u32 [#allocation5], 4
      %s62 = int_to_ptr.vmem [resolvable:$true] %s61
      %67 = dma.hbm_to_vmem [thread:$0]  %s10, 1536, %s62, [#allocation6], 128, 128, 8
    $region45: #{tpu_custom_call.1} parent=1 // pred_fallthru
      _
    // Predicated region
    $region46: #{tpu_custom_call.1} parent=1 // pred_check
      _
    $region47: #{tpu_custom_call.1} parent=1 // pred_check_branch
      %69 = sbr.rel (0) target = $region49
    $region48: #{tpu_custom_call.1} parent=1 // pred_region
      _
    $region49: #{tpu_custom_call.1} parent=1 // pred_fallthru
      _
    // Predicated region
    $region50: #{tpu_custom_call.1} parent=1 // pred_check
      _
    $region51: #{tpu_custom_call.1} parent=1 // pred_check_branch
      %71 = sbr.rel (0) target = $region53
    $region52: #{tpu_custom_call.1} parent=1 // pred_region
      %s73 = ssub.s32 1536, 1536
      %74 = vsyncadd [#allocation6], %s73
      %s75 = sshll.u32 [#allocation7], 4
      %s76 = int_to_ptr.vmem [resolvable:$true] %s75
      %81 = dma.hbm_to_vmem [thread:$0]  %s12, 1536, %s76, [#allocation6], 128, 128, 8
    $region53: #{tpu_custom_call.1} parent=1 // pred_fallthru
      _
    // Predicated region
    $region54: #{tpu_custom_call.1} parent=1 // pred_check
      _
    $region55: #{tpu_custom_call.1} parent=1 // pred_check_branch
      %83 = sbr.rel (0) target = $region57
    $region56: #{tpu_custom_call.1} parent=1 // pred_region
      _
    $region57: #{tpu_custom_call.1} parent=1 // pred_fallthru
      _
    // Predicated region
    $region58: #{tpu_custom_call.1} parent=1 // pred_check
      _
    $region59: #{tpu_custom_call.1} parent=1 // pred_check_branch
      %85 = sbr.rel (0) target = $region61
    $region60: #{tpu_custom_call.1} parent=1 // pred_region
      _
    $region61: #{tpu_custom_call.1} parent=1 // pred_fallthru
      _
    // Predicated region
    $region62: #{tpu_custom_call.1} parent=1 // pred_check
      _
    $region63: #{tpu_custom_call.1} parent=1 // pred_check_branch
      %87 = sbr.rel (0) target = $region65
    $region64: #{tpu_custom_call.1} parent=1 // pred_region
      _
    $region65: #{tpu_custom_call.1} parent=1 // pred_fallthru
      _
    // Predicated region
    $region66: #{tpu_custom_call.1} parent=1 // pred_check
      _
    $region67: #{tpu_custom_call.1} parent=1 // pred_check_branch
      %89 = sbr.rel (0) target = $region69
    $region68: #{tpu_custom_call.1} parent=1 // pred_region
      _
    $region69: #{tpu_custom_call.1} parent=1 // pred_fallthru
      _
    // Predicated region
    $region70: #{tpu_custom_call.1} parent=1 // pred_check
      _
    $region71: #{tpu_custom_call.1} parent=1 // pred_check_branch
      %91 = sbr.rel (0) target = $region73
    $region72: #{tpu_custom_call.1} parent=1 // pred_region
      _
    $region73: #{tpu_custom_call.1} parent=1 // pred_fallthru
      _
    // Predicated region
    $region74: #{tpu_custom_call.1} parent=1 // pred_check
      _
    $region75: #{tpu_custom_call.1} parent=1 // pred_check_branch
      %93 = sbr.rel (0) target = $region77
    $region76: #{tpu_custom_call.1} parent=1 // pred_region
      _
    $region77: #{tpu_custom_call.1} parent=1 // pred_fallthru
      _
    // Predicated region
    $region78: #{tpu_custom_call.1} parent=1 // pred_check
      _
    $region79: #{tpu_custom_call.1} parent=1 // pred_check_branch
      %95 = sbr.rel (0) target = $region81
    $region80: #{tpu_custom_call.1} parent=1 // pred_region
      _
    $region81: #{tpu_custom_call.1} parent=1 // pred_fallthru
      _
    // Predicated region
    $region82: #{tpu_custom_call.1} parent=1 // pred_check
      _
    $region83: #{tpu_custom_call.1} parent=1 // pred_check_branch
      %97 = sbr.rel (0) target = $region85
    $region84: #{tpu_custom_call.1} parent=1 // pred_region
      %98 = dma.done [#allocation3], 16
    $region85: #{tpu_custom_call.1} parent=1 // pred_fallthru
      _
    // Predicated region
    $region86: #{tpu_custom_call.1} parent=1 // pred_check
      _
    $region87: #{tpu_custom_call.1} parent=1 // pred_check_branch
      %100 = sbr.rel (0) target = $region89
    $region88: #{tpu_custom_call.1} parent=1 // pred_region
      %101 = dma.done [#allocation6], 1536
    $region89: #{tpu_custom_call.1} parent=1 // pred_fallthru
      _
    // Predicated region
    $region90: #{tpu_custom_call.1} parent=1 // pred_check
      _
    $region91: #{tpu_custom_call.1} parent=1 // pred_check_branch
      %103 = sbr.rel (0) target = $region93
    $region92: #{tpu_custom_call.1} parent=1 // pred_region
      %104 = dma.done [#allocation6], 1536
    $region93: #{tpu_custom_call.1} parent=1 // pred_fallthru
      _
    %v105 = vld [vmem:[%s0] sm:$0xff]
    %v106 = vld [vmem:[%s0 + $0x8] sm:$0xff]
    %v107 = vld [vmem:[%s2] sm:$0xf]
    %v108 = vld [vmem:[#allocation2] sm:$0x1]
    %v110 = vlaneseq
    %v111 = vshrl.u32 %v110, 7
    %v112 = vsub.s32 0, %v111
    %v113 = vrot.slane %v108, %v112
    %vm115 = vcmask 31744
    %v117 = vsel %vm115, %v105, 0
    %v120 = vsel %vm115, %v106, 0
    %vm122 = vcmask 1043456
    %v124 = vsel %vm122, %v107, 0
    %126 = vmatprep.subr.mxu0 0.0
    %127 = vmatpush1.msra.mxu0 %v124
    %128 = vmatprep.subr.mxu0 0.0
    %129 = vmatpush1.msra.mxu0 0.0
    %130 = vmatprep.subr.mxu0 0.0
    %131 = vmatpush1.msra.mxu0 0.0
    %132 = vmatprep.subr.mxu0 0.0
    %133 = vmatpush1.msra.mxu0 0.0
    %134 = vmatprep.subr.mxu0 0.0
    %135 = vmatpush1.msra.mxu0 0.0
    %136 = vmatprep.subr.mxu0 0.0
    %137 = vmatpush1.msra.mxu0 0.0
    %138 = vmatprep.subr.mxu0 0.0
    %139 = vmatpush1.msra.mxu0 0.0
    %140 = vmatprep.subr.mxu0 0.0
    %141 = vmatpush1.msra.mxu0 0.0
    %142 = vmatprep.subr.mxu0 0.0
    %143 = vmatpush1.msra.mxu0 0.0
    %144 = vmatprep.subr.mxu0 0.0
    %145 = vmatpush1.msra.mxu0 0.0
    %146 = vmatprep.subr.mxu0 0.0
    %147 = vmatpush1.msra.mxu0 0.0
    %148 = vmatprep.subr.mxu0 0.0
    %149 = vmatpush1.msra.mxu0 0.0
    %150 = vmatprep.subr.mxu0 0.0
    %151 = vmatpush1.msra.mxu0 0.0
    %152 = vmatprep.subr.mxu0 0.0
    %153 = vmatpush1.msra.mxu0 0.0
    %154 = vmatprep.subr.mxu0 0.0
    %155 = vmatpush1.msra.mxu0 0.0
    %156 = vmatprep.subr.mxu0 0.0
    %157 = vmatpush1.msra.mxu0 0.0
    %158 = vmatprep.subr.mxu0 0.0
    %159 = vmatpush1.msra.mxu0 0.0
    %160 = vmatprep.subr.mxu0 0.0
    %161 = vmatpush1.msra.mxu0 0.0
    %162 = vmatprep.subr.mxu0 0.0
    %163 = vmatpush1.msra.mxu0 0.0
    %164 = vmatprep.subr.mxu0 0.0
    %165 = vmatpush1.msra.mxu0 0.0
    %166 = vmatprep.subr.mxu0 0.0
    %167 = vmatpush1.msra.mxu0 0.0
    %168 = vmatprep.subr.mxu0 0.0
    %169 = vmatpush1.msra.mxu0 0.0
    %170 = vmatprep.subr.mxu0 0.0
    %171 = vmatpush1.msra.mxu0 0.0
    %172 = vmatprep.subr.mxu0 0.0
    %173 = vmatpush1.msra.mxu0 0.0
    %174 = vmatprep.subr.mxu0 0.0
    %175 = vmatpush1.msra.mxu0 0.0
    %176 = vmatprep.subr.mxu0 0.0
    %177 = vmatpush1.msra.mxu0 0.0
    %178 = vmatprep.subr.mxu0 0.0
    %179 = vmatpush1.msra.mxu0 0.0
    %180 = vmatprep.subr.mxu0 0.0
    %181 = vmatpush1.msra.mxu0 0.0
    %182 = vmatprep.subr.mxu0 0.0
    %183 = vmatpush1.msra.mxu0 0.0
    %184 = vmatprep.subr.mxu0 0.0
    %185 = vmatpush1.msra.mxu0 0.0
    %186 = vmatprep.subr.mxu0 0.0
    %187 = vmatpush1.msra.mxu0 0.0
    %188 = vmatprep.subr.mxu0 0.0
    %189 = vmatpush1.msra.mxu0 0.0
    %190 = vmatprep.mubr.f32.mxu0 0.0
    %191 = vmatmul.mubr.f32.gmra.mrb[0].mxu0 %v117
    %v192 = vpop.f32.mrb[0].mxu0
    %v193 = vadd.f32 %v113, %v192
    %v194 = vpop.f32.mrb[0].mxu0
    %195 = vmatprep.mubr.f32.mxu0 0.0
    %196 = vmatmul.mubr.f32.gmra.mrb[0].mxu0 %v120
    %v197 = vpop.f32.mrb[0].mxu0
    %v198 = vadd.f32 %v113, %v197
    %v199 = vpop.f32.mrb[0].mxu0
    %200 = vdwg.mxu0
    %v201 = vld [vmem:[%s1] sm:$0xff]
    %v202 = vld [vmem:[%s1 + $0x8] sm:$0xff]
    %v203 = vadd.f32 %v193, %v201
    %v204 = vadd.f32 %v198, %v202
    %v205 = vld [vmem:[%s4] sm:$0xff]
    %v206 = vld [vmem:[%s4 + $0x8] sm:$0xff]
    %v207 = vld [vmem:[%s4 + $0x10] sm:$0xff]
    %v208 = vld [vmem:[%s4 + $0x18] sm:$0xff]
    %v209 = vld [vmem:[%s5] sm:$0x1]
    %v211 = vlaneseq
    %v212 = vshrl.u32 %v211, 7
    %v213 = vsub.s32 0, %v212
    %v214 = vrot.slane %v209, %v213
    %vm216 = vcmask 261120
    %v218 = vsel %vm216, %v203, 0
    %v221 = vsel %vm216, %v204, 0
    %223 = vmatprep.subr.mxu0 0.0
    %224 = vmatpush1.msra.mxu0 %v205
    %225 = vmatprep.subr.mxu0 0.0
    %226 = vmatpush1.msra.mxu0 %v206
    %227 = vmatprep.subr.mxu0 0.0
    %228 = vmatpush1.msra.mxu0 %v207
    %229 = vmatprep.subr.mxu0 0.0
    %230 = vmatpush1.msra.mxu0 %v208
    %231 = vmatprep.subr.mxu0 0.0
    %232 = vmatpush1.msra.mxu0 0.0
    %233 = vmatprep.subr.mxu0 0.0
    %234 = vmatpush1.msra.mxu0 0.0
    %235 = vmatprep.subr.mxu0 0.0
    %236 = vmatpush1.msra.mxu0 0.0
    %237 = vmatprep.subr.mxu0 0.0
    %238 = vmatpush1.msra.mxu0 0.0
    %239 = vmatprep.subr.mxu0 0.0
    %240 = vmatpush1.msra.mxu0 0.0
    %241 = vmatprep.subr.mxu0 0.0
    %242 = vmatpush1.msra.mxu0 0.0
    %243 = vmatprep.subr.mxu0 0.0
    %244 = vmatpush1.msra.mxu0 0.0
    %245 = vmatprep.subr.mxu0 0.0
    %246 = vmatpush1.msra.mxu0 0.0
    %247 = vmatprep.subr.mxu0 0.0
    %248 = vmatpush1.msra.mxu0 0.0
    %249 = vmatprep.subr.mxu0 0.0
    %250 = vmatpush1.msra.mxu0 0.0
    %251 = vmatprep.subr.mxu0 0.0
    %252 = vmatpush1.msra.mxu0 0.0
    %253 = vmatprep.subr.mxu0 0.0
    %254 = vmatpush1.msra.mxu0 0.0
    %255 = vmatprep.subr.mxu0 0.0
    %256 = vmatpush1.msra.mxu0 0.0
    %257 = vmatprep.subr.mxu0 0.0
    %258 = vmatpush1.msra.mxu0 0.0
    %259 = vmatprep.subr.mxu0 0.0
    %260 = vmatpush1.msra.mxu0 0.0
    %261 = vmatprep.subr.mxu0 0.0
    %262 = vmatpush1.msra.mxu0 0.0
    %263 = vmatprep.subr.mxu0 0.0
    %264 = vmatpush1.msra.mxu0 0.0
    %265 = vmatprep.subr.mxu0 0.0
    %266 = vmatpush1.msra.mxu0 0.0
    %267 = vmatprep.subr.mxu0 0.0
    %268 = vmatpush1.msra.mxu0 0.0
    %269 = vmatprep.subr.mxu0 0.0
    %270 = vmatpush1.msra.mxu0 0.0
    %271 = vmatprep.subr.mxu0 0.0
    %272 = vmatpush1.msra.mxu0 0.0
    %273 = vmatprep.subr.mxu0 0.0
    %274 = vmatpush1.msra.mxu0 0.0
    %275 = vmatprep.subr.mxu0 0.0
    %276 = vmatpush1.msra.mxu0 0.0
    %277 = vmatprep.subr.mxu0 0.0
    %278 = vmatpush1.msra.mxu0 0.0
    %279 = vmatprep.subr.mxu0 0.0
    %280 = vmatpush1.msra.mxu0 0.0
    %281 = vmatprep.subr.mxu0 0.0
    %282 = vmatpush1.msra.mxu0 0.0
    %283 = vmatprep.subr.mxu0 0.0
    %284 = vmatpush1.msra.mxu0 0.0
    %285 = vmatprep.subr.mxu0 0.0
    %286 = vmatpush1.msra.mxu0 0.0
    %287 = vmatprep.mubr.f32.mxu0 0.0
    %288 = vmatmul.mubr.f32.gmra.mrb[0].mxu0 %v218
    %v289 = vpop.f32.mrb[0].mxu0
    %v290 = vadd.f32 %v214, %v289
    %v291 = vpop.f32.mrb[0].mxu0
    %292 = vmatprep.mubr.f32.mxu0 0.0
    %293 = vmatmul.mubr.f32.gmra.mrb[0].mxu0 %v221
    %v294 = vpop.f32.mrb[0].mxu0
    %v295 = vadd.f32 %v214, %v294
    %v296 = vpop.f32.mrb[0].mxu0
    %297 = vdwg.mxu0
    %v298 = vmul.f32 %v290, 0.31622776
    %v299 = vmul.f32 %v295, 0.31622776
    %v300 = vld [vmem:[%s6] sm:$0xff]
    %v301 = vld [vmem:[%s6 + $0x8] sm:$0xff]
    %v302 = vld [vmem:[%s6 + $0x10] sm:$0xff]
    %v303 = vld [vmem:[%s6 + $0x18] sm:$0xff]
    %v304 = vld [vmem:[%s7] sm:$0x1]
    %v306 = vlaneseq
    %v307 = vshrl.u32 %v306, 7
    %v308 = vsub.s32 0, %v307
    %v309 = vrot.slane %v304, %v308
    %311 = vmatprep.subr.mxu0 0.0
    %312 = vmatpush1.msra.mxu0 %v300
    %313 = vmatprep.subr.mxu0 0.0
    %314 = vmatpush1.msra.mxu0 %v301
    %315 = vmatprep.subr.mxu0 0.0
    %316 = vmatpush1.msra.mxu0 %v302
    %317 = vmatprep.subr.mxu0 0.0
    %318 = vmatpush1.msra.mxu0 %v303
    %319 = vmatprep.subr.mxu0 0.0
    %320 = vmatpush1.msra.mxu0 0.0
    %321 = vmatprep.subr.mxu0 0.0
    %322 = vmatpush1.msra.mxu0 0.0
    %323 = vmatprep.subr.mxu0 0.0
    %324 = vmatpush1.msra.mxu0 0.0
    %325 = vmatprep.subr.mxu0 0.0
    %326 = vmatpush1.msra.mxu0 0.0
    %327 = vmatprep.subr.mxu0 0.0
    %328 = vmatpush1.msra.mxu0 0.0
    %329 = vmatprep.subr.mxu0 0.0
    %330 = vmatpush1.msra.mxu0 0.0
    %331 = vmatprep.subr.mxu0 0.0
    %332 = vmatpush1.msra.mxu0 0.0
    %333 = vmatprep.subr.mxu0 0.0
    %334 = vmatpush1.msra.mxu0 0.0
    %335 = vmatprep.subr.mxu0 0.0
    %336 = vmatpush1.msra.mxu0 0.0
    %337 = vmatprep.subr.mxu0 0.0
    %338 = vmatpush1.msra.mxu0 0.0
    %339 = vmatprep.subr.mxu0 0.0
    %340 = vmatpush1.msra.mxu0 0.0
    %341 = vmatprep.subr.mxu0 0.0
    %342 = vmatpush1.msra.mxu0 0.0
    %343 = vmatprep.subr.mxu0 0.0
    %344 = vmatpush1.msra.mxu0 0.0
    %345 = vmatprep.subr.mxu0 0.0
    %346 = vmatpush1.msra.mxu0 0.0
    %347 = vmatprep.subr.mxu0 0.0
    %348 = vmatpush1.msra.mxu0 0.0
    %349 = vmatprep.subr.mxu0 0.0
    %350 = vmatpush1.msra.mxu0 0.0
    %351 = vmatprep.subr.mxu0 0.0
    %352 = vmatpush1.msra.mxu0 0.0
    %353 = vmatprep.subr.mxu0 0.0
    %354 = vmatpush1.msra.mxu0 0.0
    %355 = vmatprep.subr.mxu0 0.0
    %356 = vmatpush1.msra.mxu0 0.0
    %357 = vmatprep.subr.mxu0 0.0
    %358 = vmatpush1.msra.mxu0 0.0
    %359 = vmatprep.subr.mxu0 0.0
    %360 = vmatpush1.msra.mxu0 0.0
    %361 = vmatprep.subr.mxu0 0.0
    %362 = vmatpush1.msra.mxu0 0.0
    %363 = vmatprep.subr.mxu0 0.0
    %364 = vmatpush1.msra.mxu0 0.0
    %365 = vmatprep.subr.mxu0 0.0
    %366 = vmatpush1.msra.mxu0 0.0
    %367 = vmatprep.subr.mxu0 0.0
    %368 = vmatpush1.msra.mxu0 0.0
    %369 = vmatprep.subr.mxu0 0.0
    %370 = vmatpush1.msra.mxu0 0.0
    %371 = vmatprep.subr.mxu0 0.0
    %372 = vmatpush1.msra.mxu0 0.0
    %373 = vmatprep.subr.mxu0 0.0
    %374 = vmatpush1.msra.mxu0 0.0
    %375 = vmatprep.mubr.f32.mxu0 0.0
    %376 = vmatmul.mubr.f32.gmra.mrb[0].mxu0 %v218
    %v377 = vpop.f32.mrb[0].mxu0
    %v378 = vadd.f32 %v309, %v377
    %v379 = vpop.f32.mrb[0].mxu0
    %380 = vmatprep.mubr.f32.mxu0 0.0
    %381 = vmatmul.mubr.f32.gmra.mrb[0].mxu0 %v221
    %v382 = vpop.f32.mrb[0].mxu0
    %v383 = vadd.f32 %v309, %v382
    %v384 = vpop.f32.mrb[0].mxu0
    %385 = vdwg.mxu0
    %v386 = vld [vmem:[%s8] sm:$0xff]
    %v387 = vld [vmem:[%s8 + $0x8] sm:$0xff]
    %v388 = vld [vmem:[%s8 + $0x10] sm:$0xff]
    %v389 = vld [vmem:[%s8 + $0x18] sm:$0xff]
    %v390 = vld [vmem:[%s9] sm:$0x1]
    %v392 = vlaneseq
    %v393 = vshrl.u32 %v392, 7
    %v394 = vsub.s32 0, %v393
    %v395 = vrot.slane %v390, %v394
    %397 = vmatprep.subr.mxu0 0.0
    %398 = vmatpush1.msra.mxu0 %v386
    %399 = vmatprep.subr.mxu0 0.0
    %400 = vmatpush1.msra.mxu0 %v387
    %401 = vmatprep.subr.mxu0 0.0
    %402 = vmatpush1.msra.mxu0 %v388
    %403 = vmatprep.subr.mxu0 0.0
    %404 = vmatpush1.msra.mxu0 %v389
    %405 = vmatprep.subr.mxu0 0.0
    %406 = vmatpush1.msra.mxu0 0.0
    %407 = vmatprep.subr.mxu0 0.0
    %408 = vmatpush1.msra.mxu0 0.0
    %409 = vmatprep.subr.mxu0 0.0
    %410 = vmatpush1.msra.mxu0 0.0
    %411 = vmatprep.subr.mxu0 0.0
    %412 = vmatpush1.msra.mxu0 0.0
    %413 = vmatprep.subr.mxu0 0.0
    %414 = vmatpush1.msra.mxu0 0.0
    %415 = vmatprep.subr.mxu0 0.0
    %416 = vmatpush1.msra.mxu0 0.0
    %417 = vmatprep.subr.mxu0 0.0
    %418 = vmatpush1.msra.mxu0 0.0
    %419 = vmatprep.subr.mxu0 0.0
    %420 = vmatpush1.msra.mxu0 0.0
    %421 = vmatprep.subr.mxu0 0.0
    %422 = vmatpush1.msra.mxu0 0.0
    %423 = vmatprep.subr.mxu0 0.0
    %424 = vmatpush1.msra.mxu0 0.0
    %425 = vmatprep.subr.mxu0 0.0
    %426 = vmatpush1.msra.mxu0 0.0
    %427 = vmatprep.subr.mxu0 0.0
    %428 = vmatpush1.msra.mxu0 0.0
    %429 = vmatprep.subr.mxu0 0.0
    %430 = vmatpush1.msra.mxu0 0.0
    %431 = vmatprep.subr.mxu0 0.0
    %432 = vmatpush1.msra.mxu0 0.0
    %433 = vmatprep.subr.mxu0 0.0
    %434 = vmatpush1.msra.mxu0 0.0
    %435 = vmatprep.subr.mxu0 0.0
    %436 = vmatpush1.msra.mxu0 0.0
    %437 = vmatprep.subr.mxu0 0.0
    %438 = vmatpush1.msra.mxu0 0.0
    %439 = vmatprep.subr.mxu0 0.0
    %440 = vmatpush1.msra.mxu0 0.0
    %441 = vmatprep.subr.mxu0 0.0
    %442 = vmatpush1.msra.mxu0 0.0
    %443 = vmatprep.subr.mxu0 0.0
    %444 = vmatpush1.msra.mxu0 0.0
    %445 = vmatprep.subr.mxu0 0.0
    %446 = vmatpush1.msra.mxu0 0.0
    %447 = vmatprep.subr.mxu0 0.0
    %448 = vmatpush1.msra.mxu0 0.0
    %449 = vmatprep.subr.mxu0 0.0
    %450 = vmatpush1.msra.mxu0 0.0
    %451 = vmatprep.subr.mxu0 0.0
    %452 = vmatpush1.msra.mxu0 0.0
    %453 = vmatprep.subr.mxu0 0.0
    %454 = vmatpush1.msra.mxu0 0.0
    %455 = vmatprep.subr.mxu0 0.0
    %456 = vmatpush1.msra.mxu0 0.0
    %457 = vmatprep.subr.mxu0 0.0
    %458 = vmatpush1.msra.mxu0 0.0
    %459 = vmatprep.subr.mxu0 0.0
    %460 = vmatpush1.msra.mxu0 0.0
    %461 = vmatprep.mubr.f32.mxu0 0.0
    %462 = vmatmul.mubr.f32.gmra.mrb[0].mxu0 %v218
    %v463 = vpop.f32.mrb[0].mxu0
    %v464 = vadd.f32 %v395, %v463
    %v465 = vpop.f32.mrb[0].mxu0
    %466 = vmatprep.mubr.f32.mxu0 0.0
    %467 = vmatmul.mubr.f32.gmra.mrb[0].mxu0 %v221
    %v468 = vpop.f32.mrb[0].mxu0
    %v469 = vadd.f32 %v395, %v468
    %v470 = vpop.f32.mrb[0].mxu0
    %471 = vdwg.mxu0
    %vm472 = vcmask 80896
    %v474 = vsel %vm472, %v298, 0
    %v477 = vsel %vm472, %v378, 0
    %479 = vmatprep.subr.mxu0 0.0
    %480 = vmatpush1.xpose.msra.mxu0 %v477
    %481 = vmatprep.subr.mxu0 0.0
    %482 = vmatpush1.xpose.msra.mxu0 0.0
    %483 = vmatprep.subr.mxu0 0.0
    %484 = vmatpush1.xpose.msra.mxu0 0.0
    %485 = vmatprep.subr.mxu0 0.0
    %486 = vmatpush1.xpose.msra.mxu0 0.0
    %487 = vmatprep.subr.mxu0 0.0
    %488 = vmatpush1.xpose.msra.mxu0 0.0
    %489 = vmatprep.subr.mxu0 0.0
    %490 = vmatpush1.xpose.msra.mxu0 0.0
    %491 = vmatprep.subr.mxu0 0.0
    %492 = vmatpush1.xpose.msra.mxu0 0.0
    %493 = vmatprep.subr.mxu0 0.0
    %494 = vmatpush1.xpose.msra.mxu0 0.0
    %495 = vmatprep.subr.mxu0 0.0
    %496 = vmatpush1.xpose.msra.mxu0 0.0
    %497 = vmatprep.subr.mxu0 0.0
    %498 = vmatpush1.xpose.msra.mxu0 0.0
    %499 = vmatprep.subr.mxu0 0.0
    %500 = vmatpush1.xpose.msra.mxu0 0.0
    %501 = vmatprep.subr.mxu0 0.0
    %502 = vmatpush1.xpose.msra.mxu0 0.0
    %503 = vmatprep.subr.mxu0 0.0
    %504 = vmatpush1.xpose.msra.mxu0 0.0
    %505 = vmatprep.subr.mxu0 0.0
    %506 = vmatpush1.xpose.msra.mxu0 0.0
    %507 = vmatprep.subr.mxu0 0.0
    %508 = vmatpush1.xpose.msra.mxu0 0.0
    %509 = vmatprep.subr.mxu0 0.0
    %510 = vmatpush1.xpose.msra.mxu0 0.0
    %511 = vmatprep.subr.mxu0 0.0
    %512 = vmatpush1.xpose.msra.mxu0 0.0
    %513 = vmatprep.subr.mxu0 0.0
    %514 = vmatpush1.xpose.msra.mxu0 0.0
    %515 = vmatprep.subr.mxu0 0.0
    %516 = vmatpush1.xpose.msra.mxu0 0.0
    %517 = vmatprep.subr.mxu0 0.0
    %518 = vmatpush1.xpose.msra.mxu0 0.0
    %519 = vmatprep.subr.mxu0 0.0
    %520 = vmatpush1.xpose.msra.mxu0 0.0
    %521 = vmatprep.subr.mxu0 0.0
    %522 = vmatpush1.xpose.msra.mxu0 0.0
    %523 = vmatprep.subr.mxu0 0.0
    %524 = vmatpush1.xpose.msra.mxu0 0.0
    %525 = vmatprep.subr.mxu0 0.0
    %526 = vmatpush1.xpose.msra.mxu0 0.0
    %527 = vmatprep.subr.mxu0 0.0
    %528 = vmatpush1.xpose.msra.mxu0 0.0
    %529 = vmatprep.subr.mxu0 0.0
    %530 = vmatpush1.xpose.msra.mxu0 0.0
    %531 = vmatprep.subr.mxu0 0.0
    %532 = vmatpush1.xpose.msra.mxu0 0.0
    %533 = vmatprep.subr.mxu0 0.0
    %534 = vmatpush1.xpose.msra.mxu0 0.0
    %535 = vmatprep.subr.mxu0 0.0
    %536 = vmatpush1.xpose.msra.mxu0 0.0
    %537 = vmatprep.subr.mxu0 0.0
    %538 = vmatpush1.xpose.msra.mxu0 0.0
    %539 = vmatprep.subr.mxu0 0.0
    %540 = vmatpush1.xpose.msra.mxu0 0.0
    %541 = vmatprep.subr.mxu0 0.0
    %542 = vmatpush1.xpose.msra.mxu0 0.0
    %543 = vmatprep.mubr.f32.mxu0 0.0
    %544 = vmatmul.mubr.f32.gmra.mrb[0].mxu0 %v474
    %v545 = vpop.f32.mrb[0].mxu0
    %v546 = vadd.f32 0.0, %v545
    %v547 = vpop.f32.mrb[0].mxu0
    %548 = vdwg.mxu0
    %v550 = vsel %vm472, %v299, 0
    %v553 = vsel %vm472, %v383, 0
    %555 = vmatprep.subr.mxu0 0.0
    %556 = vmatpush1.xpose.msra.mxu0 %v553
    %557 = vmatprep.subr.mxu0 0.0
    %558 = vmatpush1.xpose.msra.mxu0 0.0
    %559 = vmatprep.subr.mxu0 0.0
    %560 = vmatpush1.xpose.msra.mxu0 0.0
    %561 = vmatprep.subr.mxu0 0.0
    %562 = vmatpush1.xpose.msra.mxu0 0.0
    %563 = vmatprep.subr.mxu0 0.0
    %564 = vmatpush1.xpose.msra.mxu0 0.0
    %565 = vmatprep.subr.mxu0 0.0
    %566 = vmatpush1.xpose.msra.mxu0 0.0
    %567 = vmatprep.subr.mxu0 0.0
    %568 = vmatpush1.xpose.msra.mxu0 0.0
    %569 = vmatprep.subr.mxu0 0.0
    %570 = vmatpush1.xpose.msra.mxu0 0.0
    %571 = vmatprep.subr.mxu0 0.0
    %572 = vmatpush1.xpose.msra.mxu0 0.0
    %573 = vmatprep.subr.mxu0 0.0
    %574 = vmatpush1.xpose.msra.mxu0 0.0
    %575 = vmatprep.subr.mxu0 0.0
    %576 = vmatpush1.xpose.msra.mxu0 0.0
    %577 = vmatprep.subr.mxu0 0.0
    %578 = vmatpush1.xpose.msra.mxu0 0.0
    %579 = vmatprep.subr.mxu0 0.0
    %580 = vmatpush1.xpose.msra.mxu0 0.0
    %581 = vmatprep.subr.mxu0 0.0
    %582 = vmatpush1.xpose.msra.mxu0 0.0
    %583 = vmatprep.subr.mxu0 0.0
    %584 = vmatpush1.xpose.msra.mxu0 0.0
    %585 = vmatprep.subr.mxu0 0.0
    %586 = vmatpush1.xpose.msra.mxu0 0.0
    %587 = vmatprep.subr.mxu0 0.0
    %588 = vmatpush1.xpose.msra.mxu0 0.0
    %589 = vmatprep.subr.mxu0 0.0
    %590 = vmatpush1.xpose.msra.mxu0 0.0
    %591 = vmatprep.subr.mxu0 0.0
    %592 = vmatpush1.xpose.msra.mxu0 0.0
    %593 = vmatprep.subr.mxu0 0.0
    %594 = vmatpush1.xpose.msra.mxu0 0.0
    %595 = vmatprep.subr.mxu0 0.0
    %596 = vmatpush1.xpose.msra.mxu0 0.0
    %597 = vmatprep.subr.mxu0 0.0
    %598 = vmatpush1.xpose.msra.mxu0 0.0
    %599 = vmatprep.subr.mxu0 0.0
    %600 = vmatpush1.xpose.msra.mxu0 0.0
    %601 = vmatprep.subr.mxu0 0.0
    %602 = vmatpush1.xpose.msra.mxu0 0.0
    %603 = vmatprep.subr.mxu0 0.0
    %604 = vmatpush1.xpose.msra.mxu0 0.0
    %605 = vmatprep.subr.mxu0 0.0
    %606 = vmatpush1.xpose.msra.mxu0 0.0
    %607 = vmatprep.subr.mxu0 0.0
    %608 = vmatpush1.xpose.msra.mxu0 0.0
    %609 = vmatprep.subr.mxu0 0.0
    %610 = vmatpush1.xpose.msra.mxu0 0.0
    %611 = vmatprep.subr.mxu0 0.0
    %612 = vmatpush1.xpose.msra.mxu0 0.0
    %613 = vmatprep.subr.mxu0 0.0
    %614 = vmatpush1.xpose.msra.mxu0 0.0
    %615 = vmatprep.subr.mxu0 0.0
    %616 = vmatpush1.xpose.msra.mxu0 0.0
    %617 = vmatprep.subr.mxu0 0.0
    %618 = vmatpush1.xpose.msra.mxu0 0.0
    %619 = vmatprep.mubr.f32.mxu0 0.0
    %620 = vmatmul.mubr.f32.gmra.mrb[0].mxu0 %v550
    %v621 = vpop.f32.mrb[0].mxu0
    %v622 = vadd.f32 0.0, %v621
    %v623 = vpop.f32.mrb[0].mxu0
    %624 = vdwg.mxu0
    %vm625 = vcmask 64512
    %v626 = vsel %vm625, %v546, -inf
    %627 = vmax.xlane.f32.xlu0 %v626
    %v628 = vpop.xlane.xlu0 %627
    %v629 = vsel %vm625, %v622, -inf
    %630 = vmax.xlane.f32.xlu0 %v629
    %v631 = vpop.xlane.xlu0 %630
    %v632 = vsub.f32 %v546, %v628
    %v633 = vsub.f32 %v622, %v631
    %v634 = vmul.f32 %v632, 1.442695
    %v635 = vpow.pop %v634
    %v636 = vmul.f32 %v633, 1.442695
    %v637 = vpow.pop %v636
    %v638 = vsel %vm625, %v635, 0.0
    %639 = vadd.xlane.f32.xlu0 %v638
    %v640 = vpop.xlane.xlu0 %639
    %v641 = vsel %vm625, %v637, 0.0
    %642 = vadd.xlane.f32.xlu0 %v641
    %v643 = vpop.xlane.xlu0 %642
    %v644 = vrcp.pop %v640
    %v645 = vrcp.pop %v643
    %v646 = vmul.f32 %v635, %v644
    %v647 = vmul.f32 %v637, %v645
    %v649 = vsel %vm625, %v646, 0
    %651 = vmatprep.subr.mxu0 0.0
    %652 = vmatpush1.msra.mxu0 %v464
    %653 = vmatprep.subr.mxu0 0.0
    %654 = vmatpush1.msra.mxu0 0.0
    %655 = vmatprep.subr.mxu0 0.0
    %656 = vmatpush1.msra.mxu0 0.0
    %657 = vmatprep.subr.mxu0 0.0
    %658 = vmatpush1.msra.mxu0 0.0
    %659 = vmatprep.subr.mxu0 0.0
    %660 = vmatpush1.msra.mxu0 0.0
    %661 = vmatprep.subr.mxu0 0.0
    %662 = vmatpush1.msra.mxu0 0.0
    %663 = vmatprep.subr.mxu0 0.0
    %664 = vmatpush1.msra.mxu0 0.0
    %665 = vmatprep.subr.mxu0 0.0
    %666 = vmatpush1.msra.mxu0 0.0
    %667 = vmatprep.subr.mxu0 0.0
    %668 = vmatpush1.msra.mxu0 0.0
    %669 = vmatprep.subr.mxu0 0.0
    %670 = vmatpush1.msra.mxu0 0.0
    %671 = vmatprep.subr.mxu0 0.0
    %672 = vmatpush1.msra.mxu0 0.0
    %673 = vmatprep.subr.mxu0 0.0
    %674 = vmatpush1.msra.mxu0 0.0
    %675 = vmatprep.subr.mxu0 0.0
    %676 = vmatpush1.msra.mxu0 0.0
    %677 = vmatprep.subr.mxu0 0.0
    %678 = vmatpush1.msra.mxu0 0.0
    %679 = vmatprep.subr.mxu0 0.0
    %680 = vmatpush1.msra.mxu0 0.0
    %681 = vmatprep.subr.mxu0 0.0
    %682 = vmatpush1.msra.mxu0 0.0
    %683 = vmatprep.subr.mxu0 0.0
    %684 = vmatpush1.msra.mxu0 0.0
    %685 = vmatprep.subr.mxu0 0.0
    %686 = vmatpush1.msra.mxu0 0.0
    %687 = vmatprep.subr.mxu0 0.0
    %688 = vmatpush1.msra.mxu0 0.0
    %689 = vmatprep.subr.mxu0 0.0
    %690 = vmatpush1.msra.mxu0 0.0
    %691 = vmatprep.subr.mxu0 0.0
    %692 = vmatpush1.msra.mxu0 0.0
    %693 = vmatprep.subr.mxu0 0.0
    %694 = vmatpush1.msra.mxu0 0.0
    %695 = vmatprep.subr.mxu0 0.0
    %696 = vmatpush1.msra.mxu0 0.0
    %697 = vmatprep.subr.mxu0 0.0
    %698 = vmatpush1.msra.mxu0 0.0
    %699 = vmatprep.subr.mxu0 0.0
    %700 = vmatpush1.msra.mxu0 0.0
    %701 = vmatprep.subr.mxu0 0.0
    %702 = vmatpush1.msra.mxu0 0.0
    %703 = vmatprep.subr.mxu0 0.0
    %704 = vmatpush1.msra.mxu0 0.0
    %705 = vmatprep.subr.mxu0 0.0
    %706 = vmatpush1.msra.mxu0 0.0
    %707 = vmatprep.subr.mxu0 0.0
    %708 = vmatpush1.msra.mxu0 0.0
    %709 = vmatprep.subr.mxu0 0.0
    %710 = vmatpush1.msra.mxu0 0.0
    %711 = vmatprep.subr.mxu0 0.0
    %712 = vmatpush1.msra.mxu0 0.0
    %713 = vmatprep.subr.mxu0 0.0
    %714 = vmatpush1.msra.mxu0 0.0
    %715 = vmatprep.mubr.f32.mxu0 0.0
    %716 = vmatmul.mubr.f32.gmra.mrb[0].mxu0 %v649
    %v717 = vpop.f32.mrb[0].mxu0
    %v718 = vadd.f32 0.0, %v717
    %v719 = vpop.f32.mrb[0].mxu0
    %720 = vdwg.mxu0
    %v722 = vsel %vm625, %v647, 0
    %724 = vmatprep.subr.mxu0 0.0
    %725 = vmatpush1.msra.mxu0 %v469
    %726 = vmatprep.subr.mxu0 0.0
    %727 = vmatpush1.msra.mxu0 0.0
    %728 = vmatprep.subr.mxu0 0.0
    %729 = vmatpush1.msra.mxu0 0.0
    %730 = vmatprep.subr.mxu0 0.0
    %731 = vmatpush1.msra.mxu0 0.0
    %732 = vmatprep.subr.mxu0 0.0
    %733 = vmatpush1.msra.mxu0 0.0
    %734 = vmatprep.subr.mxu0 0.0
    %735 = vmatpush1.msra.mxu0 0.0
    %736 = vmatprep.subr.mxu0 0.0
    %737 = vmatpush1.msra.mxu0 0.0
    %738 = vmatprep.subr.mxu0 0.0
    %739 = vmatpush1.msra.mxu0 0.0
    %740 = vmatprep.subr.mxu0 0.0
    %741 = vmatpush1.msra.mxu0 0.0
    %742 = vmatprep.subr.mxu0 0.0
    %743 = vmatpush1.msra.mxu0 0.0
    %744 = vmatprep.subr.mxu0 0.0
    %745 = vmatpush1.msra.mxu0 0.0
    %746 = vmatprep.subr.mxu0 0.0
    %747 = vmatpush1.msra.mxu0 0.0
    %748 = vmatprep.subr.mxu0 0.0
    %749 = vmatpush1.msra.mxu0 0.0
    %750 = vmatprep.subr.mxu0 0.0
    %751 = vmatpush1.msra.mxu0 0.0
    %752 = vmatprep.subr.mxu0 0.0
    %753 = vmatpush1.msra.mxu0 0.0
    %754 = vmatprep.subr.mxu0 0.0
    %755 = vmatpush1.msra.mxu0 0.0
    %756 = vmatprep.subr.mxu0 0.0
    %757 = vmatpush1.msra.mxu0 0.0
    %758 = vmatprep.subr.mxu0 0.0
    %759 = vmatpush1.msra.mxu0 0.0
    %760 = vmatprep.subr.mxu0 0.0
    %761 = vmatpush1.msra.mxu0 0.0
    %762 = vmatprep.subr.mxu0 0.0
    %763 = vmatpush1.msra.mxu0 0.0
    %764 = vmatprep.subr.mxu0 0.0
    %765 = vmatpush1.msra.mxu0 0.0
    %766 = vmatprep.subr.mxu0 0.0
    %767 = vmatpush1.msra.mxu0 0.0
    %768 = vmatprep.subr.mxu0 0.0
    %769 = vmatpush1.msra.mxu0 0.0
    %770 = vmatprep.subr.mxu0 0.0
    %771 = vmatpush1.msra.mxu0 0.0
    %772 = vmatprep.subr.mxu0 0.0
    %773 = vmatpush1.msra.mxu0 0.0
    %774 = vmatprep.subr.mxu0 0.0
    %775 = vmatpush1.msra.mxu0 0.0
    %776 = vmatprep.subr.mxu0 0.0
    %777 = vmatpush1.msra.mxu0 0.0
    %778 = vmatprep.subr.mxu0 0.0
    %779 = vmatpush1.msra.mxu0 0.0
    %780 = vmatprep.subr.mxu0 0.0
    %781 = vmatpush1.msra.mxu0 0.0
    %782 = vmatprep.subr.mxu0 0.0
    %783 = vmatpush1.msra.mxu0 0.0
    %784 = vmatprep.subr.mxu0 0.0
    %785 = vmatpush1.msra.mxu0 0.0
    %786 = vmatprep.subr.mxu0 0.0
    %787 = vmatpush1.msra.mxu0 0.0
    %788 = vmatprep.mubr.f32.mxu0 0.0
    %789 = vmatmul.mubr.f32.gmra.mrb[0].mxu0 %v722
    %v790 = vpop.f32.mrb[0].mxu0
    %v791 = vadd.f32 0.0, %v790
    %v792 = vpop.f32.mrb[0].mxu0
    %793 = vdwg.mxu0
    %794 = vrot.lane.b32.xlu0 %v298, 118
    %v795 = vpop.permute.xlu0 %794
    %796 = vrot.lane.b32.xlu0 %v378, 118
    %v797 = vpop.permute.xlu0 %796
    %v798 = vsel %vm472, %v795, 0
    %v800 = vsel %vm472, %v797, 0
    %802 = vmatprep.subr.mxu0 0.0
    %803 = vmatpush1.xpose.msra.mxu0 %v800
    %804 = vmatprep.subr.mxu0 0.0
    %805 = vmatpush1.xpose.msra.mxu0 0.0
    %806 = vmatprep.subr.mxu0 0.0
    %807 = vmatpush1.xpose.msra.mxu0 0.0
    %808 = vmatprep.subr.mxu0 0.0
    %809 = vmatpush1.xpose.msra.mxu0 0.0
    %810 = vmatprep.subr.mxu0 0.0
    %811 = vmatpush1.xpose.msra.mxu0 0.0
    %812 = vmatprep.subr.mxu0 0.0
    %813 = vmatpush1.xpose.msra.mxu0 0.0
    %814 = vmatprep.subr.mxu0 0.0
    %815 = vmatpush1.xpose.msra.mxu0 0.0
    %816 = vmatprep.subr.mxu0 0.0
    %817 = vmatpush1.xpose.msra.mxu0 0.0
    %818 = vmatprep.subr.mxu0 0.0
    %819 = vmatpush1.xpose.msra.mxu0 0.0
    %820 = vmatprep.subr.mxu0 0.0
    %821 = vmatpush1.xpose.msra.mxu0 0.0
    %822 = vmatprep.subr.mxu0 0.0
    %823 = vmatpush1.xpose.msra.mxu0 0.0
    %824 = vmatprep.subr.mxu0 0.0
    %825 = vmatpush1.xpose.msra.mxu0 0.0
    %826 = vmatprep.subr.mxu0 0.0
    %827 = vmatpush1.xpose.msra.mxu0 0.0
    %828 = vmatprep.subr.mxu0 0.0
    %829 = vmatpush1.xpose.msra.mxu0 0.0
    %830 = vmatprep.subr.mxu0 0.0
    %831 = vmatpush1.xpose.msra.mxu0 0.0
    %832 = vmatprep.subr.mxu0 0.0
    %833 = vmatpush1.xpose.msra.mxu0 0.0
    %834 = vmatprep.subr.mxu0 0.0
    %835 = vmatpush1.xpose.msra.mxu0 0.0
    %836 = vmatprep.subr.mxu0 0.0
    %837 = vmatpush1.xpose.msra.mxu0 0.0
    %838 = vmatprep.subr.mxu0 0.0
    %839 = vmatpush1.xpose.msra.mxu0 0.0
    %840 = vmatprep.subr.mxu0 0.0
    %841 = vmatpush1.xpose.msra.mxu0 0.0
    %842 = vmatprep.subr.mxu0 0.0
    %843 = vmatpush1.xpose.msra.mxu0 0.0
    %844 = vmatprep.subr.mxu0 0.0
    %845 = vmatpush1.xpose.msra.mxu0 0.0
    %846 = vmatprep.subr.mxu0 0.0
    %847 = vmatpush1.xpose.msra.mxu0 0.0
    %848 = vmatprep.subr.mxu0 0.0
    %849 = vmatpush1.xpose.msra.mxu0 0.0
    %850 = vmatprep.subr.mxu0 0.0
    %851 = vmatpush1.xpose.msra.mxu0 0.0
    %852 = vmatprep.subr.mxu0 0.0
    %853 = vmatpush1.xpose.msra.mxu0 0.0
    %854 = vmatprep.subr.mxu0 0.0
    %855 = vmatpush1.xpose.msra.mxu0 0.0
    %856 = vmatprep.subr.mxu0 0.0
    %857 = vmatpush1.xpose.msra.mxu0 0.0
    %858 = vmatprep.subr.mxu0 0.0
    %859 = vmatpush1.xpose.msra.mxu0 0.0
    %860 = vmatprep.subr.mxu0 0.0
    %861 = vmatpush1.xpose.msra.mxu0 0.0
    %862 = vmatprep.subr.mxu0 0.0
    %863 = vmatpush1.xpose.msra.mxu0 0.0
    %864 = vmatprep.subr.mxu0 0.0
    %865 = vmatpush1.xpose.msra.mxu0 0.0
    %866 = vmatprep.mubr.f32.mxu0 0.0
    %867 = vmatmul.mubr.f32.gmra.mrb[0].mxu0 %v798
    %v868 = vpop.f32.mrb[0].mxu0
    %v869 = vadd.f32 0.0, %v868
    %v870 = vpop.f32.mrb[0].mxu0
    %871 = vdwg.mxu0
    %872 = vrot.lane.b32.xlu0 %v299, 118
    %v873 = vpop.permute.xlu0 %872
    %874 = vrot.lane.b32.xlu0 %v383, 118
    %v875 = vpop.permute.xlu0 %874
    %v876 = vsel %vm472, %v873, 0
    %v878 = vsel %vm472, %v875, 0
    %880 = vmatprep.subr.mxu0 0.0
    %881 = vmatpush1.xpose.msra.mxu0 %v878
    %882 = vmatprep.subr.mxu0 0.0
    %883 = vmatpush1.xpose.msra.mxu0 0.0
    %884 = vmatprep.subr.mxu0 0.0
    %885 = vmatpush1.xpose.msra.mxu0 0.0
    %886 = vmatprep.subr.mxu0 0.0
    %887 = vmatpush1.xpose.msra.mxu0 0.0
    %888 = vmatprep.subr.mxu0 0.0
    %889 = vmatpush1.xpose.msra.mxu0 0.0
    %890 = vmatprep.subr.mxu0 0.0
    %891 = vmatpush1.xpose.msra.mxu0 0.0
    %892 = vmatprep.subr.mxu0 0.0
    %893 = vmatpush1.xpose.msra.mxu0 0.0
    %894 = vmatprep.subr.mxu0 0.0
    %895 = vmatpush1.xpose.msra.mxu0 0.0
    %896 = vmatprep.subr.mxu0 0.0
    %897 = vmatpush1.xpose.msra.mxu0 0.0
    %898 = vmatprep.subr.mxu0 0.0
    %899 = vmatpush1.xpose.msra.mxu0 0.0
    %900 = vmatprep.subr.mxu0 0.0
    %901 = vmatpush1.xpose.msra.mxu0 0.0
    %902 = vmatprep.subr.mxu0 0.0
    %903 = vmatpush1.xpose.msra.mxu0 0.0
    %904 = vmatprep.subr.mxu0 0.0
    %905 = vmatpush1.xpose.msra.mxu0 0.0
    %906 = vmatprep.subr.mxu0 0.0
    %907 = vmatpush1.xpose.msra.mxu0 0.0
    %908 = vmatprep.subr.mxu0 0.0
    %909 = vmatpush1.xpose.msra.mxu0 0.0
    %910 = vmatprep.subr.mxu0 0.0
    %911 = vmatpush1.xpose.msra.mxu0 0.0
    %912 = vmatprep.subr.mxu0 0.0
    %913 = vmatpush1.xpose.msra.mxu0 0.0
    %914 = vmatprep.subr.mxu0 0.0
    %915 = vmatpush1.xpose.msra.mxu0 0.0
    %916 = vmatprep.subr.mxu0 0.0
    %917 = vmatpush1.xpose.msra.mxu0 0.0
    %918 = vmatprep.subr.mxu0 0.0
    %919 = vmatpush1.xpose.msra.mxu0 0.0
    %920 = vmatprep.subr.mxu0 0.0
    %921 = vmatpush1.xpose.msra.mxu0 0.0
    %922 = vmatprep.subr.mxu0 0.0
    %923 = vmatpush1.xpose.msra.mxu0 0.0
    %924 = vmatprep.subr.mxu0 0.0
    %925 = vmatpush1.xpose.msra.mxu0 0.0
    %926 = vmatprep.subr.mxu0 0.0
    %927 = vmatpush1.xpose.msra.mxu0 0.0
    %928 = vmatprep.subr.mxu0 0.0
    %929 = vmatpush1.xpose.msra.mxu0 0.0
    %930 = vmatprep.subr.mxu0 0.0
    %931 = vmatpush1.xpose.msra.mxu0 0.0
    %932 = vmatprep.subr.mxu0 0.0
    %933 = vmatpush1.xpose.msra.mxu0 0.0
    %934 = vmatprep.subr.mxu0 0.0
    %935 = vmatpush1.xpose.msra.mxu0 0.0
    %936 = vmatprep.subr.mxu0 0.0
    %937 = vmatpush1.xpose.msra.mxu0 0.0
    %938 = vmatprep.subr.mxu0 0.0
    %939 = vmatpush1.xpose.msra.mxu0 0.0
    %940 = vmatprep.subr.mxu0 0.0
    %941 = vmatpush1.xpose.msra.mxu0 0.0
    %942 = vmatprep.subr.mxu0 0.0
    %943 = vmatpush1.xpose.msra.mxu0 0.0
    %944 = vmatprep.mubr.f32.mxu0 0.0
    %945 = vmatmul.mubr.f32.gmra.mrb[0].mxu0 %v876
    %v946 = vpop.f32.mrb[0].mxu0
    %v947 = vadd.f32 0.0, %v946
    %v948 = vpop.f32.mrb[0].mxu0
    %949 = vdwg.mxu0
    %v950 = vsel %vm625, %v869, -inf
    %951 = vmax.xlane.f32.xlu0 %v950
    %v952 = vpop.xlane.xlu0 %951
    %v953 = vsel %vm625, %v947, -inf
    %954 = vmax.xlane.f32.xlu0 %v953
    %v955 = vpop.xlane.xlu0 %954
    %v956 = vsub.f32 %v869, %v952
    %v957 = vsub.f32 %v947, %v955
    %v958 = vmul.f32 %v956, 1.442695
    %v959 = vpow.pop %v958
    %v960 = vmul.f32 %v957, 1.442695
    %v961 = vpow.pop %v960
    %v962 = vsel %vm625, %v959, 0.0
    %963 = vadd.xlane.f32.xlu0 %v962
    %v964 = vpop.xlane.xlu0 %963
    %v965 = vsel %vm625, %v961, 0.0
    %966 = vadd.xlane.f32.xlu0 %v965
    %v967 = vpop.xlane.xlu0 %966
    %v968 = vrcp.pop %v964
    %v969 = vrcp.pop %v967
    %v970 = vmul.f32 %v959, %v968
    %v971 = vmul.f32 %v961, %v969
    %973 = vrot.lane.b32.xlu0 %v464, 118
    %v974 = vpop.permute.xlu0 %973
    %v977 = vsel %vm625, %v970, 0
    %979 = vmatprep.subr.mxu0 0.0
    %980 = vmatpush1.msra.mxu0 %v974
    %981 = vmatprep.subr.mxu0 0.0
    %982 = vmatpush1.msra.mxu0 0.0
    %983 = vmatprep.subr.mxu0 0.0
    %984 = vmatpush1.msra.mxu0 0.0
    %985 = vmatprep.subr.mxu0 0.0
    %986 = vmatpush1.msra.mxu0 0.0
    %987 = vmatprep.subr.mxu0 0.0
    %988 = vmatpush1.msra.mxu0 0.0
    %989 = vmatprep.subr.mxu0 0.0
    %990 = vmatpush1.msra.mxu0 0.0
    %991 = vmatprep.subr.mxu0 0.0
    %992 = vmatpush1.msra.mxu0 0.0
    %993 = vmatprep.subr.mxu0 0.0
    %994 = vmatpush1.msra.mxu0 0.0
    %995 = vmatprep.subr.mxu0 0.0
    %996 = vmatpush1.msra.mxu0 0.0
    %997 = vmatprep.subr.mxu0 0.0
    %998 = vmatpush1.msra.mxu0 0.0
    %999 = vmatprep.subr.mxu0 0.0
    %1000 = vmatpush1.msra.mxu0 0.0
    %1001 = vmatprep.subr.mxu0 0.0
    %1002 = vmatpush1.msra.mxu0 0.0
    %1003 = vmatprep.subr.mxu0 0.0
    %1004 = vmatpush1.msra.mxu0 0.0
    %1005 = vmatprep.subr.mxu0 0.0
    %1006 = vmatpush1.msra.mxu0 0.0
    %1007 = vmatprep.subr.mxu0 0.0
    %1008 = vmatpush1.msra.mxu0 0.0
    %1009 = vmatprep.subr.mxu0 0.0
    %1010 = vmatpush1.msra.mxu0 0.0
    %1011 = vmatprep.subr.mxu0 0.0
    %1012 = vmatpush1.msra.mxu0 0.0
    %1013 = vmatprep.subr.mxu0 0.0
    %1014 = vmatpush1.msra.mxu0 0.0
    %1015 = vmatprep.subr.mxu0 0.0
    %1016 = vmatpush1.msra.mxu0 0.0
    %1017 = vmatprep.subr.mxu0 0.0
    %1018 = vmatpush1.msra.mxu0 0.0
    %1019 = vmatprep.subr.mxu0 0.0
    %1020 = vmatpush1.msra.mxu0 0.0
    %1021 = vmatprep.subr.mxu0 0.0
    %1022 = vmatpush1.msra.mxu0 0.0
    %1023 = vmatprep.subr.mxu0 0.0
    %1024 = vmatpush1.msra.mxu0 0.0
    %1025 = vmatprep.subr.mxu0 0.0
    %1026 = vmatpush1.msra.mxu0 0.0
    %1027 = vmatprep.subr.mxu0 0.0
    %1028 = vmatpush1.msra.mxu0 0.0
    %1029 = vmatprep.subr.mxu0 0.0
    %1030 = vmatpush1.msra.mxu0 0.0
    %1031 = vmatprep.subr.mxu0 0.0
    %1032 = vmatpush1.msra.mxu0 0.0
    %1033 = vmatprep.subr.mxu0 0.0
    %1034 = vmatpush1.msra.mxu0 0.0
    %1035 = vmatprep.subr.mxu0 0.0
    %1036 = vmatpush1.msra.mxu0 0.0
    %1037 = vmatprep.subr.mxu0 0.0
    %1038 = vmatpush1.msra.mxu0 0.0
    %1039 = vmatprep.subr.mxu0 0.0
    %1040 = vmatpush1.msra.mxu0 0.0
    %1041 = vmatprep.subr.mxu0 0.0
    %1042 = vmatpush1.msra.mxu0 0.0
    %1043 = vmatprep.mubr.f32.mxu0 0.0
    %1044 = vmatmul.mubr.f32.gmra.mrb[0].mxu0 %v977
    %v1045 = vpop.f32.mrb[0].mxu0
    %v1046 = vadd.f32 0.0, %v1045
    %v1047 = vpop.f32.mrb[0].mxu0
    %1048 = vdwg.mxu0
    %1050 = vrot.lane.b32.xlu0 %v469, 118
    %v1051 = vpop.permute.xlu0 %1050
    %v1054 = vsel %vm625, %v971, 0
    %1056 = vmatprep.subr.mxu0 0.0
    %1057 = vmatpush1.msra.mxu0 %v1051
    %1058 = vmatprep.subr.mxu0 0.0
    %1059 = vmatpush1.msra.mxu0 0.0
    %1060 = vmatprep.subr.mxu0 0.0
    %1061 = vmatpush1.msra.mxu0 0.0
    %1062 = vmatprep.subr.mxu0 0.0
    %1063 = vmatpush1.msra.mxu0 0.0
    %1064 = vmatprep.subr.mxu0 0.0
    %1065 = vmatpush1.msra.mxu0 0.0
    %1066 = vmatprep.subr.mxu0 0.0
    %1067 = vmatpush1.msra.mxu0 0.0
    %1068 = vmatprep.subr.mxu0 0.0
    %1069 = vmatpush1.msra.mxu0 0.0
    %1070 = vmatprep.subr.mxu0 0.0
    %1071 = vmatpush1.msra.mxu0 0.0
    %1072 = vmatprep.subr.mxu0 0.0
    %1073 = vmatpush1.msra.mxu0 0.0
    %1074 = vmatprep.subr.mxu0 0.0
    %1075 = vmatpush1.msra.mxu0 0.0
    %1076 = vmatprep.subr.mxu0 0.0
    %1077 = vmatpush1.msra.mxu0 0.0
    %1078 = vmatprep.subr.mxu0 0.0
    %1079 = vmatpush1.msra.mxu0 0.0
    %1080 = vmatprep.subr.mxu0 0.0
    %1081 = vmatpush1.msra.mxu0 0.0
    %1082 = vmatprep.subr.mxu0 0.0
    %1083 = vmatpush1.msra.mxu0 0.0
    %1084 = vmatprep.subr.mxu0 0.0
    %1085 = vmatpush1.msra.mxu0 0.0
    %1086 = vmatprep.subr.mxu0 0.0
    %1087 = vmatpush1.msra.mxu0 0.0
    %1088 = vmatprep.subr.mxu0 0.0
    %1089 = vmatpush1.msra.mxu0 0.0
    %1090 = vmatprep.subr.mxu0 0.0
    %1091 = vmatpush1.msra.mxu0 0.0
    %1092 = vmatprep.subr.mxu0 0.0
    %1093 = vmatpush1.msra.mxu0 0.0
    %1094 = vmatprep.subr.mxu0 0.0
    %1095 = vmatpush1.msra.mxu0 0.0
    %1096 = vmatprep.subr.mxu0 0.0
    %1097 = vmatpush1.msra.mxu0 0.0
    %1098 = vmatprep.subr.mxu0 0.0
    %1099 = vmatpush1.msra.mxu0 0.0
    %1100 = vmatprep.subr.mxu0 0.0
    %1101 = vmatpush1.msra.mxu0 0.0
    %1102 = vmatprep.subr.mxu0 0.0
    %1103 = vmatpush1.msra.mxu0 0.0
    %1104 = vmatprep.subr.mxu0 0.0
    %1105 = vmatpush1.msra.mxu0 0.0
    %1106 = vmatprep.subr.mxu0 0.0
    %1107 = vmatpush1.msra.mxu0 0.0
    %1108 = vmatprep.subr.mxu0 0.0
    %1109 = vmatpush1.msra.mxu0 0.0
    %1110 = vmatprep.subr.mxu0 0.0
    %1111 = vmatpush1.msra.mxu0 0.0
    %1112 = vmatprep.subr.mxu0 0.0
    %1113 = vmatpush1.msra.mxu0 0.0
    %1114 = vmatprep.subr.mxu0 0.0
    %1115 = vmatpush1.msra.mxu0 0.0
    %1116 = vmatprep.subr.mxu0 0.0
    %1117 = vmatpush1.msra.mxu0 0.0
    %1118 = vmatprep.subr.mxu0 0.0
    %1119 = vmatpush1.msra.mxu0 0.0
    %1120 = vmatprep.mubr.f32.mxu0 0.0
    %1121 = vmatmul.mubr.f32.gmra.mrb[0].mxu0 %v1054
    %v1122 = vpop.f32.mrb[0].mxu0
    %v1123 = vadd.f32 0.0, %v1122
    %v1124 = vpop.f32.mrb[0].mxu0
    %1125 = vdwg.mxu0
    %1126 = vrot.lane.b32.xlu0 %v298, 108
    %v1127 = vpop.permute.xlu0 %1126
    %1128 = vrot.lane.b32.xlu0 %v378, 108
    %v1129 = vpop.permute.xlu0 %1128
    %v1130 = vsel %vm472, %v1127, 0
    %v1132 = vsel %vm472, %v1129, 0
    %1134 = vmatprep.subr.mxu0 0.0
    %1135 = vmatpush1.xpose.msra.mxu0 %v1132
    %1136 = vmatprep.subr.mxu0 0.0
    %1137 = vmatpush1.xpose.msra.mxu0 0.0
    %1138 = vmatprep.subr.mxu0 0.0
    %1139 = vmatpush1.xpose.msra.mxu0 0.0
    %1140 = vmatprep.subr.mxu0 0.0
    %1141 = vmatpush1.xpose.msra.mxu0 0.0
    %1142 = vmatprep.subr.mxu0 0.0
    %1143 = vmatpush1.xpose.msra.mxu0 0.0
    %1144 = vmatprep.subr.mxu0 0.0
    %1145 = vmatpush1.xpose.msra.mxu0 0.0
    %1146 = vmatprep.subr.mxu0 0.0
    %1147 = vmatpush1.xpose.msra.mxu0 0.0
    %1148 = vmatprep.subr.mxu0 0.0
    %1149 = vmatpush1.xpose.msra.mxu0 0.0
    %1150 = vmatprep.subr.mxu0 0.0
    %1151 = vmatpush1.xpose.msra.mxu0 0.0
    %1152 = vmatprep.subr.mxu0 0.0
    %1153 = vmatpush1.xpose.msra.mxu0 0.0
    %1154 = vmatprep.subr.mxu0 0.0
    %1155 = vmatpush1.xpose.msra.mxu0 0.0
    %1156 = vmatprep.subr.mxu0 0.0
    %1157 = vmatpush1.xpose.msra.mxu0 0.0
    %1158 = vmatprep.subr.mxu0 0.0
    %1159 = vmatpush1.xpose.msra.mxu0 0.0
    %1160 = vmatprep.subr.mxu0 0.0
    %1161 = vmatpush1.xpose.msra.mxu0 0.0
    %1162 = vmatprep.subr.mxu0 0.0
    %1163 = vmatpush1.xpose.msra.mxu0 0.0
    %1164 = vmatprep.subr.mxu0 0.0
    %1165 = vmatpush1.xpose.msra.mxu0 0.0
    %1166 = vmatprep.subr.mxu0 0.0
    %1167 = vmatpush1.xpose.msra.mxu0 0.0
    %1168 = vmatprep.subr.mxu0 0.0
    %1169 = vmatpush1.xpose.msra.mxu0 0.0
    %1170 = vmatprep.subr.mxu0 0.0
    %1171 = vmatpush1.xpose.msra.mxu0 0.0
    %1172 = vmatprep.subr.mxu0 0.0
    %1173 = vmatpush1.xpose.msra.mxu0 0.0
    %1174 = vmatprep.subr.mxu0 0.0
    %1175 = vmatpush1.xpose.msra.mxu0 0.0
    %1176 = vmatprep.subr.mxu0 0.0
    %1177 = vmatpush1.xpose.msra.mxu0 0.0
    %1178 = vmatprep.subr.mxu0 0.0
    %1179 = vmatpush1.xpose.msra.mxu0 0.0
    %1180 = vmatprep.subr.mxu0 0.0
    %1181 = vmatpush1.xpose.msra.mxu0 0.0
    %1182 = vmatprep.subr.mxu0 0.0
    %1183 = vmatpush1.xpose.msra.mxu0 0.0
    %1184 = vmatprep.subr.mxu0 0.0
    %1185 = vmatpush1.xpose.msra.mxu0 0.0
    %1186 = vmatprep.subr.mxu0 0.0
    %1187 = vmatpush1.xpose.msra.mxu0 0.0
    %1188 = vmatprep.subr.mxu0 0.0
    %1189 = vmatpush1.xpose.msra.mxu0 0.0
    %1190 = vmatprep.subr.mxu0 0.0
    %1191 = vmatpush1.xpose.msra.mxu0 0.0
    %1192 = vmatprep.subr.mxu0 0.0
    %1193 = vmatpush1.xpose.msra.mxu0 0.0
    %1194 = vmatprep.subr.mxu0 0.0
    %1195 = vmatpush1.xpose.msra.mxu0 0.0
    %1196 = vmatprep.subr.mxu0 0.0
    %1197 = vmatpush1.xpose.msra.mxu0 0.0
    %1198 = vmatprep.mubr.f32.mxu0 0.0
    %1199 = vmatmul.mubr.f32.gmra.mrb[0].mxu0 %v1130
    %v1200 = vpop.f32.mrb[0].mxu0
    %v1201 = vadd.f32 0.0, %v1200
    %v1202 = vpop.f32.mrb[0].mxu0
    %1203 = vdwg.mxu0
    %1204 = vrot.lane.b32.xlu0 %v299, 108
    %v1205 = vpop.permute.xlu0 %1204
    %1206 = vrot.lane.b32.xlu0 %v383, 108
    %v1207 = vpop.permute.xlu0 %1206
    %v1208 = vsel %vm472, %v1205, 0
    %v1210 = vsel %vm472, %v1207, 0
    %1212 = vmatprep.subr.mxu0 0.0
    %1213 = vmatpush1.xpose.msra.mxu0 %v1210
    %1214 = vmatprep.subr.mxu0 0.0
    %1215 = vmatpush1.xpose.msra.mxu0 0.0
    %1216 = vmatprep.subr.mxu0 0.0
    %1217 = vmatpush1.xpose.msra.mxu0 0.0
    %1218 = vmatprep.subr.mxu0 0.0
    %1219 = vmatpush1.xpose.msra.mxu0 0.0
    %1220 = vmatprep.subr.mxu0 0.0
    %1221 = vmatpush1.xpose.msra.mxu0 0.0
    %1222 = vmatprep.subr.mxu0 0.0
    %1223 = vmatpush1.xpose.msra.mxu0 0.0
    %1224 = vmatprep.subr.mxu0 0.0
    %1225 = vmatpush1.xpose.msra.mxu0 0.0
    %1226 = vmatprep.subr.mxu0 0.0
    %1227 = vmatpush1.xpose.msra.mxu0 0.0
    %1228 = vmatprep.subr.mxu0 0.0
    %1229 = vmatpush1.xpose.msra.mxu0 0.0
    %1230 = vmatprep.subr.mxu0 0.0
    %1231 = vmatpush1.xpose.msra.mxu0 0.0
    %1232 = vmatprep.subr.mxu0 0.0
    %1233 = vmatpush1.xpose.msra.mxu0 0.0
    %1234 = vmatprep.subr.mxu0 0.0
    %1235 = vmatpush1.xpose.msra.mxu0 0.0
    %1236 = vmatprep.subr.mxu0 0.0
    %1237 = vmatpush1.xpose.msra.mxu0 0.0
    %1238 = vmatprep.subr.mxu0 0.0
    %1239 = vmatpush1.xpose.msra.mxu0 0.0
    %1240 = vmatprep.subr.mxu0 0.0
    %1241 = vmatpush1.xpose.msra.mxu0 0.0
    %1242 = vmatprep.subr.mxu0 0.0
    %1243 = vmatpush1.xpose.msra.mxu0 0.0
    %1244 = vmatprep.subr.mxu0 0.0
    %1245 = vmatpush1.xpose.msra.mxu0 0.0
    %1246 = vmatprep.subr.mxu0 0.0
    %1247 = vmatpush1.xpose.msra.mxu0 0.0
    %1248 = vmatprep.subr.mxu0 0.0
    %1249 = vmatpush1.xpose.msra.mxu0 0.0
    %1250 = vmatprep.subr.mxu0 0.0
    %1251 = vmatpush1.xpose.msra.mxu0 0.0
    %1252 = vmatprep.subr.mxu0 0.0
    %1253 = vmatpush1.xpose.msra.mxu0 0.0
    %1254 = vmatprep.subr.mxu0 0.0
    %1255 = vmatpush1.xpose.msra.mxu0 0.0
    %1256 = vmatprep.subr.mxu0 0.0
    %1257 = vmatpush1.xpose.msra.mxu0 0.0
    %1258 = vmatprep.subr.mxu0 0.0
    %1259 = vmatpush1.xpose.msra.mxu0 0.0
    %1260 = vmatprep.subr.mxu0 0.0
    %1261 = vmatpush1.xpose.msra.mxu0 0.0
    %1262 = vmatprep.subr.mxu0 0.0
    %1263 = vmatpush1.xpose.msra.mxu0 0.0
    %1264 = vmatprep.subr.mxu0 0.0
    %1265 = vmatpush1.xpose.msra.mxu0 0.0
    %1266 = vmatprep.subr.mxu0 0.0
    %1267 = vmatpush1.xpose.msra.mxu0 0.0
    %1268 = vmatprep.subr.mxu0 0.0
    %1269 = vmatpush1.xpose.msra.mxu0 0.0
    %1270 = vmatprep.subr.mxu0 0.0
    %1271 = vmatpush1.xpose.msra.mxu0 0.0
    %1272 = vmatprep.subr.mxu0 0.0
    %1273 = vmatpush1.xpose.msra.mxu0 0.0
    %1274 = vmatprep.subr.mxu0 0.0
    %1275 = vmatpush1.xpose.msra.mxu0 0.0
    %1276 = vmatprep.mubr.f32.mxu0 0.0
    %1277 = vmatmul.mubr.f32.gmra.mrb[0].mxu0 %v1208
    %v1278 = vpop.f32.mrb[0].mxu0
    %v1279 = vadd.f32 0.0, %v1278
    %v1280 = vpop.f32.mrb[0].mxu0
    %1281 = vdwg.mxu0
    %v1282 = vsel %vm625, %v1201, -inf
    %1283 = vmax.xlane.f32.xlu0 %v1282
    %v1284 = vpop.xlane.xlu0 %1283
    %v1285 = vsel %vm625, %v1279, -inf
    %1286 = vmax.xlane.f32.xlu0 %v1285
    %v1287 = vpop.xlane.xlu0 %1286
    %v1288 = vsub.f32 %v1201, %v1284
    %v1289 = vsub.f32 %v1279, %v1287
    %v1290 = vmul.f32 %v1288, 1.442695
    %v1291 = vpow.pop %v1290
    %v1292 = vmul.f32 %v1289, 1.442695
    %v1293 = vpow.pop %v1292
    %v1294 = vsel %vm625, %v1291, 0.0
    %1295 = vadd.xlane.f32.xlu0 %v1294
    %v1296 = vpop.xlane.xlu0 %1295
    %v1297 = vsel %vm625, %v1293, 0.0
    %1298 = vadd.xlane.f32.xlu0 %v1297
    %v1299 = vpop.xlane.xlu0 %1298
    %v1300 = vrcp.pop %v1296
    %v1301 = vrcp.pop %v1299
    %v1302 = vmul.f32 %v1291, %v1300
    %v1303 = vmul.f32 %v1293, %v1301
    %1304 = vrot.lane.b32.xlu0 %v464, 108
    %v1305 = vpop.permute.xlu0 %1304
    %v1308 = vsel %vm625, %v1302, 0
    %1310 = vmatprep.subr.mxu0 0.0
    %1311 = vmatpush1.msra.mxu0 %v1305
    %1312 = vmatprep.subr.mxu0 0.0
    %1313 = vmatpush1.msra.mxu0 0.0
    %1314 = vmatprep.subr.mxu0 0.0
    %1315 = vmatpush1.msra.mxu0 0.0
    %1316 = vmatprep.subr.mxu0 0.0
    %1317 = vmatpush1.msra.mxu0 0.0
    %1318 = vmatprep.subr.mxu0 0.0
    %1319 = vmatpush1.msra.mxu0 0.0
    %1320 = vmatprep.subr.mxu0 0.0
    %1321 = vmatpush1.msra.mxu0 0.0
    %1322 = vmatprep.subr.mxu0 0.0
    %1323 = vmatpush1.msra.mxu0 0.0
    %1324 = vmatprep.subr.mxu0 0.0
    %1325 = vmatpush1.msra.mxu0 0.0
    %1326 = vmatprep.subr.mxu0 0.0
    %1327 = vmatpush1.msra.mxu0 0.0
    %1328 = vmatprep.subr.mxu0 0.0
    %1329 = vmatpush1.msra.mxu0 0.0
    %1330 = vmatprep.subr.mxu0 0.0
    %1331 = vmatpush1.msra.mxu0 0.0
    %1332 = vmatprep.subr.mxu0 0.0
    %1333 = vmatpush1.msra.mxu0 0.0
    %1334 = vmatprep.subr.mxu0 0.0
    %1335 = vmatpush1.msra.mxu0 0.0
    %1336 = vmatprep.subr.mxu0 0.0
    %1337 = vmatpush1.msra.mxu0 0.0
    %1338 = vmatprep.subr.mxu0 0.0
    %1339 = vmatpush1.msra.mxu0 0.0
    %1340 = vmatprep.subr.mxu0 0.0
    %1341 = vmatpush1.msra.mxu0 0.0
    %1342 = vmatprep.subr.mxu0 0.0
    %1343 = vmatpush1.msra.mxu0 0.0
    %1344 = vmatprep.subr.mxu0 0.0
    %1345 = vmatpush1.msra.mxu0 0.0
    %1346 = vmatprep.subr.mxu0 0.0
    %1347 = vmatpush1.msra.mxu0 0.0
    %1348 = vmatprep.subr.mxu0 0.0
    %1349 = vmatpush1.msra.mxu0 0.0
    %1350 = vmatprep.subr.mxu0 0.0
    %1351 = vmatpush1.msra.mxu0 0.0
    %1352 = vmatprep.subr.mxu0 0.0
    %1353 = vmatpush1.msra.mxu0 0.0
    %1354 = vmatprep.subr.mxu0 0.0
    %1355 = vmatpush1.msra.mxu0 0.0
    %1356 = vmatprep.subr.mxu0 0.0
    %1357 = vmatpush1.msra.mxu0 0.0
    %1358 = vmatprep.subr.mxu0 0.0
    %1359 = vmatpush1.msra.mxu0 0.0
    %1360 = vmatprep.subr.mxu0 0.0
    %1361 = vmatpush1.msra.mxu0 0.0
    %1362 = vmatprep.subr.mxu0 0.0
    %1363 = vmatpush1.msra.mxu0 0.0
    %1364 = vmatprep.subr.mxu0 0.0
    %1365 = vmatpush1.msra.mxu0 0.0
    %1366 = vmatprep.subr.mxu0 0.0
    %1367 = vmatpush1.msra.mxu0 0.0
    %1368 = vmatprep.subr.mxu0 0.0
    %1369 = vmatpush1.msra.mxu0 0.0
    %1370 = vmatprep.subr.mxu0 0.0
    %1371 = vmatpush1.msra.mxu0 0.0
    %1372 = vmatprep.subr.mxu0 0.0
    %1373 = vmatpush1.msra.mxu0 0.0
    %1374 = vmatprep.mubr.f32.mxu0 0.0
    %1375 = vmatmul.mubr.f32.gmra.mrb[0].mxu0 %v1308
    %v1376 = vpop.f32.mrb[0].mxu0
    %v1377 = vadd.f32 0.0, %v1376
    %v1378 = vpop.f32.mrb[0].mxu0
    %1379 = vdwg.mxu0
    %1380 = vrot.lane.b32.xlu0 %v469, 108
    %v1381 = vpop.permute.xlu0 %1380
    %v1384 = vsel %vm625, %v1303, 0
    %1386 = vmatprep.subr.mxu0 0.0
    %1387 = vmatpush1.msra.mxu0 %v1381
    %1388 = vmatprep.subr.mxu0 0.0
    %1389 = vmatpush1.msra.mxu0 0.0
    %1390 = vmatprep.subr.mxu0 0.0
    %1391 = vmatpush1.msra.mxu0 0.0
    %1392 = vmatprep.subr.mxu0 0.0
    %1393 = vmatpush1.msra.mxu0 0.0
    %1394 = vmatprep.subr.mxu0 0.0
    %1395 = vmatpush1.msra.mxu0 0.0
    %1396 = vmatprep.subr.mxu0 0.0
    %1397 = vmatpush1.msra.mxu0 0.0
    %1398 = vmatprep.subr.mxu0 0.0
    %1399 = vmatpush1.msra.mxu0 0.0
    %1400 = vmatprep.subr.mxu0 0.0
    %1401 = vmatpush1.msra.mxu0 0.0
    %1402 = vmatprep.subr.mxu0 0.0
    %1403 = vmatpush1.msra.mxu0 0.0
    %1404 = vmatprep.subr.mxu0 0.0
    %1405 = vmatpush1.msra.mxu0 0.0
    %1406 = vmatprep.subr.mxu0 0.0
    %1407 = vmatpush1.msra.mxu0 0.0
    %1408 = vmatprep.subr.mxu0 0.0
    %1409 = vmatpush1.msra.mxu0 0.0
    %1410 = vmatprep.subr.mxu0 0.0
    %1411 = vmatpush1.msra.mxu0 0.0
    %1412 = vmatprep.subr.mxu0 0.0
    %1413 = vmatpush1.msra.mxu0 0.0
    %1414 = vmatprep.subr.mxu0 0.0
    %1415 = vmatpush1.msra.mxu0 0.0
    %1416 = vmatprep.subr.mxu0 0.0
    %1417 = vmatpush1.msra.mxu0 0.0
    %1418 = vmatprep.subr.mxu0 0.0
    %1419 = vmatpush1.msra.mxu0 0.0
    %1420 = vmatprep.subr.mxu0 0.0
    %1421 = vmatpush1.msra.mxu0 0.0
    %1422 = vmatprep.subr.mxu0 0.0
    %1423 = vmatpush1.msra.mxu0 0.0
    %1424 = vmatprep.subr.mxu0 0.0
    %1425 = vmatpush1.msra.mxu0 0.0
    %1426 = vmatprep.subr.mxu0 0.0
    %1427 = vmatpush1.msra.mxu0 0.0
    %1428 = vmatprep.subr.mxu0 0.0
    %1429 = vmatpush1.msra.mxu0 0.0
    %1430 = vmatprep.subr.mxu0 0.0
    %1431 = vmatpush1.msra.mxu0 0.0
    %1432 = vmatprep.subr.mxu0 0.0
    %1433 = vmatpush1.msra.mxu0 0.0
    %1434 = vmatprep.subr.mxu0 0.0
    %1435 = vmatpush1.msra.mxu0 0.0
    %1436 = vmatprep.subr.mxu0 0.0
    %1437 = vmatpush1.msra.mxu0 0.0
    %1438 = vmatprep.subr.mxu0 0.0
    %1439 = vmatpush1.msra.mxu0 0.0
    %1440 = vmatprep.subr.mxu0 0.0
    %1441 = vmatpush1.msra.mxu0 0.0
    %1442 = vmatprep.subr.mxu0 0.0
    %1443 = vmatpush1.msra.mxu0 0.0
    %1444 = vmatprep.subr.mxu0 0.0
    %1445 = vmatpush1.msra.mxu0 0.0
    %1446 = vmatprep.subr.mxu0 0.0
    %1447 = vmatpush1.msra.mxu0 0.0
    %1448 = vmatprep.subr.mxu0 0.0
    %1449 = vmatpush1.msra.mxu0 0.0
    %1450 = vmatprep.mubr.f32.mxu0 0.0
    %1451 = vmatmul.mubr.f32.gmra.mrb[0].mxu0 %v1384
    %v1452 = vpop.f32.mrb[0].mxu0
    %v1453 = vadd.f32 0.0, %v1452
    %v1454 = vpop.f32.mrb[0].mxu0
    %1455 = vdwg.mxu0
    %1458 = vrot.lane.b32.xlu0 %v1046, 10
    %v1459 = vpop.permute.xlu0 %1458
    %1460 = vrot.lane.b32.xlu0 %v1123, 10
    %v1461 = vpop.permute.xlu0 %1460
    %1466 = vrot.lane.b32.xlu0 %v1377, 20
    %v1467 = vpop.permute.xlu0 %1466
    %1468 = vrot.lane.b32.xlu0 %v1453, 20
    %v1469 = vpop.permute.xlu0 %1468
    %v1472 = vsel %vm472, %v718, %v1459
    %v1473 = vsel %vm472, %v791, %v1461
    %vm1474 = vcmask 162816
    %v1475 = vsel %vm1474, %v1472, %v1467
    %v1476 = vsel %vm1474, %v1473, %v1469
    %v1477 = vld [vmem:[#allocation5] sm:$0xff]
    %v1478 = vld [vmem:[#allocation5 + $0x8] sm:$0xff]
    %v1479 = vld [vmem:[#allocation5 + $0x10] sm:$0xff]
    %v1480 = vld [vmem:[#allocation5 + $0x18] sm:$0x3f]
    %v1481 = vld [vmem:[%s11] sm:$0x1]
    %v1483 = vlaneseq
    %v1484 = vshrl.u32 %v1483, 7
    %v1485 = vsub.s32 0, %v1484
    %v1486 = vrot.slane %v1481, %v1485
    %vm1488 = vcmask 244736
    %v1490 = vsel %vm1488, %v1475, 0
    %v1493 = vsel %vm1488, %v1476, 0
    %vm1495 = vcmask 1045504
    %v1497 = vsel %vm1495, %v1480, 0
    %1499 = vmatprep.subr.mxu0 0.0
    %1500 = vmatpush1.msra.mxu0 %v1477
    %1501 = vmatprep.subr.mxu0 0.0
    %1502 = vmatpush1.msra.mxu0 %v1478
    %1503 = vmatprep.subr.mxu0 0.0
    %1504 = vmatpush1.msra.mxu0 %v1479
    %1505 = vmatprep.subr.mxu0 0.0
    %1506 = vmatpush1.msra.mxu0 %v1497
    %1507 = vmatprep.subr.mxu0 0.0
    %1508 = vmatpush1.msra.mxu0 0.0
    %1509 = vmatprep.subr.mxu0 0.0
    %1510 = vmatpush1.msra.mxu0 0.0
    %1511 = vmatprep.subr.mxu0 0.0
    %1512 = vmatpush1.msra.mxu0 0.0
    %1513 = vmatprep.subr.mxu0 0.0
    %1514 = vmatpush1.msra.mxu0 0.0
    %1515 = vmatprep.subr.mxu0 0.0
    %1516 = vmatpush1.msra.mxu0 0.0
    %1517 = vmatprep.subr.mxu0 0.0
    %1518 = vmatpush1.msra.mxu0 0.0
    %1519 = vmatprep.subr.mxu0 0.0
    %1520 = vmatpush1.msra.mxu0 0.0
    %1521 = vmatprep.subr.mxu0 0.0
    %1522 = vmatpush1.msra.mxu0 0.0
    %1523 = vmatprep.subr.mxu0 0.0
    %1524 = vmatpush1.msra.mxu0 0.0
    %1525 = vmatprep.subr.mxu0 0.0
    %1526 = vmatpush1.msra.mxu0 0.0
    %1527 = vmatprep.subr.mxu0 0.0
    %1528 = vmatpush1.msra.mxu0 0.0
    %1529 = vmatprep.subr.mxu0 0.0
    %1530 = vmatpush1.msra.mxu0 0.0
    %1531 = vmatprep.subr.mxu0 0.0
    %1532 = vmatpush1.msra.mxu0 0.0
    %1533 = vmatprep.subr.mxu0 0.0
    %1534 = vmatpush1.msra.mxu0 0.0
    %1535 = vmatprep.subr.mxu0 0.0
    %1536 = vmatpush1.msra.mxu0 0.0
    %1537 = vmatprep.subr.mxu0 0.0
    %1538 = vmatpush1.msra.mxu0 0.0
    %1539 = vmatprep.subr.mxu0 0.0
    %1540 = vmatpush1.msra.mxu0 0.0
    %1541 = vmatprep.subr.mxu0 0.0
    %1542 = vmatpush1.msra.mxu0 0.0
    %1543 = vmatprep.subr.mxu0 0.0
    %1544 = vmatpush1.msra.mxu0 0.0
    %1545 = vmatprep.subr.mxu0 0.0
    %1546 = vmatpush1.msra.mxu0 0.0
    %1547 = vmatprep.subr.mxu0 0.0
    %1548 = vmatpush1.msra.mxu0 0.0
    %1549 = vmatprep.subr.mxu0 0.0
    %1550 = vmatpush1.msra.mxu0 0.0
    %1551 = vmatprep.subr.mxu0 0.0
    %1552 = vmatpush1.msra.mxu0 0.0
    %1553 = vmatprep.subr.mxu0 0.0
    %1554 = vmatpush1.msra.mxu0 0.0
    %1555 = vmatprep.subr.mxu0 0.0
    %1556 = vmatpush1.msra.mxu0 0.0
    %1557 = vmatprep.subr.mxu0 0.0
    %1558 = vmatpush1.msra.mxu0 0.0
    %1559 = vmatprep.subr.mxu0 0.0
    %1560 = vmatpush1.msra.mxu0 0.0
    %1561 = vmatprep.subr.mxu0 0.0
    %1562 = vmatpush1.msra.mxu0 0.0
    %1563 = vmatprep.mubr.f32.mxu0 0.0
    %1564 = vmatmul.mubr.f32.gmra.mrb[0].mxu0 %v1490
    %v1565 = vpop.f32.mrb[0].mxu0
    %v1566 = vadd.f32 %v1486, %v1565
    %v1567 = vpop.f32.mrb[0].mxu0
    %1568 = vmatprep.mubr.f32.mxu0 0.0
    %1569 = vmatmul.mubr.f32.gmra.mrb[0].mxu0 %v1493
    %v1570 = vpop.f32.mrb[0].mxu0
    %v1571 = vadd.f32 %v1486, %v1570
    %v1572 = vpop.f32.mrb[0].mxu0
    %1573 = vdwg.mxu0
    %v1574 = vadd.f32 %v203, %v1566
    %v1575 = vadd.f32 %v204, %v1571
    %v1576 = vld [vmem:[%s16] sm:$0x1]
    %v1577 = vld [vmem:[%s17] sm:$0x1]
    %v1578 = vsel %vm216, %v1574, 0.0
    %1579 = vadd.xlane.f32.xlu0 %v1578
    %v1580 = vpop.xlane.xlu0 %1579
    %v1581 = vsel %vm216, %v1575, 0.0
    %1582 = vadd.xlane.f32.xlu0 %v1581
    %v1583 = vpop.xlane.xlu0 %1582
    %v1584 = vrcp.pop 32.0
    %v1585 = vmul.f32 %v1580, %v1584
    %v1586 = vmul.f32 %v1583, %v1584
    %v1587 = vsub.f32 %v1574, %v1585
    %v1588 = vsub.f32 %v1575, %v1586
    %v1589 = vmul.f32 %v1587, %v1587
    %v1590 = vmul.f32 %v1588, %v1588
    %v1591 = vsel %vm216, %v1589, 0.0
    %1592 = vadd.xlane.f32.xlu0 %v1591
    %v1593 = vpop.xlane.xlu0 %1592
    %v1594 = vsel %vm216, %v1590, 0.0
    %1595 = vadd.xlane.f32.xlu0 %v1594
    %v1596 = vpop.xlane.xlu0 %1595
    %v1597 = vmul.f32 %v1593, %v1584
    %v1598 = vmul.f32 %v1596, %v1584
    %v1599 = vadd.f32 %v1597, 1e-05
    %v1600 = vadd.f32 %v1598, 1e-05
    %v1601 = vrsqrt.pop %v1599
    %v1602 = vrsqrt.pop %v1600
    %v1603 = vmul.f32 %v1587, %v1601
    %v1604 = vmul.f32 %v1588, %v1602
    %v1606 = vlaneseq
    %v1607 = vshrl.u32 %v1606, 7
    %v1608 = vsub.s32 0, %v1607
    %v1609 = vrot.slane %v1576, %v1608
    %v1611 = vmul.f32 %v1603, %v1609
    %v1612 = vmul.f32 %v1604, %v1609
    %v1614 = vlaneseq
    %v1615 = vshrl.u32 %v1614, 7
    %v1616 = vsub.s32 0, %v1615
    %v1617 = vrot.slane %v1577, %v1616
    %v1619 = vadd.f32 %v1611, %v1617
    %v1620 = vadd.f32 %v1612, %v1617
    %v1621 = vld [vmem:[#allocation7] sm:$0xff]
    %v1622 = vld [vmem:[#allocation7 + $0x8] sm:$0xff]
    %v1623 = vld [vmem:[#allocation7 + $0x10] sm:$0xff]
    %v1624 = vld [vmem:[#allocation7 + $0x18] sm:$0xff]
    %v1625 = vld [vmem:[%s13] sm:$0x1]
    %v1627 = vlaneseq
    %v1628 = vshrl.u32 %v1627, 7
    %v1629 = vsub.s32 0, %v1628
    %v1630 = vrot.slane %v1625, %v1629
    %v1633 = vsel %vm216, %v1619, 0
    %v1636 = vsel %vm216, %v1620, 0
    %1638 = vmatprep.subr.mxu0 0.0
    %1639 = vmatpush1.msra.mxu0 %v1621
    %1640 = vmatprep.subr.mxu0 0.0
    %1641 = vmatpush1.msra.mxu0 %v1622
    %1642 = vmatprep.subr.mxu0 0.0
    %1643 = vmatpush1.msra.mxu0 %v1623
    %1644 = vmatprep.subr.mxu0 0.0
    %1645 = vmatpush1.msra.mxu0 %v1624
    %1646 = vmatprep.subr.mxu0 0.0
    %1647 = vmatpush1.msra.mxu0 0.0
    %1648 = vmatprep.subr.mxu0 0.0
    %1649 = vmatpush1.msra.mxu0 0.0
    %1650 = vmatprep.subr.mxu0 0.0
    %1651 = vmatpush1.msra.mxu0 0.0
    %1652 = vmatprep.subr.mxu0 0.0
    %1653 = vmatpush1.msra.mxu0 0.0
    %1654 = vmatprep.subr.mxu0 0.0
    %1655 = vmatpush1.msra.mxu0 0.0
    %1656 = vmatprep.subr.mxu0 0.0
    %1657 = vmatpush1.msra.mxu0 0.0
    %1658 = vmatprep.subr.mxu0 0.0
    %1659 = vmatpush1.msra.mxu0 0.0
    %1660 = vmatprep.subr.mxu0 0.0
    %1661 = vmatpush1.msra.mxu0 0.0
    %1662 = vmatprep.subr.mxu0 0.0
    %1663 = vmatpush1.msra.mxu0 0.0
    %1664 = vmatprep.subr.mxu0 0.0
    %1665 = vmatpush1.msra.mxu0 0.0
    %1666 = vmatprep.subr.mxu0 0.0
    %1667 = vmatpush1.msra.mxu0 0.0
    %1668 = vmatprep.subr.mxu0 0.0
    %1669 = vmatpush1.msra.mxu0 0.0
    %1670 = vmatprep.subr.mxu0 0.0
    %1671 = vmatpush1.msra.mxu0 0.0
    %1672 = vmatprep.subr.mxu0 0.0
    %1673 = vmatpush1.msra.mxu0 0.0
    %1674 = vmatprep.subr.mxu0 0.0
    %1675 = vmatpush1.msra.mxu0 0.0
    %1676 = vmatprep.subr.mxu0 0.0
    %1677 = vmatpush1.msra.mxu0 0.0
    %1678 = vmatprep.subr.mxu0 0.0
    %1679 = vmatpush1.msra.mxu0 0.0
    %1680 = vmatprep.subr.mxu0 0.0
    %1681 = vmatpush1.msra.mxu0 0.0
    %1682 = vmatprep.subr.mxu0 0.0
    %1683 = vmatpush1.msra.mxu0 0.0
    %1684 = vmatprep.subr.mxu0 0.0
    %1685 = vmatpush1.msra.mxu0 0.0
    %1686 = vmatprep.subr.mxu0 0.0
    %1687 = vmatpush1.msra.mxu0 0.0
    %1688 = vmatprep.subr.mxu0 0.0
    %1689 = vmatpush1.msra.mxu0 0.0
    %1690 = vmatprep.subr.mxu0 0.0
    %1691 = vmatpush1.msra.mxu0 0.0
    %1692 = vmatprep.subr.mxu0 0.0
    %1693 = vmatpush1.msra.mxu0 0.0
    %1694 = vmatprep.subr.mxu0 0.0
    %1695 = vmatpush1.msra.mxu0 0.0
    %1696 = vmatprep.subr.mxu0 0.0
    %1697 = vmatpush1.msra.mxu0 0.0
    %1698 = vmatprep.subr.mxu0 0.0
    %1699 = vmatpush1.msra.mxu0 0.0
    %1700 = vmatprep.subr.mxu0 0.0
    %1701 = vmatpush1.msra.mxu0 0.0
    %1702 = vmatprep.mubr.f32.mxu0 0.0
    %1703 = vmatmul.mubr.f32.gmra.mrb[0].mxu0 %v1633
    %v1704 = vpop.f32.mrb[0].mxu0
    %v1705 = vadd.f32 %v1630, %v1704
    %v1706 = vpop.f32.mrb[0].mxu0
    %1707 = vmatprep.mubr.f32.mxu0 0.0
    %1708 = vmatmul.mubr.f32.gmra.mrb[0].mxu0 %v1636
    %v1709 = vpop.f32.mrb[0].mxu0
    %v1710 = vadd.f32 %v1630, %v1709
    %v1711 = vpop.f32.mrb[0].mxu0
    %1712 = vdwg.mxu0
    %v1713 = vmax.f32 %v1705, 0.0
    %v1714 = vmax.f32 %v1710, 0.0
    %v1715 = vld [vmem:[%s14] sm:$0xff]
    %v1716 = vld [vmem:[%s14 + $0x8] sm:$0xff]
    %v1717 = vld [vmem:[%s14 + $0x10] sm:$0xff]
    %v1718 = vld [vmem:[%s14 + $0x18] sm:$0xff]
    %v1719 = vld [vmem:[%s14 + $0x20] sm:$0xff]
    %v1720 = vld [vmem:[%s14 + $0x28] sm:$0xff]
    %v1721 = vld [vmem:[%s14 + $0x30] sm:$0xff]
    %v1722 = vld [vmem:[%s14 + $0x38] sm:$0xff]
    %v1723 = vld [vmem:[%s15] sm:$0x1]
    %v1725 = vlaneseq
    %v1726 = vshrl.u32 %v1725, 7
    %v1727 = vsub.s32 0, %v1726
    %v1728 = vrot.slane %v1723, %v1727
    %vm1730 = vcmask 523264
    %v1732 = vsel %vm1730, %v1713, 0
    %v1735 = vsel %vm1730, %v1714, 0
    %1737 = vmatprep.subr.mxu0 0.0
    %1738 = vmatpush1.msra.mxu0 %v1715
    %1739 = vmatprep.subr.mxu0 0.0
    %1740 = vmatpush1.msra.mxu0 %v1716
    %1741 = vmatprep.subr.mxu0 0.0
    %1742 = vmatpush1.msra.mxu0 %v1717
    %1743 = vmatprep.subr.mxu0 0.0
    %1744 = vmatpush1.msra.mxu0 %v1718
    %1745 = vmatprep.subr.mxu0 0.0
    %1746 = vmatpush1.msra.mxu0 %v1719
    %1747 = vmatprep.subr.mxu0 0.0
    %1748 = vmatpush1.msra.mxu0 %v1720
    %1749 = vmatprep.subr.mxu0 0.0
    %1750 = vmatpush1.msra.mxu0 %v1721
    %1751 = vmatprep.subr.mxu0 0.0
    %1752 = vmatpush1.msra.mxu0 %v1722
    %1753 = vmatprep.subr.mxu0 0.0
    %1754 = vmatpush1.msra.mxu0 0.0
    %1755 = vmatprep.subr.mxu0 0.0
    %1756 = vmatpush1.msra.mxu0 0.0
    %1757 = vmatprep.subr.mxu0 0.0
    %1758 = vmatpush1.msra.mxu0 0.0
    %1759 = vmatprep.subr.mxu0 0.0
    %1760 = vmatpush1.msra.mxu0 0.0
    %1761 = vmatprep.subr.mxu0 0.0
    %1762 = vmatpush1.msra.mxu0 0.0
    %1763 = vmatprep.subr.mxu0 0.0
    %1764 = vmatpush1.msra.mxu0 0.0
    %1765 = vmatprep.subr.mxu0 0.0
    %1766 = vmatpush1.msra.mxu0 0.0
    %1767 = vmatprep.subr.mxu0 0.0
    %1768 = vmatpush1.msra.mxu0 0.0
    %1769 = vmatprep.subr.mxu0 0.0
    %1770 = vmatpush1.msra.mxu0 0.0
    %1771 = vmatprep.subr.mxu0 0.0
    %1772 = vmatpush1.msra.mxu0 0.0
    %1773 = vmatprep.subr.mxu0 0.0
    %1774 = vmatpush1.msra.mxu0 0.0
    %1775 = vmatprep.subr.mxu0 0.0
    %1776 = vmatpush1.msra.mxu0 0.0
    %1777 = vmatprep.subr.mxu0 0.0
    %1778 = vmatpush1.msra.mxu0 0.0
    %1779 = vmatprep.subr.mxu0 0.0
    %1780 = vmatpush1.msra.mxu0 0.0
    %1781 = vmatprep.subr.mxu0 0.0
    %1782 = vmatpush1.msra.mxu0 0.0
    %1783 = vmatprep.subr.mxu0 0.0
    %1784 = vmatpush1.msra.mxu0 0.0
    %1785 = vmatprep.subr.mxu0 0.0
    %1786 = vmatpush1.msra.mxu0 0.0
    %1787 = vmatprep.subr.mxu0 0.0
    %1788 = vmatpush1.msra.mxu0 0.0
    %1789 = vmatprep.subr.mxu0 0.0
    %1790 = vmatpush1.msra.mxu0 0.0
    %1791 = vmatprep.subr.mxu0 0.0
    %1792 = vmatpush1.msra.mxu0 0.0
    %1793 = vmatprep.subr.mxu0 0.0
    %1794 = vmatpush1.msra.mxu0 0.0
    %1795 = vmatprep.subr.mxu0 0.0
    %1796 = vmatpush1.msra.mxu0 0.0
    %1797 = vmatprep.subr.mxu0 0.0
    %1798 = vmatpush1.msra.mxu0 0.0
    %1799 = vmatprep.subr.mxu0 0.0
    %1800 = vmatpush1.msra.mxu0 0.0
    %1801 = vmatprep.mubr.f32.mxu0 0.0
    %1802 = vmatmul.mubr.f32.gmra.mrb[0].mxu0 %v1732
    %v1803 = vpop.f32.mrb[0].mxu0
    %v1804 = vadd.f32 %v1728, %v1803
    %v1805 = vpop.f32.mrb[0].mxu0
    %1806 = vmatprep.mubr.f32.mxu0 0.0
    %1807 = vmatmul.mubr.f32.gmra.mrb[0].mxu0 %v1735
    %v1808 = vpop.f32.mrb[0].mxu0
    %v1809 = vadd.f32 %v1728, %v1808
    %v1810 = vpop.f32.mrb[0].mxu0
    %1811 = vdwg.mxu0
    %v1812 = vadd.f32 %v1619, %v1804
    %v1813 = vadd.f32 %v1620, %v1809
    %v1814 = vld [vmem:[%s18] sm:$0x1]
    %v1815 = vld [vmem:[%s19] sm:$0x1]
    %v1816 = vsel %vm216, %v1812, 0.0
    %1817 = vadd.xlane.f32.xlu0 %v1816
    %v1818 = vpop.xlane.xlu0 %1817
    %v1819 = vsel %vm216, %v1813, 0.0
    %1820 = vadd.xlane.f32.xlu0 %v1819
    %v1821 = vpop.xlane.xlu0 %1820
    %v1822 = vmul.f32 %v1818, %v1584
    %v1823 = vmul.f32 %v1821, %v1584
    %v1824 = vsub.f32 %v1812, %v1822
    %v1825 = vsub.f32 %v1813, %v1823
    %v1826 = vmul.f32 %v1824, %v1824
    %v1827 = vmul.f32 %v1825, %v1825
    %v1828 = vsel %vm216, %v1826, 0.0
    %1829 = vadd.xlane.f32.xlu0 %v1828
    %v1830 = vpop.xlane.xlu0 %1829
    %v1831 = vsel %vm216, %v1827, 0.0
    %1832 = vadd.xlane.f32.xlu0 %v1831
    %v1833 = vpop.xlane.xlu0 %1832
    %v1834 = vmul.f32 %v1830, %v1584
    %v1835 = vmul.f32 %v1833, %v1584
    %v1836 = vadd.f32 %v1834, 1e-05
    %v1837 = vadd.f32 %v1835, 1e-05
    %v1838 = vrsqrt.pop %v1836
    %v1839 = vrsqrt.pop %v1837
    %v1840 = vmul.f32 %v1824, %v1838
    %v1841 = vmul.f32 %v1825, %v1839
    %v1843 = vlaneseq
    %v1844 = vshrl.u32 %v1843, 7
    %v1845 = vsub.s32 0, %v1844
    %v1846 = vrot.slane %v1814, %v1845
    %v1848 = vmul.f32 %v1840, %v1846
    %v1849 = vmul.f32 %v1841, %v1846
    %v1851 = vlaneseq
    %v1852 = vshrl.u32 %v1851, 7
    %v1853 = vsub.s32 0, %v1852
    %v1854 = vrot.slane %v1815, %v1853
    %v1856 = vadd.f32 %v1848, %v1854
    %v1857 = vadd.f32 %v1849, %v1854
    %s1858 = scalar_lea.vmem %s4, 32
    %v1859 = vld [vmem:[%s1858] sm:$0xff]
    %v1860 = vld [vmem:[%s1858 + $0x8] sm:$0xff]
    %v1861 = vld [vmem:[%s1858 + $0x10] sm:$0xff]
    %v1862 = vld [vmem:[%s1858 + $0x18] sm:$0xff]
    %s1863 = scalar_lea.vmem %s5, 1
    %v1864 = vld [vmem:[%s1863] sm:$0x1]
    %v1866 = vlaneseq
    %v1867 = vshrl.u32 %v1866, 7
    %v1868 = vsub.s32 0, %v1867
    %v1869 = vrot.slane %v1864, %v1868
    %v1872 = vsel %vm216, %v1856, 0
    %v1875 = vsel %vm216, %v1857, 0
    %1877 = vmatprep.subr.mxu0 0.0
    %1878 = vmatpush1.msra.mxu0 %v1859
    %1879 = vmatprep.subr.mxu0 0.0
    %1880 = vmatpush1.msra.mxu0 %v1860
    %1881 = vmatprep.subr.mxu0 0.0
    %1882 = vmatpush1.msra.mxu0 %v1861
    %1883 = vmatprep.subr.mxu0 0.0
    %1884 = vmatpush1.msra.mxu0 %v1862
    %1885 = vmatprep.subr.mxu0 0.0
    %1886 = vmatpush1.msra.mxu0 0.0
    %1887 = vmatprep.subr.mxu0 0.0
    %1888 = vmatpush1.msra.mxu0 0.0
    %1889 = vmatprep.subr.mxu0 0.0
    %1890 = vmatpush1.msra.mxu0 0.0
    %1891 = vmatprep.subr.mxu0 0.0
    %1892 = vmatpush1.msra.mxu0 0.0
    %1893 = vmatprep.subr.mxu0 0.0
    %1894 = vmatpush1.msra.mxu0 0.0
    %1895 = vmatprep.subr.mxu0 0.0
    %1896 = vmatpush1.msra.mxu0 0.0
    %1897 = vmatprep.subr.mxu0 0.0
    %1898 = vmatpush1.msra.mxu0 0.0
    %1899 = vmatprep.subr.mxu0 0.0
    %1900 = vmatpush1.msra.mxu0 0.0
    %1901 = vmatprep.subr.mxu0 0.0
    %1902 = vmatpush1.msra.mxu0 0.0
    %1903 = vmatprep.subr.mxu0 0.0
    %1904 = vmatpush1.msra.mxu0 0.0
    %1905 = vmatprep.subr.mxu0 0.0
    %1906 = vmatpush1.msra.mxu0 0.0
    %1907 = vmatprep.subr.mxu0 0.0
    %1908 = vmatpush1.msra.mxu0 0.0
    %1909 = vmatprep.subr.mxu0 0.0
    %1910 = vmatpush1.msra.mxu0 0.0
    %1911 = vmatprep.subr.mxu0 0.0
    %1912 = vmatpush1.msra.mxu0 0.0
    %1913 = vmatprep.subr.mxu0 0.0
    %1914 = vmatpush1.msra.mxu0 0.0
    %1915 = vmatprep.subr.mxu0 0.0
    %1916 = vmatpush1.msra.mxu0 0.0
    %1917 = vmatprep.subr.mxu0 0.0
    %1918 = vmatpush1.msra.mxu0 0.0
    %1919 = vmatprep.subr.mxu0 0.0
    %1920 = vmatpush1.msra.mxu0 0.0
    %1921 = vmatprep.subr.mxu0 0.0
    %1922 = vmatpush1.msra.mxu0 0.0
    %1923 = vmatprep.subr.mxu0 0.0
    %1924 = vmatpush1.msra.mxu0 0.0
    %1925 = vmatprep.subr.mxu0 0.0
    %1926 = vmatpush1.msra.mxu0 0.0
    %1927 = vmatprep.subr.mxu0 0.0
    %1928 = vmatpush1.msra.mxu0 0.0
    %1929 = vmatprep.subr.mxu0 0.0
    %1930 = vmatpush1.msra.mxu0 0.0
    %1931 = vmatprep.subr.mxu0 0.0
    %1932 = vmatpush1.msra.mxu0 0.0
    %1933 = vmatprep.subr.mxu0 0.0
    %1934 = vmatpush1.msra.mxu0 0.0
    %1935 = vmatprep.subr.mxu0 0.0
    %1936 = vmatpush1.msra.mxu0 0.0
    %1937 = vmatprep.subr.mxu0 0.0
    %1938 = vmatpush1.msra.mxu0 0.0
    %1939 = vmatprep.subr.mxu0 0.0
    %1940 = vmatpush1.msra.mxu0 0.0
    %1941 = vmatprep.mubr.f32.mxu0 0.0
    %1942 = vmatmul.mubr.f32.gmra.mrb[0].mxu0 %v1872
    %v1943 = vpop.f32.mrb[0].mxu0
    %v1944 = vadd.f32 %v1869, %v1943
    %v1945 = vpop.f32.mrb[0].mxu0
    %1946 = vmatprep.mubr.f32.mxu0 0.0
    %1947 = vmatmul.mubr.f32.gmra.mrb[0].mxu0 %v1875
    %v1948 = vpop.f32.mrb[0].mxu0
    %v1949 = vadd.f32 %v1869, %v1948
    %v1950 = vpop.f32.mrb[0].mxu0
    %1951 = vdwg.mxu0
    %v1952 = vmul.f32 %v1944, 0.31622776
    %v1953 = vmul.f32 %v1949, 0.31622776
    %s1954 = scalar_lea.vmem %s6, 32
    %v1955 = vld [vmem:[%s1954] sm:$0xff]
    %v1956 = vld [vmem:[%s1954 + $0x8] sm:$0xff]
    %v1957 = vld [vmem:[%s1954 + $0x10] sm:$0xff]
    %v1958 = vld [vmem:[%s1954 + $0x18] sm:$0xff]
    %s1959 = scalar_lea.vmem %s7, 1
    %v1960 = vld [vmem:[%s1959] sm:$0x1]
    %v1962 = vlaneseq
    %v1963 = vshrl.u32 %v1962, 7
    %v1964 = vsub.s32 0, %v1963
    %v1965 = vrot.slane %v1960, %v1964
    %1967 = vmatprep.subr.mxu0 0.0
    %1968 = vmatpush1.msra.mxu0 %v1955
    %1969 = vmatprep.subr.mxu0 0.0
    %1970 = vmatpush1.msra.mxu0 %v1956
    %1971 = vmatprep.subr.mxu0 0.0
    %1972 = vmatpush1.msra.mxu0 %v1957
    %1973 = vmatprep.subr.mxu0 0.0
    %1974 = vmatpush1.msra.mxu0 %v1958
    %1975 = vmatprep.subr.mxu0 0.0
    %1976 = vmatpush1.msra.mxu0 0.0
    %1977 = vmatprep.subr.mxu0 0.0
    %1978 = vmatpush1.msra.mxu0 0.0
    %1979 = vmatprep.subr.mxu0 0.0
    %1980 = vmatpush1.msra.mxu0 0.0
    %1981 = vmatprep.subr.mxu0 0.0
    %1982 = vmatpush1.msra.mxu0 0.0
    %1983 = vmatprep.subr.mxu0 0.0
    %1984 = vmatpush1.msra.mxu0 0.0
    %1985 = vmatprep.subr.mxu0 0.0
    %1986 = vmatpush1.msra.mxu0 0.0
    %1987 = vmatprep.subr.mxu0 0.0
    %1988 = vmatpush1.msra.mxu0 0.0
    %1989 = vmatprep.subr.mxu0 0.0
    %1990 = vmatpush1.msra.mxu0 0.0
    %1991 = vmatprep.subr.mxu0 0.0
    %1992 = vmatpush1.msra.mxu0 0.0
    %1993 = vmatprep.subr.mxu0 0.0
    %1994 = vmatpush1.msra.mxu0 0.0
    %1995 = vmatprep.subr.mxu0 0.0
    %1996 = vmatpush1.msra.mxu0 0.0
    %1997 = vmatprep.subr.mxu0 0.0
    %1998 = vmatpush1.msra.mxu0 0.0
    %1999 = vmatprep.subr.mxu0 0.0
    %2000 = vmatpush1.msra.mxu0 0.0
    %2001 = vmatprep.subr.mxu0 0.0
    %2002 = vmatpush1.msra.mxu0 0.0
    %2003 = vmatprep.subr.mxu0 0.0
    %2004 = vmatpush1.msra.mxu0 0.0
    %2005 = vmatprep.subr.mxu0 0.0
    %2006 = vmatpush1.msra.mxu0 0.0
    %2007 = vmatprep.subr.mxu0 0.0
    %2008 = vmatpush1.msra.mxu0 0.0
    %2009 = vmatprep.subr.mxu0 0.0
    %2010 = vmatpush1.msra.mxu0 0.0
    %2011 = vmatprep.subr.mxu0 0.0
    %2012 = vmatpush1.msra.mxu0 0.0
    %2013 = vmatprep.subr.mxu0 0.0
    %2014 = vmatpush1.msra.mxu0 0.0
    %2015 = vmatprep.subr.mxu0 0.0
    %2016 = vmatpush1.msra.mxu0 0.0
    %2017 = vmatprep.subr.mxu0 0.0
    %2018 = vmatpush1.msra.mxu0 0.0
    %2019 = vmatprep.subr.mxu0 0.0
    %2020 = vmatpush1.msra.mxu0 0.0
    %2021 = vmatprep.subr.mxu0 0.0
    %2022 = vmatpush1.msra.mxu0 0.0
    %2023 = vmatprep.subr.mxu0 0.0
    %2024 = vmatpush1.msra.mxu0 0.0
    %2025 = vmatprep.subr.mxu0 0.0
    %2026 = vmatpush1.msra.mxu0 0.0
    %2027 = vmatprep.subr.mxu0 0.0
    %2028 = vmatpush1.msra.mxu0 0.0
    %2029 = vmatprep.subr.mxu0 0.0
    %2030 = vmatpush1.msra.mxu0 0.0
    %2031 = vmatprep.mubr.f32.mxu0 0.0
    %2032 = vmatmul.mubr.f32.gmra.mrb[0].mxu0 %v1872
    %v2033 = vpop.f32.mrb[0].mxu0
    %v2034 = vadd.f32 %v1965, %v2033
    %v2035 = vpop.f32.mrb[0].mxu0
    %2036 = vmatprep.mubr.f32.mxu0 0.0
    %2037 = vmatmul.mubr.f32.gmra.mrb[0].mxu0 %v1875
    %v2038 = vpop.f32.mrb[0].mxu0
    %v2039 = vadd.f32 %v1965, %v2038
    %v2040 = vpop.f32.mrb[0].mxu0
    %2041 = vdwg.mxu0
    %s2042 = scalar_lea.vmem %s8, 32
    %v2043 = vld [vmem:[%s2042] sm:$0xff]
    %v2044 = vld [vmem:[%s2042 + $0x8] sm:$0xff]
    %v2045 = vld [vmem:[%s2042 + $0x10] sm:$0xff]
    %v2046 = vld [vmem:[%s2042 + $0x18] sm:$0xff]
    %s2047 = scalar_lea.vmem %s9, 1
    %v2048 = vld [vmem:[%s2047] sm:$0x1]
    %v2050 = vlaneseq
    %v2051 = vshrl.u32 %v2050, 7
    %v2052 = vsub.s32 0, %v2051
    %v2053 = vrot.slane %v2048, %v2052
    %2055 = vmatprep.subr.mxu0 0.0
    %2056 = vmatpush1.msra.mxu0 %v2043
    %2057 = vmatprep.subr.mxu0 0.0
    %2058 = vmatpush1.msra.mxu0 %v2044
    %2059 = vmatprep.subr.mxu0 0.0
    %2060 = vmatpush1.msra.mxu0 %v2045
    %2061 = vmatprep.subr.mxu0 0.0
    %2062 = vmatpush1.msra.mxu0 %v2046
    %2063 = vmatprep.subr.mxu0 0.0
    %2064 = vmatpush1.msra.mxu0 0.0
    %2065 = vmatprep.subr.mxu0 0.0
    %2066 = vmatpush1.msra.mxu0 0.0
    %2067 = vmatprep.subr.mxu0 0.0
    %2068 = vmatpush1.msra.mxu0 0.0
    %2069 = vmatprep.subr.mxu0 0.0
    %2070 = vmatpush1.msra.mxu0 0.0
    %2071 = vmatprep.subr.mxu0 0.0
    %2072 = vmatpush1.msra.mxu0 0.0
    %2073 = vmatprep.subr.mxu0 0.0
    %2074 = vmatpush1.msra.mxu0 0.0
    %2075 = vmatprep.subr.mxu0 0.0
    %2076 = vmatpush1.msra.mxu0 0.0
    %2077 = vmatprep.subr.mxu0 0.0
    %2078 = vmatpush1.msra.mxu0 0.0
    %2079 = vmatprep.subr.mxu0 0.0
    %2080 = vmatpush1.msra.mxu0 0.0
    %2081 = vmatprep.subr.mxu0 0.0
    %2082 = vmatpush1.msra.mxu0 0.0
    %2083 = vmatprep.subr.mxu0 0.0
    %2084 = vmatpush1.msra.mxu0 0.0
    %2085 = vmatprep.subr.mxu0 0.0
    %2086 = vmatpush1.msra.mxu0 0.0
    %2087 = vmatprep.subr.mxu0 0.0
    %2088 = vmatpush1.msra.mxu0 0.0
    %2089 = vmatprep.subr.mxu0 0.0
    %2090 = vmatpush1.msra.mxu0 0.0
    %2091 = vmatprep.subr.mxu0 0.0
    %2092 = vmatpush1.msra.mxu0 0.0
    %2093 = vmatprep.subr.mxu0 0.0
    %2094 = vmatpush1.msra.mxu0 0.0
    %2095 = vmatprep.subr.mxu0 0.0
    %2096 = vmatpush1.msra.mxu0 0.0
    %2097 = vmatprep.subr.mxu0 0.0
    %2098 = vmatpush1.msra.mxu0 0.0
    %2099 = vmatprep.subr.mxu0 0.0
    %2100 = vmatpush1.msra.mxu0 0.0
    %2101 = vmatprep.subr.mxu0 0.0
    %2102 = vmatpush1.msra.mxu0 0.0
    %2103 = vmatprep.subr.mxu0 0.0
    %2104 = vmatpush1.msra.mxu0 0.0
    %2105 = vmatprep.subr.mxu0 0.0
    %2106 = vmatpush1.msra.mxu0 0.0
    %2107 = vmatprep.subr.mxu0 0.0
    %2108 = vmatpush1.msra.mxu0 0.0
    %2109 = vmatprep.subr.mxu0 0.0
    %2110 = vmatpush1.msra.mxu0 0.0
    %2111 = vmatprep.subr.mxu0 0.0
    %2112 = vmatpush1.msra.mxu0 0.0
    %2113 = vmatprep.subr.mxu0 0.0
    %2114 = vmatpush1.msra.mxu0 0.0
    %2115 = vmatprep.subr.mxu0 0.0
    %2116 = vmatpush1.msra.mxu0 0.0
    %2117 = vmatprep.subr.mxu0 0.0
    %2118 = vmatpush1.msra.mxu0 0.0
    %2119 = vmatprep.mubr.f32.mxu0 0.0
    %2120 = vmatmul.mubr.f32.gmra.mrb[0].mxu0 %v1872
    %v2121 = vpop.f32.mrb[0].mxu0
    %v2122 = vadd.f32 %v2053, %v2121
    %v2123 = vpop.f32.mrb[0].mxu0
    %2124 = vmatprep.mubr.f32.mxu0 0.0
    %2125 = vmatmul.mubr.f32.gmra.mrb[0].mxu0 %v1875
    %v2126 = vpop.f32.mrb[0].mxu0
    %v2127 = vadd.f32 %v2053, %v2126
    %v2128 = vpop.f32.mrb[0].mxu0
    %2129 = vdwg.mxu0
    %v2131 = vsel %vm472, %v1952, 0
    %v2134 = vsel %vm472, %v2034, 0
    %2136 = vmatprep.subr.mxu0 0.0
    %2137 = vmatpush1.xpose.msra.mxu0 %v2134
    %2138 = vmatprep.subr.mxu0 0.0
    %2139 = vmatpush1.xpose.msra.mxu0 0.0
    %2140 = vmatprep.subr.mxu0 0.0
    %2141 = vmatpush1.xpose.msra.mxu0 0.0
    %2142 = vmatprep.subr.mxu0 0.0
    %2143 = vmatpush1.xpose.msra.mxu0 0.0
    %2144 = vmatprep.subr.mxu0 0.0
    %2145 = vmatpush1.xpose.msra.mxu0 0.0
    %2146 = vmatprep.subr.mxu0 0.0
    %2147 = vmatpush1.xpose.msra.mxu0 0.0
    %2148 = vmatprep.subr.mxu0 0.0
    %2149 = vmatpush1.xpose.msra.mxu0 0.0
    %2150 = vmatprep.subr.mxu0 0.0
    %2151 = vmatpush1.xpose.msra.mxu0 0.0
    %2152 = vmatprep.subr.mxu0 0.0
    %2153 = vmatpush1.xpose.msra.mxu0 0.0
    %2154 = vmatprep.subr.mxu0 0.0
    %2155 = vmatpush1.xpose.msra.mxu0 0.0
    %2156 = vmatprep.subr.mxu0 0.0
    %2157 = vmatpush1.xpose.msra.mxu0 0.0
    %2158 = vmatprep.subr.mxu0 0.0
    %2159 = vmatpush1.xpose.msra.mxu0 0.0
    %2160 = vmatprep.subr.mxu0 0.0
    %2161 = vmatpush1.xpose.msra.mxu0 0.0
    %2162 = vmatprep.subr.mxu0 0.0
    %2163 = vmatpush1.xpose.msra.mxu0 0.0
    %2164 = vmatprep.subr.mxu0 0.0
    %2165 = vmatpush1.xpose.msra.mxu0 0.0
    %2166 = vmatprep.subr.mxu0 0.0
    %2167 = vmatpush1.xpose.msra.mxu0 0.0
    %2168 = vmatprep.subr.mxu0 0.0
    %2169 = vmatpush1.xpose.msra.mxu0 0.0
    %2170 = vmatprep.subr.mxu0 0.0
    %2171 = vmatpush1.xpose.msra.mxu0 0.0
    %2172 = vmatprep.subr.mxu0 0.0
    %2173 = vmatpush1.xpose.msra.mxu0 0.0
    %2174 = vmatprep.subr.mxu0 0.0
    %2175 = vmatpush1.xpose.msra.mxu0 0.0
    %2176 = vmatprep.subr.mxu0 0.0
    %2177 = vmatpush1.xpose.msra.mxu0 0.0
    %2178 = vmatprep.subr.mxu0 0.0
    %2179 = vmatpush1.xpose.msra.mxu0 0.0
    %2180 = vmatprep.subr.mxu0 0.0
    %2181 = vmatpush1.xpose.msra.mxu0 0.0
    %2182 = vmatprep.subr.mxu0 0.0
    %2183 = vmatpush1.xpose.msra.mxu0 0.0
    %2184 = vmatprep.subr.mxu0 0.0
    %2185 = vmatpush1.xpose.msra.mxu0 0.0
    %2186 = vmatprep.subr.mxu0 0.0
    %2187 = vmatpush1.xpose.msra.mxu0 0.0
    %2188 = vmatprep.subr.mxu0 0.0
    %2189 = vmatpush1.xpose.msra.mxu0 0.0
    %2190 = vmatprep.subr.mxu0 0.0
    %2191 = vmatpush1.xpose.msra.mxu0 0.0
    %2192 = vmatprep.subr.mxu0 0.0
    %2193 = vmatpush1.xpose.msra.mxu0 0.0
    %2194 = vmatprep.subr.mxu0 0.0
    %2195 = vmatpush1.xpose.msra.mxu0 0.0
    %2196 = vmatprep.subr.mxu0 0.0
    %2197 = vmatpush1.xpose.msra.mxu0 0.0
    %2198 = vmatprep.subr.mxu0 0.0
    %2199 = vmatpush1.xpose.msra.mxu0 0.0
    %2200 = vmatprep.mubr.f32.mxu0 0.0
    %2201 = vmatmul.mubr.f32.gmra.mrb[0].mxu0 %v2131
    %v2202 = vpop.f32.mrb[0].mxu0
    %v2203 = vadd.f32 0.0, %v2202
    %v2204 = vpop.f32.mrb[0].mxu0
    %2205 = vdwg.mxu0
    %v2207 = vsel %vm472, %v1953, 0
    %v2210 = vsel %vm472, %v2039, 0
    %2212 = vmatprep.subr.mxu0 0.0
    %2213 = vmatpush1.xpose.msra.mxu0 %v2210
    %2214 = vmatprep.subr.mxu0 0.0
    %2215 = vmatpush1.xpose.msra.mxu0 0.0
    %2216 = vmatprep.subr.mxu0 0.0
    %2217 = vmatpush1.xpose.msra.mxu0 0.0
    %2218 = vmatprep.subr.mxu0 0.0
    %2219 = vmatpush1.xpose.msra.mxu0 0.0
    %2220 = vmatprep.subr.mxu0 0.0
    %2221 = vmatpush1.xpose.msra.mxu0 0.0
    %2222 = vmatprep.subr.mxu0 0.0
    %2223 = vmatpush1.xpose.msra.mxu0 0.0
    %2224 = vmatprep.subr.mxu0 0.0
    %2225 = vmatpush1.xpose.msra.mxu0 0.0
    %2226 = vmatprep.subr.mxu0 0.0
    %2227 = vmatpush1.xpose.msra.mxu0 0.0
    %2228 = vmatprep.subr.mxu0 0.0
    %2229 = vmatpush1.xpose.msra.mxu0 0.0
    %2230 = vmatprep.subr.mxu0 0.0
    %2231 = vmatpush1.xpose.msra.mxu0 0.0
    %2232 = vmatprep.subr.mxu0 0.0
    %2233 = vmatpush1.xpose.msra.mxu0 0.0
    %2234 = vmatprep.subr.mxu0 0.0
    %2235 = vmatpush1.xpose.msra.mxu0 0.0
    %2236 = vmatprep.subr.mxu0 0.0
    %2237 = vmatpush1.xpose.msra.mxu0 0.0
    %2238 = vmatprep.subr.mxu0 0.0
    %2239 = vmatpush1.xpose.msra.mxu0 0.0
    %2240 = vmatprep.subr.mxu0 0.0
    %2241 = vmatpush1.xpose.msra.mxu0 0.0
    %2242 = vmatprep.subr.mxu0 0.0
    %2243 = vmatpush1.xpose.msra.mxu0 0.0
    %2244 = vmatprep.subr.mxu0 0.0
    %2245 = vmatpush1.xpose.msra.mxu0 0.0
    %2246 = vmatprep.subr.mxu0 0.0
    %2247 = vmatpush1.xpose.msra.mxu0 0.0
    %2248 = vmatprep.subr.mxu0 0.0
    %2249 = vmatpush1.xpose.msra.mxu0 0.0
    %2250 = vmatprep.subr.mxu0 0.0
    %2251 = vmatpush1.xpose.msra.mxu0 0.0
    %2252 = vmatprep.subr.mxu0 0.0
    %2253 = vmatpush1.xpose.msra.mxu0 0.0
    %2254 = vmatprep.subr.mxu0 0.0
    %2255 = vmatpush1.xpose.msra.mxu0 0.0
    %2256 = vmatprep.subr.mxu0 0.0
    %2257 = vmatpush1.xpose.msra.mxu0 0.0
    %2258 = vmatprep.subr.mxu0 0.0
    %2259 = vmatpush1.xpose.msra.mxu0 0.0
    %2260 = vmatprep.subr.mxu0 0.0
    %2261 = vmatpush1.xpose.msra.mxu0 0.0
    %2262 = vmatprep.subr.mxu0 0.0
    %2263 = vmatpush1.xpose.msra.mxu0 0.0
    %2264 = vmatprep.subr.mxu0 0.0
    %2265 = vmatpush1.xpose.msra.mxu0 0.0
    %2266 = vmatprep.subr.mxu0 0.0
    %2267 = vmatpush1.xpose.msra.mxu0 0.0
    %2268 = vmatprep.subr.mxu0 0.0
    %2269 = vmatpush1.xpose.msra.mxu0 0.0
    %2270 = vmatprep.subr.mxu0 0.0
    %2271 = vmatpush1.xpose.msra.mxu0 0.0
    %2272 = vmatprep.subr.mxu0 0.0
    %2273 = vmatpush1.xpose.msra.mxu0 0.0
    %2274 = vmatprep.subr.mxu0 0.0
    %2275 = vmatpush1.xpose.msra.mxu0 0.0
    %2276 = vmatprep.mubr.f32.mxu0 0.0
    %2277 = vmatmul.mubr.f32.gmra.mrb[0].mxu0 %v2207
    %v2278 = vpop.f32.mrb[0].mxu0
    %v2279 = vadd.f32 0.0, %v2278
    %v2280 = vpop.f32.mrb[0].mxu0
    %2281 = vdwg.mxu0
    %v2282 = vsel %vm625, %v2203, -inf
    %2283 = vmax.xlane.f32.xlu0 %v2282
    %v2284 = vpop.xlane.xlu0 %2283
    %v2285 = vsel %vm625, %v2279, -inf
    %2286 = vmax.xlane.f32.xlu0 %v2285
    %v2287 = vpop.xlane.xlu0 %2286
    %v2288 = vsub.f32 %v2203, %v2284
    %v2289 = vsub.f32 %v2279, %v2287
    %v2290 = vmul.f32 %v2288, 1.442695
    %v2291 = vpow.pop %v2290
    %v2292 = vmul.f32 %v2289, 1.442695
    %v2293 = vpow.pop %v2292
    %v2294 = vsel %vm625, %v2291, 0.0
    %2295 = vadd.xlane.f32.xlu0 %v2294
    %v2296 = vpop.xlane.xlu0 %2295
    %v2297 = vsel %vm625, %v2293, 0.0
    %2298 = vadd.xlane.f32.xlu0 %v2297
    %v2299 = vpop.xlane.xlu0 %2298
    %v2300 = vrcp.pop %v2296
    %v2301 = vrcp.pop %v2299
    %v2302 = vmul.f32 %v2291, %v2300
    %v2303 = vmul.f32 %v2293, %v2301
    %v2305 = vsel %vm625, %v2302, 0
    %2307 = vmatprep.subr.mxu0 0.0
    %2308 = vmatpush1.msra.mxu0 %v2122
    %2309 = vmatprep.subr.mxu0 0.0
    %2310 = vmatpush1.msra.mxu0 0.0
    %2311 = vmatprep.subr.mxu0 0.0
    %2312 = vmatpush1.msra.mxu0 0.0
    %2313 = vmatprep.subr.mxu0 0.0
    %2314 = vmatpush1.msra.mxu0 0.0
    %2315 = vmatprep.subr.mxu0 0.0
    %2316 = vmatpush1.msra.mxu0 0.0
    %2317 = vmatprep.subr.mxu0 0.0
    %2318 = vmatpush1.msra.mxu0 0.0
    %2319 = vmatprep.subr.mxu0 0.0
    %2320 = vmatpush1.msra.mxu0 0.0
    %2321 = vmatprep.subr.mxu0 0.0
    %2322 = vmatpush1.msra.mxu0 0.0
    %2323 = vmatprep.subr.mxu0 0.0
    %2324 = vmatpush1.msra.mxu0 0.0
    %2325 = vmatprep.subr.mxu0 0.0
    %2326 = vmatpush1.msra.mxu0 0.0
    %2327 = vmatprep.subr.mxu0 0.0
    %2328 = vmatpush1.msra.mxu0 0.0
    %2329 = vmatprep.subr.mxu0 0.0
    %2330 = vmatpush1.msra.mxu0 0.0
    %2331 = vmatprep.subr.mxu0 0.0
    %2332 = vmatpush1.msra.mxu0 0.0
    %2333 = vmatprep.subr.mxu0 0.0
    %2334 = vmatpush1.msra.mxu0 0.0
    %2335 = vmatprep.subr.mxu0 0.0
    %2336 = vmatpush1.msra.mxu0 0.0
    %2337 = vmatprep.subr.mxu0 0.0
    %2338 = vmatpush1.msra.mxu0 0.0
    %2339 = vmatprep.subr.mxu0 0.0
    %2340 = vmatpush1.msra.mxu0 0.0
    %2341 = vmatprep.subr.mxu0 0.0
    %2342 = vmatpush1.msra.mxu0 0.0
    %2343 = vmatprep.subr.mxu0 0.0
    %2344 = vmatpush1.msra.mxu0 0.0
    %2345 = vmatprep.subr.mxu0 0.0
    %2346 = vmatpush1.msra.mxu0 0.0
    %2347 = vmatprep.subr.mxu0 0.0
    %2348 = vmatpush1.msra.mxu0 0.0
    %2349 = vmatprep.subr.mxu0 0.0
    %2350 = vmatpush1.msra.mxu0 0.0
    %2351 = vmatprep.subr.mxu0 0.0
    %2352 = vmatpush1.msra.mxu0 0.0
    %2353 = vmatprep.subr.mxu0 0.0
    %2354 = vmatpush1.msra.mxu0 0.0
    %2355 = vmatprep.subr.mxu0 0.0
    %2356 = vmatpush1.msra.mxu0 0.0
    %2357 = vmatprep.subr.mxu0 0.0
    %2358 = vmatpush1.msra.mxu0 0.0
    %2359 = vmatprep.subr.mxu0 0.0
    %2360 = vmatpush1.msra.mxu0 0.0
    %2361 = vmatprep.subr.mxu0 0.0
    %2362 = vmatpush1.msra.mxu0 0.0
    %2363 = vmatprep.subr.mxu0 0.0
    %2364 = vmatpush1.msra.mxu0 0.0
    %2365 = vmatprep.subr.mxu0 0.0
    %2366 = vmatpush1.msra.mxu0 0.0
    %2367 = vmatprep.subr.mxu0 0.0
    %2368 = vmatpush1.msra.mxu0 0.0
    %2369 = vmatprep.subr.mxu0 0.0
    %2370 = vmatpush1.msra.mxu0 0.0
    %2371 = vmatprep.mubr.f32.mxu0 0.0
    %2372 = vmatmul.mubr.f32.gmra.mrb[0].mxu0 %v2305
    %v2373 = vpop.f32.mrb[0].mxu0
    %v2374 = vadd.f32 0.0, %v2373
    %v2375 = vpop.f32.mrb[0].mxu0
    %2376 = vdwg.mxu0
    %v2378 = vsel %vm625, %v2303, 0
    %2380 = vmatprep.subr.mxu0 0.0
    %2381 = vmatpush1.msra.mxu0 %v2127
    %2382 = vmatprep.subr.mxu0 0.0
    %2383 = vmatpush1.msra.mxu0 0.0
    %2384 = vmatprep.subr.mxu0 0.0
    %2385 = vmatpush1.msra.mxu0 0.0
    %2386 = vmatprep.subr.mxu0 0.0
    %2387 = vmatpush1.msra.mxu0 0.0
    %2388 = vmatprep.subr.mxu0 0.0
    %2389 = vmatpush1.msra.mxu0 0.0
    %2390 = vmatprep.subr.mxu0 0.0
    %2391 = vmatpush1.msra.mxu0 0.0
    %2392 = vmatprep.subr.mxu0 0.0
    %2393 = vmatpush1.msra.mxu0 0.0
    %2394 = vmatprep.subr.mxu0 0.0
    %2395 = vmatpush1.msra.mxu0 0.0
    %2396 = vmatprep.subr.mxu0 0.0
    %2397 = vmatpush1.msra.mxu0 0.0
    %2398 = vmatprep.subr.mxu0 0.0
    %2399 = vmatpush1.msra.mxu0 0.0
    %2400 = vmatprep.subr.mxu0 0.0
    %2401 = vmatpush1.msra.mxu0 0.0
    %2402 = vmatprep.subr.mxu0 0.0
    %2403 = vmatpush1.msra.mxu0 0.0
    %2404 = vmatprep.subr.mxu0 0.0
    %2405 = vmatpush1.msra.mxu0 0.0
    %2406 = vmatprep.subr.mxu0 0.0
    %2407 = vmatpush1.msra.mxu0 0.0
    %2408 = vmatprep.subr.mxu0 0.0
    %2409 = vmatpush1.msra.mxu0 0.0
    %2410 = vmatprep.subr.mxu0 0.0
    %2411 = vmatpush1.msra.mxu0 0.0
    %2412 = vmatprep.subr.mxu0 0.0
    %2413 = vmatpush1.msra.mxu0 0.0
    %2414 = vmatprep.subr.mxu0 0.0
    %2415 = vmatpush1.msra.mxu0 0.0
    %2416 = vmatprep.subr.mxu0 0.0
    %2417 = vmatpush1.msra.mxu0 0.0
    %2418 = vmatprep.subr.mxu0 0.0
    %2419 = vmatpush1.msra.mxu0 0.0
    %2420 = vmatprep.subr.mxu0 0.0
    %2421 = vmatpush1.msra.mxu0 0.0
    %2422 = vmatprep.subr.mxu0 0.0
    %2423 = vmatpush1.msra.mxu0 0.0
    %2424 = vmatprep.subr.mxu0 0.0
    %2425 = vmatpush1.msra.mxu0 0.0
    %2426 = vmatprep.subr.mxu0 0.0
    %2427 = vmatpush1.msra.mxu0 0.0
    %2428 = vmatprep.subr.mxu0 0.0
    %2429 = vmatpush1.msra.mxu0 0.0
    %2430 = vmatprep.subr.mxu0 0.0
    %2431 = vmatpush1.msra.mxu0 0.0
    %2432 = vmatprep.subr.mxu0 0.0
    %2433 = vmatpush1.msra.mxu0 0.0
    %2434 = vmatprep.subr.mxu0 0.0
    %2435 = vmatpush1.msra.mxu0 0.0
    %2436 = vmatprep.subr.mxu0 0.0
    %2437 = vmatpush1.msra.mxu0 0.0
    %2438 = vmatprep.subr.mxu0 0.0
    %2439 = vmatpush1.msra.mxu0 0.0
    %2440 = vmatprep.subr.mxu0 0.0
    %2441 = vmatpush1.msra.mxu0 0.0
    %2442 = vmatprep.subr.mxu0 0.0
    %2443 = vmatpush1.msra.mxu0 0.0
    %2444 = vmatprep.mubr.f32.mxu0 0.0
    %2445 = vmatmul.mubr.f32.gmra.mrb[0].mxu0 %v2378
    %v2446 = vpop.f32.mrb[0].mxu0
    %v2447 = vadd.f32 0.0, %v2446
    %v2448 = vpop.f32.mrb[0].mxu0
    %2449 = vdwg.mxu0
    %2450 = vrot.lane.b32.xlu0 %v1952, 118
    %v2451 = vpop.permute.xlu0 %2450
    %2452 = vrot.lane.b32.xlu0 %v2034, 118
    %v2453 = vpop.permute.xlu0 %2452
    %v2454 = vsel %vm472, %v2451, 0
    %v2456 = vsel %vm472, %v2453, 0
    %2458 = vmatprep.subr.mxu0 0.0
    %2459 = vmatpush1.xpose.msra.mxu0 %v2456
    %2460 = vmatprep.subr.mxu0 0.0
    %2461 = vmatpush1.xpose.msra.mxu0 0.0
    %2462 = vmatprep.subr.mxu0 0.0
    %2463 = vmatpush1.xpose.msra.mxu0 0.0
    %2464 = vmatprep.subr.mxu0 0.0
    %2465 = vmatpush1.xpose.msra.mxu0 0.0
    %2466 = vmatprep.subr.mxu0 0.0
    %2467 = vmatpush1.xpose.msra.mxu0 0.0
    %2468 = vmatprep.subr.mxu0 0.0
    %2469 = vmatpush1.xpose.msra.mxu0 0.0
    %2470 = vmatprep.subr.mxu0 0.0
    %2471 = vmatpush1.xpose.msra.mxu0 0.0
    %2472 = vmatprep.subr.mxu0 0.0
    %2473 = vmatpush1.xpose.msra.mxu0 0.0
    %2474 = vmatprep.subr.mxu0 0.0
    %2475 = vmatpush1.xpose.msra.mxu0 0.0
    %2476 = vmatprep.subr.mxu0 0.0
    %2477 = vmatpush1.xpose.msra.mxu0 0.0
    %2478 = vmatprep.subr.mxu0 0.0
    %2479 = vmatpush1.xpose.msra.mxu0 0.0
    %2480 = vmatprep.subr.mxu0 0.0
    %2481 = vmatpush1.xpose.msra.mxu0 0.0
    %2482 = vmatprep.subr.mxu0 0.0
    %2483 = vmatpush1.xpose.msra.mxu0 0.0
    %2484 = vmatprep.subr.mxu0 0.0
    %2485 = vmatpush1.xpose.msra.mxu0 0.0
    %2486 = vmatprep.subr.mxu0 0.0
    %2487 = vmatpush1.xpose.msra.mxu0 0.0
    %2488 = vmatprep.subr.mxu0 0.0
    %2489 = vmatpush1.xpose.msra.mxu0 0.0
    %2490 = vmatprep.subr.mxu0 0.0
    %2491 = vmatpush1.xpose.msra.mxu0 0.0
    %2492 = vmatprep.subr.mxu0 0.0
    %2493 = vmatpush1.xpose.msra.mxu0 0.0
    %2494 = vmatprep.subr.mxu0 0.0
    %2495 = vmatpush1.xpose.msra.mxu0 0.0
    %2496 = vmatprep.subr.mxu0 0.0
    %2497 = vmatpush1.xpose.msra.mxu0 0.0
    %2498 = vmatprep.subr.mxu0 0.0
    %2499 = vmatpush1.xpose.msra.mxu0 0.0
    %2500 = vmatprep.subr.mxu0 0.0
    %2501 = vmatpush1.xpose.msra.mxu0 0.0
    %2502 = vmatprep.subr.mxu0 0.0
    %2503 = vmatpush1.xpose.msra.mxu0 0.0
    %2504 = vmatprep.subr.mxu0 0.0
    %2505 = vmatpush1.xpose.msra.mxu0 0.0
    %2506 = vmatprep.subr.mxu0 0.0
    %2507 = vmatpush1.xpose.msra.mxu0 0.0
    %2508 = vmatprep.subr.mxu0 0.0
    %2509 = vmatpush1.xpose.msra.mxu0 0.0
    %2510 = vmatprep.subr.mxu0 0.0
    %2511 = vmatpush1.xpose.msra.mxu0 0.0
    %2512 = vmatprep.subr.mxu0 0.0
    %2513 = vmatpush1.xpose.msra.mxu0 0.0
    %2514 = vmatprep.subr.mxu0 0.0
    %2515 = vmatpush1.xpose.msra.mxu0 0.0
    %2516 = vmatprep.subr.mxu0 0.0
    %2517 = vmatpush1.xpose.msra.mxu0 0.0
    %2518 = vmatprep.subr.mxu0 0.0
    %2519 = vmatpush1.xpose.msra.mxu0 0.0
    %2520 = vmatprep.subr.mxu0 0.0
    %2521 = vmatpush1.xpose.msra.mxu0 0.0
    %2522 = vmatprep.mubr.f32.mxu0 0.0
    %2523 = vmatmul.mubr.f32.gmra.mrb[0].mxu0 %v2454
    %v2524 = vpop.f32.mrb[0].mxu0
    %v2525 = vadd.f32 0.0, %v2524
    %v2526 = vpop.f32.mrb[0].mxu0
    %2527 = vdwg.mxu0
    %2528 = vrot.lane.b32.xlu0 %v1953, 118
    %v2529 = vpop.permute.xlu0 %2528
    %2530 = vrot.lane.b32.xlu0 %v2039, 118
    %v2531 = vpop.permute.xlu0 %2530
    %v2532 = vsel %vm472, %v2529, 0
    %v2534 = vsel %vm472, %v2531, 0
    %2536 = vmatprep.subr.mxu0 0.0
    %2537 = vmatpush1.xpose.msra.mxu0 %v2534
    %2538 = vmatprep.subr.mxu0 0.0
    %2539 = vmatpush1.xpose.msra.mxu0 0.0
    %2540 = vmatprep.subr.mxu0 0.0
    %2541 = vmatpush1.xpose.msra.mxu0 0.0
    %2542 = vmatprep.subr.mxu0 0.0
    %2543 = vmatpush1.xpose.msra.mxu0 0.0
    %2544 = vmatprep.subr.mxu0 0.0
    %2545 = vmatpush1.xpose.msra.mxu0 0.0
    %2546 = vmatprep.subr.mxu0 0.0
    %2547 = vmatpush1.xpose.msra.mxu0 0.0
    %2548 = vmatprep.subr.mxu0 0.0
    %2549 = vmatpush1.xpose.msra.mxu0 0.0
    %2550 = vmatprep.subr.mxu0 0.0
    %2551 = vmatpush1.xpose.msra.mxu0 0.0
    %2552 = vmatprep.subr.mxu0 0.0
    %2553 = vmatpush1.xpose.msra.mxu0 0.0
    %2554 = vmatprep.subr.mxu0 0.0
    %2555 = vmatpush1.xpose.msra.mxu0 0.0
    %2556 = vmatprep.subr.mxu0 0.0
    %2557 = vmatpush1.xpose.msra.mxu0 0.0
    %2558 = vmatprep.subr.mxu0 0.0
    %2559 = vmatpush1.xpose.msra.mxu0 0.0
    %2560 = vmatprep.subr.mxu0 0.0
    %2561 = vmatpush1.xpose.msra.mxu0 0.0
    %2562 = vmatprep.subr.mxu0 0.0
    %2563 = vmatpush1.xpose.msra.mxu0 0.0
    %2564 = vmatprep.subr.mxu0 0.0
    %2565 = vmatpush1.xpose.msra.mxu0 0.0
    %2566 = vmatprep.subr.mxu0 0.0
    %2567 = vmatpush1.xpose.msra.mxu0 0.0
    %2568 = vmatprep.subr.mxu0 0.0
    %2569 = vmatpush1.xpose.msra.mxu0 0.0
    %2570 = vmatprep.subr.mxu0 0.0
    %2571 = vmatpush1.xpose.msra.mxu0 0.0
    %2572 = vmatprep.subr.mxu0 0.0
    %2573 = vmatpush1.xpose.msra.mxu0 0.0
    %2574 = vmatprep.subr.mxu0 0.0
    %2575 = vmatpush1.xpose.msra.mxu0 0.0
    %2576 = vmatprep.subr.mxu0 0.0
    %2577 = vmatpush1.xpose.msra.mxu0 0.0
    %2578 = vmatprep.subr.mxu0 0.0
    %2579 = vmatpush1.xpose.msra.mxu0 0.0
    %2580 = vmatprep.subr.mxu0 0.0
    %2581 = vmatpush1.xpose.msra.mxu0 0.0
    %2582 = vmatprep.subr.mxu0 0.0
    %2583 = vmatpush1.xpose.msra.mxu0 0.0
    %2584 = vmatprep.subr.mxu0 0.0
    %2585 = vmatpush1.xpose.msra.mxu0 0.0
    %2586 = vmatprep.subr.mxu0 0.0
    %2587 = vmatpush1.xpose.msra.mxu0 0.0
    %2588 = vmatprep.subr.mxu0 0.0
    %2589 = vmatpush1.xpose.msra.mxu0 0.0
    %2590 = vmatprep.subr.mxu0 0.0
    %2591 = vmatpush1.xpose.msra.mxu0 0.0
    %2592 = vmatprep.subr.mxu0 0.0
    %2593 = vmatpush1.xpose.msra.mxu0 0.0
    %2594 = vmatprep.subr.mxu0 0.0
    %2595 = vmatpush1.xpose.msra.mxu0 0.0
    %2596 = vmatprep.subr.mxu0 0.0
    %2597 = vmatpush1.xpose.msra.mxu0 0.0
    %2598 = vmatprep.subr.mxu0 0.0
    %2599 = vmatpush1.xpose.msra.mxu0 0.0
    %2600 = vmatprep.mubr.f32.mxu0 0.0
    %2601 = vmatmul.mubr.f32.gmra.mrb[0].mxu0 %v2532
    %v2602 = vpop.f32.mrb[0].mxu0
    %v2603 = vadd.f32 0.0, %v2602
    %v2604 = vpop.f32.mrb[0].mxu0
    %2605 = vdwg.mxu0
    %v2606 = vsel %vm625, %v2525, -inf
    %2607 = vmax.xlane.f32.xlu0 %v2606
    %v2608 = vpop.xlane.xlu0 %2607
    %v2609 = vsel %vm625, %v2603, -inf
    %2610 = vmax.xlane.f32.xlu0 %v2609
    %v2611 = vpop.xlane.xlu0 %2610
    %v2612 = vsub.f32 %v2525, %v2608
    %v2613 = vsub.f32 %v2603, %v2611
    %v2614 = vmul.f32 %v2612, 1.442695
    %v2615 = vpow.pop %v2614
    %v2616 = vmul.f32 %v2613, 1.442695
    %v2617 = vpow.pop %v2616
    %v2618 = vsel %vm625, %v2615, 0.0
    %2619 = vadd.xlane.f32.xlu0 %v2618
    %v2620 = vpop.xlane.xlu0 %2619
    %v2621 = vsel %vm625, %v2617, 0.0
    %2622 = vadd.xlane.f32.xlu0 %v2621
    %v2623 = vpop.xlane.xlu0 %2622
    %v2624 = vrcp.pop %v2620
    %v2625 = vrcp.pop %v2623
    %v2626 = vmul.f32 %v2615, %v2624
    %v2627 = vmul.f32 %v2617, %v2625
    %2629 = vrot.lane.b32.xlu0 %v2122, 118
    %v2630 = vpop.permute.xlu0 %2629
    %v2633 = vsel %vm625, %v2626, 0
    %2635 = vmatprep.subr.mxu0 0.0
    %2636 = vmatpush1.msra.mxu0 %v2630
    %2637 = vmatprep.subr.mxu0 0.0
    %2638 = vmatpush1.msra.mxu0 0.0
    %2639 = vmatprep.subr.mxu0 0.0
    %2640 = vmatpush1.msra.mxu0 0.0
    %2641 = vmatprep.subr.mxu0 0.0
    %2642 = vmatpush1.msra.mxu0 0.0
    %2643 = vmatprep.subr.mxu0 0.0
    %2644 = vmatpush1.msra.mxu0 0.0
    %2645 = vmatprep.subr.mxu0 0.0
    %2646 = vmatpush1.msra.mxu0 0.0
    %2647 = vmatprep.subr.mxu0 0.0
    %2648 = vmatpush1.msra.mxu0 0.0
    %2649 = vmatprep.subr.mxu0 0.0
    %2650 = vmatpush1.msra.mxu0 0.0
    %2651 = vmatprep.subr.mxu0 0.0
    %2652 = vmatpush1.msra.mxu0 0.0
    %2653 = vmatprep.subr.mxu0 0.0
    %2654 = vmatpush1.msra.mxu0 0.0
    %2655 = vmatprep.subr.mxu0 0.0
    %2656 = vmatpush1.msra.mxu0 0.0
    %2657 = vmatprep.subr.mxu0 0.0
    %2658 = vmatpush1.msra.mxu0 0.0
    %2659 = vmatprep.subr.mxu0 0.0
    %2660 = vmatpush1.msra.mxu0 0.0
    %2661 = vmatprep.subr.mxu0 0.0
    %2662 = vmatpush1.msra.mxu0 0.0
    %2663 = vmatprep.subr.mxu0 0.0
    %2664 = vmatpush1.msra.mxu0 0.0
    %2665 = vmatprep.subr.mxu0 0.0
    %2666 = vmatpush1.msra.mxu0 0.0
    %2667 = vmatprep.subr.mxu0 0.0
    %2668 = vmatpush1.msra.mxu0 0.0
    %2669 = vmatprep.subr.mxu0 0.0
    %2670 = vmatpush1.msra.mxu0 0.0
    %2671 = vmatprep.subr.mxu0 0.0
    %2672 = vmatpush1.msra.mxu0 0.0
    %2673 = vmatprep.subr.mxu0 0.0
    %2674 = vmatpush1.msra.mxu0 0.0
    %2675 = vmatprep.subr.mxu0 0.0
    %2676 = vmatpush1.msra.mxu0 0.0
    %2677 = vmatprep.subr.mxu0 0.0
    %2678 = vmatpush1.msra.mxu0 0.0
    %2679 = vmatprep.subr.mxu0 0.0
    %2680 = vmatpush1.msra.mxu0 0.0
    %2681 = vmatprep.subr.mxu0 0.0
    %2682 = vmatpush1.msra.mxu0 0.0
    %2683 = vmatprep.subr.mxu0 0.0
    %2684 = vmatpush1.msra.mxu0 0.0
    %2685 = vmatprep.subr.mxu0 0.0
    %2686 = vmatpush1.msra.mxu0 0.0
    %2687 = vmatprep.subr.mxu0 0.0
    %2688 = vmatpush1.msra.mxu0 0.0
    %2689 = vmatprep.subr.mxu0 0.0
    %2690 = vmatpush1.msra.mxu0 0.0
    %2691 = vmatprep.subr.mxu0 0.0
    %2692 = vmatpush1.msra.mxu0 0.0
    %2693 = vmatprep.subr.mxu0 0.0
    %2694 = vmatpush1.msra.mxu0 0.0
    %2695 = vmatprep.subr.mxu0 0.0
    %2696 = vmatpush1.msra.mxu0 0.0
    %2697 = vmatprep.subr.mxu0 0.0
    %2698 = vmatpush1.msra.mxu0 0.0
    %2699 = vmatprep.mubr.f32.mxu0 0.0
    %2700 = vmatmul.mubr.f32.gmra.mrb[0].mxu0 %v2633
    %v2701 = vpop.f32.mrb[0].mxu0
    %v2702 = vadd.f32 0.0, %v2701
    %v2703 = vpop.f32.mrb[0].mxu0
    %2704 = vdwg.mxu0
    %2706 = vrot.lane.b32.xlu0 %v2127, 118
    %v2707 = vpop.permute.xlu0 %2706
    %v2710 = vsel %vm625, %v2627, 0
    %2712 = vmatprep.subr.mxu0 0.0
    %2713 = vmatpush1.msra.mxu0 %v2707
    %2714 = vmatprep.subr.mxu0 0.0
    %2715 = vmatpush1.msra.mxu0 0.0
    %2716 = vmatprep.subr.mxu0 0.0
    %2717 = vmatpush1.msra.mxu0 0.0
    %2718 = vmatprep.subr.mxu0 0.0
    %2719 = vmatpush1.msra.mxu0 0.0
    %2720 = vmatprep.subr.mxu0 0.0
    %2721 = vmatpush1.msra.mxu0 0.0
    %2722 = vmatprep.subr.mxu0 0.0
    %2723 = vmatpush1.msra.mxu0 0.0
    %2724 = vmatprep.subr.mxu0 0.0
    %2725 = vmatpush1.msra.mxu0 0.0
    %2726 = vmatprep.subr.mxu0 0.0
    %2727 = vmatpush1.msra.mxu0 0.0
    %2728 = vmatprep.subr.mxu0 0.0
    %2729 = vmatpush1.msra.mxu0 0.0
    %2730 = vmatprep.subr.mxu0 0.0
    %2731 = vmatpush1.msra.mxu0 0.0
    %2732 = vmatprep.subr.mxu0 0.0
    %2733 = vmatpush1.msra.mxu0 0.0
    %2734 = vmatprep.subr.mxu0 0.0
    %2735 = vmatpush1.msra.mxu0 0.0
    %2736 = vmatprep.subr.mxu0 0.0
    %2737 = vmatpush1.msra.mxu0 0.0
    %2738 = vmatprep.subr.mxu0 0.0
    %2739 = vmatpush1.msra.mxu0 0.0
    %2740 = vmatprep.subr.mxu0 0.0
    %2741 = vmatpush1.msra.mxu0 0.0
    %2742 = vmatprep.subr.mxu0 0.0
    %2743 = vmatpush1.msra.mxu0 0.0
    %2744 = vmatprep.subr.mxu0 0.0
    %2745 = vmatpush1.msra.mxu0 0.0
    %2746 = vmatprep.subr.mxu0 0.0
    %2747 = vmatpush1.msra.mxu0 0.0
    %2748 = vmatprep.subr.mxu0 0.0
    %2749 = vmatpush1.msra.mxu0 0.0
    %2750 = vmatprep.subr.mxu0 0.0
    %2751 = vmatpush1.msra.mxu0 0.0
    %2752 = vmatprep.subr.mxu0 0.0
    %2753 = vmatpush1.msra.mxu0 0.0
    %2754 = vmatprep.subr.mxu0 0.0
    %2755 = vmatpush1.msra.mxu0 0.0
    %2756 = vmatprep.subr.mxu0 0.0
    %2757 = vmatpush1.msra.mxu0 0.0
    %2758 = vmatprep.subr.mxu0 0.0
    %2759 = vmatpush1.msra.mxu0 0.0
    %2760 = vmatprep.subr.mxu0 0.0
    %2761 = vmatpush1.msra.mxu0 0.0
    %2762 = vmatprep.subr.mxu0 0.0
    %2763 = vmatpush1.msra.mxu0 0.0
    %2764 = vmatprep.subr.mxu0 0.0
    %2765 = vmatpush1.msra.mxu0 0.0
    %2766 = vmatprep.subr.mxu0 0.0
    %2767 = vmatpush1.msra.mxu0 0.0
    %2768 = vmatprep.subr.mxu0 0.0
    %2769 = vmatpush1.msra.mxu0 0.0
    %2770 = vmatprep.subr.mxu0 0.0
    %2771 = vmatpush1.msra.mxu0 0.0
    %2772 = vmatprep.subr.mxu0 0.0
    %2773 = vmatpush1.msra.mxu0 0.0
    %2774 = vmatprep.subr.mxu0 0.0
    %2775 = vmatpush1.msra.mxu0 0.0
    %2776 = vmatprep.mubr.f32.mxu0 0.0
    %2777 = vmatmul.mubr.f32.gmra.mrb[0].mxu0 %v2710
    %v2778 = vpop.f32.mrb[0].mxu0
    %v2779 = vadd.f32 0.0, %v2778
    %v2780 = vpop.f32.mrb[0].mxu0
    %2781 = vdwg.mxu0
    %2782 = vrot.lane.b32.xlu0 %v1952, 108
    %v2783 = vpop.permute.xlu0 %2782
    %2784 = vrot.lane.b32.xlu0 %v2034, 108
    %v2785 = vpop.permute.xlu0 %2784
    %v2786 = vsel %vm472, %v2783, 0
    %v2788 = vsel %vm472, %v2785, 0
    %2790 = vmatprep.subr.mxu0 0.0
    %2791 = vmatpush1.xpose.msra.mxu0 %v2788
    %2792 = vmatprep.subr.mxu0 0.0
    %2793 = vmatpush1.xpose.msra.mxu0 0.0
    %2794 = vmatprep.subr.mxu0 0.0
    %2795 = vmatpush1.xpose.msra.mxu0 0.0
    %2796 = vmatprep.subr.mxu0 0.0
    %2797 = vmatpush1.xpose.msra.mxu0 0.0
    %2798 = vmatprep.subr.mxu0 0.0
    %2799 = vmatpush1.xpose.msra.mxu0 0.0
    %2800 = vmatprep.subr.mxu0 0.0
    %2801 = vmatpush1.xpose.msra.mxu0 0.0
    %2802 = vmatprep.subr.mxu0 0.0
    %2803 = vmatpush1.xpose.msra.mxu0 0.0
    %2804 = vmatprep.subr.mxu0 0.0
    %2805 = vmatpush1.xpose.msra.mxu0 0.0
    %2806 = vmatprep.subr.mxu0 0.0
    %2807 = vmatpush1.xpose.msra.mxu0 0.0
    %2808 = vmatprep.subr.mxu0 0.0
    %2809 = vmatpush1.xpose.msra.mxu0 0.0
    %2810 = vmatprep.subr.mxu0 0.0
    %2811 = vmatpush1.xpose.msra.mxu0 0.0
    %2812 = vmatprep.subr.mxu0 0.0
    %2813 = vmatpush1.xpose.msra.mxu0 0.0
    %2814 = vmatprep.subr.mxu0 0.0
    %2815 = vmatpush1.xpose.msra.mxu0 0.0
    %2816 = vmatprep.subr.mxu0 0.0
    %2817 = vmatpush1.xpose.msra.mxu0 0.0
    %2818 = vmatprep.subr.mxu0 0.0
    %2819 = vmatpush1.xpose.msra.mxu0 0.0
    %2820 = vmatprep.subr.mxu0 0.0
    %2821 = vmatpush1.xpose.msra.mxu0 0.0
    %2822 = vmatprep.subr.mxu0 0.0
    %2823 = vmatpush1.xpose.msra.mxu0 0.0
    %2824 = vmatprep.subr.mxu0 0.0
    %2825 = vmatpush1.xpose.msra.mxu0 0.0
    %2826 = vmatprep.subr.mxu0 0.0
    %2827 = vmatpush1.xpose.msra.mxu0 0.0
    %2828 = vmatprep.subr.mxu0 0.0
    %2829 = vmatpush1.xpose.msra.mxu0 0.0
    %2830 = vmatprep.subr.mxu0 0.0
    %2831 = vmatpush1.xpose.msra.mxu0 0.0
    %2832 = vmatprep.subr.mxu0 0.0
    %2833 = vmatpush1.xpose.msra.mxu0 0.0
    %2834 = vmatprep.subr.mxu0 0.0
    %2835 = vmatpush1.xpose.msra.mxu0 0.0
    %2836 = vmatprep.subr.mxu0 0.0
    %2837 = vmatpush1.xpose.msra.mxu0 0.0
    %2838 = vmatprep.subr.mxu0 0.0
    %2839 = vmatpush1.xpose.msra.mxu0 0.0
    %2840 = vmatprep.subr.mxu0 0.0
    %2841 = vmatpush1.xpose.msra.mxu0 0.0
    %2842 = vmatprep.subr.mxu0 0.0
    %2843 = vmatpush1.xpose.msra.mxu0 0.0
    %2844 = vmatprep.subr.mxu0 0.0
    %2845 = vmatpush1.xpose.msra.mxu0 0.0
    %2846 = vmatprep.subr.mxu0 0.0
    %2847 = vmatpush1.xpose.msra.mxu0 0.0
    %2848 = vmatprep.subr.mxu0 0.0
    %2849 = vmatpush1.xpose.msra.mxu0 0.0
    %2850 = vmatprep.subr.mxu0 0.0
    %2851 = vmatpush1.xpose.msra.mxu0 0.0
    %2852 = vmatprep.subr.mxu0 0.0
    %2853 = vmatpush1.xpose.msra.mxu0 0.0
    %2854 = vmatprep.mubr.f32.mxu0 0.0
    %2855 = vmatmul.mubr.f32.gmra.mrb[0].mxu0 %v2786
    %v2856 = vpop.f32.mrb[0].mxu0
    %v2857 = vadd.f32 0.0, %v2856
    %v2858 = vpop.f32.mrb[0].mxu0
    %2859 = vdwg.mxu0
    %2860 = vrot.lane.b32.xlu0 %v1953, 108
    %v2861 = vpop.permute.xlu0 %2860
    %2862 = vrot.lane.b32.xlu0 %v2039, 108
    %v2863 = vpop.permute.xlu0 %2862
    %v2864 = vsel %vm472, %v2861, 0
    %v2866 = vsel %vm472, %v2863, 0
    %2868 = vmatprep.subr.mxu0 0.0
    %2869 = vmatpush1.xpose.msra.mxu0 %v2866
    %2870 = vmatprep.subr.mxu0 0.0
    %2871 = vmatpush1.xpose.msra.mxu0 0.0
    %2872 = vmatprep.subr.mxu0 0.0
    %2873 = vmatpush1.xpose.msra.mxu0 0.0
    %2874 = vmatprep.subr.mxu0 0.0
    %2875 = vmatpush1.xpose.msra.mxu0 0.0
    %2876 = vmatprep.subr.mxu0 0.0
    %2877 = vmatpush1.xpose.msra.mxu0 0.0
    %2878 = vmatprep.subr.mxu0 0.0
    %2879 = vmatpush1.xpose.msra.mxu0 0.0
    %2880 = vmatprep.subr.mxu0 0.0
    %2881 = vmatpush1.xpose.msra.mxu0 0.0
    %2882 = vmatprep.subr.mxu0 0.0
    %2883 = vmatpush1.xpose.msra.mxu0 0.0
    %2884 = vmatprep.subr.mxu0 0.0
    %2885 = vmatpush1.xpose.msra.mxu0 0.0
    %2886 = vmatprep.subr.mxu0 0.0
    %2887 = vmatpush1.xpose.msra.mxu0 0.0
    %2888 = vmatprep.subr.mxu0 0.0
    %2889 = vmatpush1.xpose.msra.mxu0 0.0
    %2890 = vmatprep.subr.mxu0 0.0
    %2891 = vmatpush1.xpose.msra.mxu0 0.0
    %2892 = vmatprep.subr.mxu0 0.0
    %2893 = vmatpush1.xpose.msra.mxu0 0.0
    %2894 = vmatprep.subr.mxu0 0.0
    %2895 = vmatpush1.xpose.msra.mxu0 0.0
    %2896 = vmatprep.subr.mxu0 0.0
    %2897 = vmatpush1.xpose.msra.mxu0 0.0
    %2898 = vmatprep.subr.mxu0 0.0
    %2899 = vmatpush1.xpose.msra.mxu0 0.0
    %2900 = vmatprep.subr.mxu0 0.0
    %2901 = vmatpush1.xpose.msra.mxu0 0.0
    %2902 = vmatprep.subr.mxu0 0.0
    %2903 = vmatpush1.xpose.msra.mxu0 0.0
    %2904 = vmatprep.subr.mxu0 0.0
    %2905 = vmatpush1.xpose.msra.mxu0 0.0
    %2906 = vmatprep.subr.mxu0 0.0
    %2907 = vmatpush1.xpose.msra.mxu0 0.0
    %2908 = vmatprep.subr.mxu0 0.0
    %2909 = vmatpush1.xpose.msra.mxu0 0.0
    %2910 = vmatprep.subr.mxu0 0.0
    %2911 = vmatpush1.xpose.msra.mxu0 0.0
    %2912 = vmatprep.subr.mxu0 0.0
    %2913 = vmatpush1.xpose.msra.mxu0 0.0
    %2914 = vmatprep.subr.mxu0 0.0
    %2915 = vmatpush1.xpose.msra.mxu0 0.0
    %2916 = vmatprep.subr.mxu0 0.0
    %2917 = vmatpush1.xpose.msra.mxu0 0.0
    %2918 = vmatprep.subr.mxu0 0.0
    %2919 = vmatpush1.xpose.msra.mxu0 0.0
    %2920 = vmatprep.subr.mxu0 0.0
    %2921 = vmatpush1.xpose.msra.mxu0 0.0
    %2922 = vmatprep.subr.mxu0 0.0
    %2923 = vmatpush1.xpose.msra.mxu0 0.0
    %2924 = vmatprep.subr.mxu0 0.0
    %2925 = vmatpush1.xpose.msra.mxu0 0.0
    %2926 = vmatprep.subr.mxu0 0.0
    %2927 = vmatpush1.xpose.msra.mxu0 0.0
    %2928 = vmatprep.subr.mxu0 0.0
    %2929 = vmatpush1.xpose.msra.mxu0 0.0
    %2930 = vmatprep.subr.mxu0 0.0
    %2931 = vmatpush1.xpose.msra.mxu0 0.0
    %2932 = vmatprep.mubr.f32.mxu0 0.0
    %2933 = vmatmul.mubr.f32.gmra.mrb[0].mxu0 %v2864
    %v2934 = vpop.f32.mrb[0].mxu0
    %v2935 = vadd.f32 0.0, %v2934
    %v2936 = vpop.f32.mrb[0].mxu0
    %2937 = vdwg.mxu0
    %v2938 = vsel %vm625, %v2857, -inf
    %2939 = vmax.xlane.f32.xlu0 %v2938
    %v2940 = vpop.xlane.xlu0 %2939
    %v2941 = vsel %vm625, %v2935, -inf
    %2942 = vmax.xlane.f32.xlu0 %v2941
    %v2943 = vpop.xlane.xlu0 %2942
    %v2944 = vsub.f32 %v2857, %v2940
    %v2945 = vsub.f32 %v2935, %v2943
    %v2946 = vmul.f32 %v2944, 1.442695
    %v2947 = vpow.pop %v2946
    %v2948 = vmul.f32 %v2945, 1.442695
    %v2949 = vpow.pop %v2948
    %v2950 = vsel %vm625, %v2947, 0.0
    %2951 = vadd.xlane.f32.xlu0 %v2950
    %v2952 = vpop.xlane.xlu0 %2951
    %v2953 = vsel %vm625, %v2949, 0.0
    %2954 = vadd.xlane.f32.xlu0 %v2953
    %v2955 = vpop.xlane.xlu0 %2954
    %v2956 = vrcp.pop %v2952
    %v2957 = vrcp.pop %v2955
    %v2958 = vmul.f32 %v2947, %v2956
    %v2959 = vmul.f32 %v2949, %v2957
    %2960 = vrot.lane.b32.xlu0 %v2122, 108
    %v2961 = vpop.permute.xlu0 %2960
    %v2964 = vsel %vm625, %v2958, 0
    %2966 = vmatprep.subr.mxu0 0.0
    %2967 = vmatpush1.msra.mxu0 %v2961
    %2968 = vmatprep.subr.mxu0 0.0
    %2969 = vmatpush1.msra.mxu0 0.0
    %2970 = vmatprep.subr.mxu0 0.0
    %2971 = vmatpush1.msra.mxu0 0.0
    %2972 = vmatprep.subr.mxu0 0.0
    %2973 = vmatpush1.msra.mxu0 0.0
    %2974 = vmatprep.subr.mxu0 0.0
    %2975 = vmatpush1.msra.mxu0 0.0
    %2976 = vmatprep.subr.mxu0 0.0
    %2977 = vmatpush1.msra.mxu0 0.0
    %2978 = vmatprep.subr.mxu0 0.0
    %2979 = vmatpush1.msra.mxu0 0.0
    %2980 = vmatprep.subr.mxu0 0.0
    %2981 = vmatpush1.msra.mxu0 0.0
    %2982 = vmatprep.subr.mxu0 0.0
    %2983 = vmatpush1.msra.mxu0 0.0
    %2984 = vmatprep.subr.mxu0 0.0
    %2985 = vmatpush1.msra.mxu0 0.0
    %2986 = vmatprep.subr.mxu0 0.0
    %2987 = vmatpush1.msra.mxu0 0.0
    %2988 = vmatprep.subr.mxu0 0.0
    %2989 = vmatpush1.msra.mxu0 0.0
    %2990 = vmatprep.subr.mxu0 0.0
    %2991 = vmatpush1.msra.mxu0 0.0
    %2992 = vmatprep.subr.mxu0 0.0
    %2993 = vmatpush1.msra.mxu0 0.0
    %2994 = vmatprep.subr.mxu0 0.0
    %2995 = vmatpush1.msra.mxu0 0.0
    %2996 = vmatprep.subr.mxu0 0.0
    %2997 = vmatpush1.msra.mxu0 0.0
    %2998 = vmatprep.subr.mxu0 0.0
    %2999 = vmatpush1.msra.mxu0 0.0
    %3000 = vmatprep.subr.mxu0 0.0
    %3001 = vmatpush1.msra.mxu0 0.0
    %3002 = vmatprep.subr.mxu0 0.0
    %3003 = vmatpush1.msra.mxu0 0.0
    %3004 = vmatprep.subr.mxu0 0.0
    %3005 = vmatpush1.msra.mxu0 0.0
    %3006 = vmatprep.subr.mxu0 0.0
    %3007 = vmatpush1.msra.mxu0 0.0
    %3008 = vmatprep.subr.mxu0 0.0
    %3009 = vmatpush1.msra.mxu0 0.0
    %3010 = vmatprep.subr.mxu0 0.0
    %3011 = vmatpush1.msra.mxu0 0.0
    %3012 = vmatprep.subr.mxu0 0.0
    %3013 = vmatpush1.msra.mxu0 0.0
    %3014 = vmatprep.subr.mxu0 0.0
    %3015 = vmatpush1.msra.mxu0 0.0
    %3016 = vmatprep.subr.mxu0 0.0
    %3017 = vmatpush1.msra.mxu0 0.0
    %3018 = vmatprep.subr.mxu0 0.0
    %3019 = vmatpush1.msra.mxu0 0.0
    %3020 = vmatprep.subr.mxu0 0.0
    %3021 = vmatpush1.msra.mxu0 0.0
    %3022 = vmatprep.subr.mxu0 0.0
    %3023 = vmatpush1.msra.mxu0 0.0
    %3024 = vmatprep.subr.mxu0 0.0
    %3025 = vmatpush1.msra.mxu0 0.0
    %3026 = vmatprep.subr.mxu0 0.0
    %3027 = vmatpush1.msra.mxu0 0.0
    %3028 = vmatprep.subr.mxu0 0.0
    %3029 = vmatpush1.msra.mxu0 0.0
    %3030 = vmatprep.mubr.f32.mxu0 0.0
    %3031 = vmatmul.mubr.f32.gmra.mrb[0].mxu0 %v2964
    %v3032 = vpop.f32.mrb[0].mxu0
    %v3033 = vadd.f32 0.0, %v3032
    %v3034 = vpop.f32.mrb[0].mxu0
    %3035 = vdwg.mxu0
    %3036 = vrot.lane.b32.xlu0 %v2127, 108
    %v3037 = vpop.permute.xlu0 %3036
    %v3040 = vsel %vm625, %v2959, 0
    %3042 = vmatprep.subr.mxu0 0.0
    %3043 = vmatpush1.msra.mxu0 %v3037
    %3044 = vmatprep.subr.mxu0 0.0
    %3045 = vmatpush1.msra.mxu0 0.0
    %3046 = vmatprep.subr.mxu0 0.0
    %3047 = vmatpush1.msra.mxu0 0.0
    %3048 = vmatprep.subr.mxu0 0.0
    %3049 = vmatpush1.msra.mxu0 0.0
    %3050 = vmatprep.subr.mxu0 0.0
    %3051 = vmatpush1.msra.mxu0 0.0
    %3052 = vmatprep.subr.mxu0 0.0
    %3053 = vmatpush1.msra.mxu0 0.0
    %3054 = vmatprep.subr.mxu0 0.0
    %3055 = vmatpush1.msra.mxu0 0.0
    %3056 = vmatprep.subr.mxu0 0.0
    %3057 = vmatpush1.msra.mxu0 0.0
    %3058 = vmatprep.subr.mxu0 0.0
    %3059 = vmatpush1.msra.mxu0 0.0
    %3060 = vmatprep.subr.mxu0 0.0
    %3061 = vmatpush1.msra.mxu0 0.0
    %3062 = vmatprep.subr.mxu0 0.0
    %3063 = vmatpush1.msra.mxu0 0.0
    %3064 = vmatprep.subr.mxu0 0.0
    %3065 = vmatpush1.msra.mxu0 0.0
    %3066 = vmatprep.subr.mxu0 0.0
    %3067 = vmatpush1.msra.mxu0 0.0
    %3068 = vmatprep.subr.mxu0 0.0
    %3069 = vmatpush1.msra.mxu0 0.0
    %3070 = vmatprep.subr.mxu0 0.0
    %3071 = vmatpush1.msra.mxu0 0.0
    %3072 = vmatprep.subr.mxu0 0.0
    %3073 = vmatpush1.msra.mxu0 0.0
    %3074 = vmatprep.subr.mxu0 0.0
    %3075 = vmatpush1.msra.mxu0 0.0
    %3076 = vmatprep.subr.mxu0 0.0
    %3077 = vmatpush1.msra.mxu0 0.0
    %3078 = vmatprep.subr.mxu0 0.0
    %3079 = vmatpush1.msra.mxu0 0.0
    %3080 = vmatprep.subr.mxu0 0.0
    %3081 = vmatpush1.msra.mxu0 0.0
    %3082 = vmatprep.subr.mxu0 0.0
    %3083 = vmatpush1.msra.mxu0 0.0
    %3084 = vmatprep.subr.mxu0 0.0
    %3085 = vmatpush1.msra.mxu0 0.0
    %3086 = vmatprep.subr.mxu0 0.0
    %3087 = vmatpush1.msra.mxu0 0.0
    %3088 = vmatprep.subr.mxu0 0.0
    %3089 = vmatpush1.msra.mxu0 0.0
    %3090 = vmatprep.subr.mxu0 0.0
    %3091 = vmatpush1.msra.mxu0 0.0
    %3092 = vmatprep.subr.mxu0 0.0
    %3093 = vmatpush1.msra.mxu0 0.0
    %3094 = vmatprep.subr.mxu0 0.0
    %3095 = vmatpush1.msra.mxu0 0.0
    %3096 = vmatprep.subr.mxu0 0.0
    %3097 = vmatpush1.msra.mxu0 0.0
    %3098 = vmatprep.subr.mxu0 0.0
    %3099 = vmatpush1.msra.mxu0 0.0
    %3100 = vmatprep.subr.mxu0 0.0
    %3101 = vmatpush1.msra.mxu0 0.0
    %3102 = vmatprep.subr.mxu0 0.0
    %3103 = vmatpush1.msra.mxu0 0.0
    %3104 = vmatprep.subr.mxu0 0.0
    %3105 = vmatpush1.msra.mxu0 0.0
    %3106 = vmatprep.mubr.f32.mxu0 0.0
    %3107 = vmatmul.mubr.f32.gmra.mrb[0].mxu0 %v3040
    %v3108 = vpop.f32.mrb[0].mxu0
    %v3109 = vadd.f32 0.0, %v3108
    %v3110 = vpop.f32.mrb[0].mxu0
    %3111 = vdwg.mxu0
    %3114 = vrot.lane.b32.xlu0 %v2702, 10
    %v3115 = vpop.permute.xlu0 %3114
    %3116 = vrot.lane.b32.xlu0 %v2779, 10
    %v3117 = vpop.permute.xlu0 %3116
    %3122 = vrot.lane.b32.xlu0 %v3033, 20
    %v3123 = vpop.permute.xlu0 %3122
    %3124 = vrot.lane.b32.xlu0 %v3109, 20
    %v3125 = vpop.permute.xlu0 %3124
    %v3128 = vsel %vm472, %v2374, %v3115
    %v3129 = vsel %vm472, %v2447, %v3117
    %v3130 = vsel %vm1474, %v3128, %v3123
    %v3131 = vsel %vm1474, %v3129, %v3125
    %s3132 = scalar_lea.vmem [#allocation5], 32
    %v3133 = vld [vmem:[%s3132] sm:$0xff]
    %v3134 = vld [vmem:[%s3132 + $0x8] sm:$0xff]
    %v3135 = vld [vmem:[%s3132 + $0x10] sm:$0xff]
    %v3136 = vld [vmem:[%s3132 + $0x18] sm:$0x3f]
    %s3137 = scalar_lea.vmem %s11, 1
    %v3138 = vld [vmem:[%s3137] sm:$0x1]
    %v3140 = vlaneseq
    %v3141 = vshrl.u32 %v3140, 7
    %v3142 = vsub.s32 0, %v3141
    %v3143 = vrot.slane %v3138, %v3142
    %v3146 = vsel %vm1488, %v3130, 0
    %v3149 = vsel %vm1488, %v3131, 0
    %v3152 = vsel %vm1495, %v3136, 0
    %3154 = vmatprep.subr.mxu0 0.0
    %3155 = vmatpush1.msra.mxu0 %v3133
    %3156 = vmatprep.subr.mxu0 0.0
    %3157 = vmatpush1.msra.mxu0 %v3134
    %3158 = vmatprep.subr.mxu0 0.0
    %3159 = vmatpush1.msra.mxu0 %v3135
    %3160 = vmatprep.subr.mxu0 0.0
    %3161 = vmatpush1.msra.mxu0 %v3152
    %3162 = vmatprep.subr.mxu0 0.0
    %3163 = vmatpush1.msra.mxu0 0.0
    %3164 = vmatprep.subr.mxu0 0.0
    %3165 = vmatpush1.msra.mxu0 0.0
    %3166 = vmatprep.subr.mxu0 0.0
    %3167 = vmatpush1.msra.mxu0 0.0
    %3168 = vmatprep.subr.mxu0 0.0
    %3169 = vmatpush1.msra.mxu0 0.0
    %3170 = vmatprep.subr.mxu0 0.0
    %3171 = vmatpush1.msra.mxu0 0.0
    %3172 = vmatprep.subr.mxu0 0.0
    %3173 = vmatpush1.msra.mxu0 0.0
    %3174 = vmatprep.subr.mxu0 0.0
    %3175 = vmatpush1.msra.mxu0 0.0
    %3176 = vmatprep.subr.mxu0 0.0
    %3177 = vmatpush1.msra.mxu0 0.0
    %3178 = vmatprep.subr.mxu0 0.0
    %3179 = vmatpush1.msra.mxu0 0.0
    %3180 = vmatprep.subr.mxu0 0.0
    %3181 = vmatpush1.msra.mxu0 0.0
    %3182 = vmatprep.subr.mxu0 0.0
    %3183 = vmatpush1.msra.mxu0 0.0
    %3184 = vmatprep.subr.mxu0 0.0
    %3185 = vmatpush1.msra.mxu0 0.0
    %3186 = vmatprep.subr.mxu0 0.0
    %3187 = vmatpush1.msra.mxu0 0.0
    %3188 = vmatprep.subr.mxu0 0.0
    %3189 = vmatpush1.msra.mxu0 0.0
    %3190 = vmatprep.subr.mxu0 0.0
    %3191 = vmatpush1.msra.mxu0 0.0
    %3192 = vmatprep.subr.mxu0 0.0
    %3193 = vmatpush1.msra.mxu0 0.0
    %3194 = vmatprep.subr.mxu0 0.0
    %3195 = vmatpush1.msra.mxu0 0.0
    %3196 = vmatprep.subr.mxu0 0.0
    %3197 = vmatpush1.msra.mxu0 0.0
    %3198 = vmatprep.subr.mxu0 0.0
    %3199 = vmatpush1.msra.mxu0 0.0
    %3200 = vmatprep.subr.mxu0 0.0
    %3201 = vmatpush1.msra.mxu0 0.0
    %3202 = vmatprep.subr.mxu0 0.0
    %3203 = vmatpush1.msra.mxu0 0.0
    %3204 = vmatprep.subr.mxu0 0.0
    %3205 = vmatpush1.msra.mxu0 0.0
    %3206 = vmatprep.subr.mxu0 0.0
    %3207 = vmatpush1.msra.mxu0 0.0
    %3208 = vmatprep.subr.mxu0 0.0
    %3209 = vmatpush1.msra.mxu0 0.0
    %3210 = vmatprep.subr.mxu0 0.0
    %3211 = vmatpush1.msra.mxu0 0.0
    %3212 = vmatprep.subr.mxu0 0.0
    %3213 = vmatpush1.msra.mxu0 0.0
    %3214 = vmatprep.subr.mxu0 0.0
    %3215 = vmatpush1.msra.mxu0 0.0
    %3216 = vmatprep.subr.mxu0 0.0
    %3217 = vmatpush1.msra.mxu0 0.0
    %3218 = vmatprep.mubr.f32.mxu0 0.0
    %3219 = vmatmul.mubr.f32.gmra.mrb[0].mxu0 %v3146
    %v3220 = vpop.f32.mrb[0].mxu0
    %v3221 = vadd.f32 %v3143, %v3220
    %v3222 = vpop.f32.mrb[0].mxu0
    %3223 = vmatprep.mubr.f32.mxu0 0.0
    %3224 = vmatmul.mubr.f32.gmra.mrb[0].mxu0 %v3149
    %v3225 = vpop.f32.mrb[0].mxu0
    %v3226 = vadd.f32 %v3143, %v3225
    %v3227 = vpop.f32.mrb[0].mxu0
    %3228 = vdwg.mxu0
    %v3229 = vadd.f32 %v1856, %v3221
    %v3230 = vadd.f32 %v1857, %v3226
    %s3231 = scalar_lea.vmem %s16, 1
    %v3232 = vld [vmem:[%s3231] sm:$0x1]
    %s3233 = scalar_lea.vmem %s17, 1
    %v3234 = vld [vmem:[%s3233] sm:$0x1]
    %v3235 = vsel %vm216, %v3229, 0.0
    %3236 = vadd.xlane.f32.xlu0 %v3235
    %v3237 = vpop.xlane.xlu0 %3236
    %v3238 = vsel %vm216, %v3230, 0.0
    %3239 = vadd.xlane.f32.xlu0 %v3238
    %v3240 = vpop.xlane.xlu0 %3239
    %v3241 = vmul.f32 %v3237, %v1584
    %v3242 = vmul.f32 %v3240, %v1584
    %v3243 = vsub.f32 %v3229, %v3241
    %v3244 = vsub.f32 %v3230, %v3242
    %v3245 = vmul.f32 %v3243, %v3243
    %v3246 = vmul.f32 %v3244, %v3244
    %v3247 = vsel %vm216, %v3245, 0.0
    %3248 = vadd.xlane.f32.xlu0 %v3247
    %v3249 = vpop.xlane.xlu0 %3248
    %v3250 = vsel %vm216, %v3246, 0.0
    %3251 = vadd.xlane.f32.xlu0 %v3250
    %v3252 = vpop.xlane.xlu0 %3251
    %v3253 = vmul.f32 %v3249, %v1584
    %v3254 = vmul.f32 %v3252, %v1584
    %v3255 = vadd.f32 %v3253, 1e-05
    %v3256 = vadd.f32 %v3254, 1e-05
    %v3257 = vrsqrt.pop %v3255
    %v3258 = vrsqrt.pop %v3256
    %v3259 = vmul.f32 %v3243, %v3257
    %v3260 = vmul.f32 %v3244, %v3258
    %v3262 = vlaneseq
    %v3263 = vshrl.u32 %v3262, 7
    %v3264 = vsub.s32 0, %v3263
    %v3265 = vrot.slane %v3232, %v3264
    %v3267 = vmul.f32 %v3259, %v3265
    %v3268 = vmul.f32 %v3260, %v3265
    %v3270 = vlaneseq
    %v3271 = vshrl.u32 %v3270, 7
    %v3272 = vsub.s32 0, %v3271
    %v3273 = vrot.slane %v3234, %v3272
    %v3275 = vadd.f32 %v3267, %v3273
    %v3276 = vadd.f32 %v3268, %v3273
    %s3277 = scalar_lea.vmem [#allocation7], 32
    %v3278 = vld [vmem:[%s3277] sm:$0xff]
    %v3279 = vld [vmem:[%s3277 + $0x8] sm:$0xff]
    %v3280 = vld [vmem:[%s3277 + $0x10] sm:$0xff]
    %v3281 = vld [vmem:[%s3277 + $0x18] sm:$0xff]
    %s3282 = scalar_lea.vmem %s13, 1
    %v3283 = vld [vmem:[%s3282] sm:$0x1]
    %v3285 = vlaneseq
    %v3286 = vshrl.u32 %v3285, 7
    %v3287 = vsub.s32 0, %v3286
    %v3288 = vrot.slane %v3283, %v3287
    %v3291 = vsel %vm216, %v3275, 0
    %v3294 = vsel %vm216, %v3276, 0
    %3296 = vmatprep.subr.mxu0 0.0
    %3297 = vmatpush1.msra.mxu0 %v3278
    %3298 = vmatprep.subr.mxu0 0.0
    %3299 = vmatpush1.msra.mxu0 %v3279
    %3300 = vmatprep.subr.mxu0 0.0
    %3301 = vmatpush1.msra.mxu0 %v3280
    %3302 = vmatprep.subr.mxu0 0.0
    %3303 = vmatpush1.msra.mxu0 %v3281
    %3304 = vmatprep.subr.mxu0 0.0
    %3305 = vmatpush1.msra.mxu0 0.0
    %3306 = vmatprep.subr.mxu0 0.0
    %3307 = vmatpush1.msra.mxu0 0.0
    %3308 = vmatprep.subr.mxu0 0.0
    %3309 = vmatpush1.msra.mxu0 0.0
    %3310 = vmatprep.subr.mxu0 0.0
    %3311 = vmatpush1.msra.mxu0 0.0
    %3312 = vmatprep.subr.mxu0 0.0
    %3313 = vmatpush1.msra.mxu0 0.0
    %3314 = vmatprep.subr.mxu0 0.0
    %3315 = vmatpush1.msra.mxu0 0.0
    %3316 = vmatprep.subr.mxu0 0.0
    %3317 = vmatpush1.msra.mxu0 0.0
    %3318 = vmatprep.subr.mxu0 0.0
    %3319 = vmatpush1.msra.mxu0 0.0
    %3320 = vmatprep.subr.mxu0 0.0
    %3321 = vmatpush1.msra.mxu0 0.0
    %3322 = vmatprep.subr.mxu0 0.0
    %3323 = vmatpush1.msra.mxu0 0.0
    %3324 = vmatprep.subr.mxu0 0.0
    %3325 = vmatpush1.msra.mxu0 0.0
    %3326 = vmatprep.subr.mxu0 0.0
    %3327 = vmatpush1.msra.mxu0 0.0
    %3328 = vmatprep.subr.mxu0 0.0
    %3329 = vmatpush1.msra.mxu0 0.0
    %3330 = vmatprep.subr.mxu0 0.0
    %3331 = vmatpush1.msra.mxu0 0.0
    %3332 = vmatprep.subr.mxu0 0.0
    %3333 = vmatpush1.msra.mxu0 0.0
    %3334 = vmatprep.subr.mxu0 0.0
    %3335 = vmatpush1.msra.mxu0 0.0
    %3336 = vmatprep.subr.mxu0 0.0
    %3337 = vmatpush1.msra.mxu0 0.0
    %3338 = vmatprep.subr.mxu0 0.0
    %3339 = vmatpush1.msra.mxu0 0.0
    %3340 = vmatprep.subr.mxu0 0.0
    %3341 = vmatpush1.msra.mxu0 0.0
    %3342 = vmatprep.subr.mxu0 0.0
    %3343 = vmatpush1.msra.mxu0 0.0
    %3344 = vmatprep.subr.mxu0 0.0
    %3345 = vmatpush1.msra.mxu0 0.0
    %3346 = vmatprep.subr.mxu0 0.0
    %3347 = vmatpush1.msra.mxu0 0.0
    %3348 = vmatprep.subr.mxu0 0.0
    %3349 = vmatpush1.msra.mxu0 0.0
    %3350 = vmatprep.subr.mxu0 0.0
    %3351 = vmatpush1.msra.mxu0 0.0
    %3352 = vmatprep.subr.mxu0 0.0
    %3353 = vmatpush1.msra.mxu0 0.0
    %3354 = vmatprep.subr.mxu0 0.0
    %3355 = vmatpush1.msra.mxu0 0.0
    %3356 = vmatprep.subr.mxu0 0.0
    %3357 = vmatpush1.msra.mxu0 0.0
    %3358 = vmatprep.subr.mxu0 0.0
    %3359 = vmatpush1.msra.mxu0 0.0
    %3360 = vmatprep.mubr.f32.mxu0 0.0
    %3361 = vmatmul.mubr.f32.gmra.mrb[0].mxu0 %v3291
    %v3362 = vpop.f32.mrb[0].mxu0
    %v3363 = vadd.f32 %v3288, %v3362
    %v3364 = vpop.f32.mrb[0].mxu0
    %3365 = vmatprep.mubr.f32.mxu0 0.0
    %3366 = vmatmul.mubr.f32.gmra.mrb[0].mxu0 %v3294
    %v3367 = vpop.f32.mrb[0].mxu0
    %v3368 = vadd.f32 %v3288, %v3367
    %v3369 = vpop.f32.mrb[0].mxu0
    %3370 = vdwg.mxu0
    %v3371 = vmax.f32 %v3363, 0.0
    %v3372 = vmax.f32 %v3368, 0.0
    %s3373 = scalar_lea.vmem %s14, 64
    %v3374 = vld [vmem:[%s3373] sm:$0xff]
    %v3375 = vld [vmem:[%s3373 + $0x8] sm:$0xff]
    %v3376 = vld [vmem:[%s3373 + $0x10] sm:$0xff]
    %v3377 = vld [vmem:[%s3373 + $0x18] sm:$0xff]
    %v3378 = vld [vmem:[%s3373 + $0x20] sm:$0xff]
    %v3379 = vld [vmem:[%s3373 + $0x28] sm:$0xff]
    %v3380 = vld [vmem:[%s3373 + $0x30] sm:$0xff]
    %v3381 = vld [vmem:[%s3373 + $0x38] sm:$0xff]
    %s3382 = scalar_lea.vmem %s15, 1
    %v3383 = vld [vmem:[%s3382] sm:$0x1]
    %v3385 = vlaneseq
    %v3386 = vshrl.u32 %v3385, 7
    %v3387 = vsub.s32 0, %v3386
    %v3388 = vrot.slane %v3383, %v3387
    %v3391 = vsel %vm1730, %v3371, 0
    %v3394 = vsel %vm1730, %v3372, 0
    %3396 = vmatprep.subr.mxu0 0.0
    %3397 = vmatpush1.msra.mxu0 %v3374
    %3398 = vmatprep.subr.mxu0 0.0
    %3399 = vmatpush1.msra.mxu0 %v3375
    %3400 = vmatprep.subr.mxu0 0.0
    %3401 = vmatpush1.msra.mxu0 %v3376
    %3402 = vmatprep.subr.mxu0 0.0
    %3403 = vmatpush1.msra.mxu0 %v3377
    %3404 = vmatprep.subr.mxu0 0.0
    %3405 = vmatpush1.msra.mxu0 %v3378
    %3406 = vmatprep.subr.mxu0 0.0
    %3407 = vmatpush1.msra.mxu0 %v3379
    %3408 = vmatprep.subr.mxu0 0.0
    %3409 = vmatpush1.msra.mxu0 %v3380
    %3410 = vmatprep.subr.mxu0 0.0
    %3411 = vmatpush1.msra.mxu0 %v3381
    %3412 = vmatprep.subr.mxu0 0.0
    %3413 = vmatpush1.msra.mxu0 0.0
    %3414 = vmatprep.subr.mxu0 0.0
    %3415 = vmatpush1.msra.mxu0 0.0
    %3416 = vmatprep.subr.mxu0 0.0
    %3417 = vmatpush1.msra.mxu0 0.0
    %3418 = vmatprep.subr.mxu0 0.0
    %3419 = vmatpush1.msra.mxu0 0.0
    %3420 = vmatprep.subr.mxu0 0.0
    %3421 = vmatpush1.msra.mxu0 0.0
    %3422 = vmatprep.subr.mxu0 0.0
    %3423 = vmatpush1.msra.mxu0 0.0
    %3424 = vmatprep.subr.mxu0 0.0
    %3425 = vmatpush1.msra.mxu0 0.0
    %3426 = vmatprep.subr.mxu0 0.0
    %3427 = vmatpush1.msra.mxu0 0.0
    %3428 = vmatprep.subr.mxu0 0.0
    %3429 = vmatpush1.msra.mxu0 0.0
    %3430 = vmatprep.subr.mxu0 0.0
    %3431 = vmatpush1.msra.mxu0 0.0
    %3432 = vmatprep.subr.mxu0 0.0
    %3433 = vmatpush1.msra.mxu0 0.0
    %3434 = vmatprep.subr.mxu0 0.0
    %3435 = vmatpush1.msra.mxu0 0.0
    %3436 = vmatprep.subr.mxu0 0.0
    %3437 = vmatpush1.msra.mxu0 0.0
    %3438 = vmatprep.subr.mxu0 0.0
    %3439 = vmatpush1.msra.mxu0 0.0
    %3440 = vmatprep.subr.mxu0 0.0
    %3441 = vmatpush1.msra.mxu0 0.0
    %3442 = vmatprep.subr.mxu0 0.0
    %3443 = vmatpush1.msra.mxu0 0.0
    %3444 = vmatprep.subr.mxu0 0.0
    %3445 = vmatpush1.msra.mxu0 0.0
    %3446 = vmatprep.subr.mxu0 0.0
    %3447 = vmatpush1.msra.mxu0 0.0
    %3448 = vmatprep.subr.mxu0 0.0
    %3449 = vmatpush1.msra.mxu0 0.0
    %3450 = vmatprep.subr.mxu0 0.0
    %3451 = vmatpush1.msra.mxu0 0.0
    %3452 = vmatprep.subr.mxu0 0.0
    %3453 = vmatpush1.msra.mxu0 0.0
    %3454 = vmatprep.subr.mxu0 0.0
    %3455 = vmatpush1.msra.mxu0 0.0
    %3456 = vmatprep.subr.mxu0 0.0
    %3457 = vmatpush1.msra.mxu0 0.0
    %3458 = vmatprep.subr.mxu0 0.0
    %3459 = vmatpush1.msra.mxu0 0.0
    %3460 = vmatprep.mubr.f32.mxu0 0.0
    %3461 = vmatmul.mubr.f32.gmra.mrb[0].mxu0 %v3391
    %v3462 = vpop.f32.mrb[0].mxu0
    %v3463 = vadd.f32 %v3388, %v3462
    %v3464 = vpop.f32.mrb[0].mxu0
    %3465 = vmatprep.mubr.f32.mxu0 0.0
    %3466 = vmatmul.mubr.f32.gmra.mrb[0].mxu0 %v3394
    %v3467 = vpop.f32.mrb[0].mxu0
    %v3468 = vadd.f32 %v3388, %v3467
    %v3469 = vpop.f32.mrb[0].mxu0
    %3470 = vdwg.mxu0
    %v3471 = vadd.f32 %v3275, %v3463
    %v3472 = vadd.f32 %v3276, %v3468
    %s3473 = scalar_lea.vmem %s18, 1
    %v3474 = vld [vmem:[%s3473] sm:$0x1]
    %s3475 = scalar_lea.vmem %s19, 1
    %v3476 = vld [vmem:[%s3475] sm:$0x1]
    %v3477 = vsel %vm216, %v3471, 0.0
    %3478 = vadd.xlane.f32.xlu0 %v3477
    %v3479 = vpop.xlane.xlu0 %3478
    %v3480 = vsel %vm216, %v3472, 0.0
    %3481 = vadd.xlane.f32.xlu0 %v3480
    %v3482 = vpop.xlane.xlu0 %3481
    %v3483 = vmul.f32 %v3479, %v1584
    %v3484 = vmul.f32 %v3482, %v1584
    %v3485 = vsub.f32 %v3471, %v3483
    %v3486 = vsub.f32 %v3472, %v3484
    %v3487 = vmul.f32 %v3485, %v3485
    %v3488 = vmul.f32 %v3486, %v3486
    %v3489 = vsel %vm216, %v3487, 0.0
    %3490 = vadd.xlane.f32.xlu0 %v3489
    %v3491 = vpop.xlane.xlu0 %3490
    %v3492 = vsel %vm216, %v3488, 0.0
    %3493 = vadd.xlane.f32.xlu0 %v3492
    %v3494 = vpop.xlane.xlu0 %3493
    %v3495 = vmul.f32 %v3491, %v1584
    %v3496 = vmul.f32 %v3494, %v1584
    %v3497 = vadd.f32 %v3495, 1e-05
    %v3498 = vadd.f32 %v3496, 1e-05
    %v3499 = vrsqrt.pop %v3497
    %v3500 = vrsqrt.pop %v3498
    %v3501 = vmul.f32 %v3485, %v3499
    %v3502 = vmul.f32 %v3486, %v3500
    %v3504 = vlaneseq
    %v3505 = vshrl.u32 %v3504, 7
    %v3506 = vsub.s32 0, %v3505
    %v3507 = vrot.slane %v3474, %v3506
    %v3509 = vmul.f32 %v3501, %v3507
    %v3510 = vmul.f32 %v3502, %v3507
    %v3512 = vlaneseq
    %v3513 = vshrl.u32 %v3512, 7
    %v3514 = vsub.s32 0, %v3513
    %v3515 = vrot.slane %v3476, %v3514
    %v3517 = vadd.f32 %v3509, %v3515
    %v3518 = vadd.f32 %v3510, %v3515
    %s3519 = scalar_lea.vmem %s4, 64
    %v3520 = vld [vmem:[%s3519] sm:$0xff]
    %v3521 = vld [vmem:[%s3519 + $0x8] sm:$0xff]
    %v3522 = vld [vmem:[%s3519 + $0x10] sm:$0xff]
    %v3523 = vld [vmem:[%s3519 + $0x18] sm:$0xff]
    %s3524 = scalar_lea.vmem %s5, 2
    %v3525 = vld [vmem:[%s3524] sm:$0x1]
    %v3527 = vlaneseq
    %v3528 = vshrl.u32 %v3527, 7
    %v3529 = vsub.s32 0, %v3528
    %v3530 = vrot.slane %v3525, %v3529
    %v3533 = vsel %vm216, %v3517, 0
    %v3536 = vsel %vm216, %v3518, 0
    %3538 = vmatprep.subr.mxu0 0.0
    %3539 = vmatpush1.msra.mxu0 %v3520
    %3540 = vmatprep.subr.mxu0 0.0
    %3541 = vmatpush1.msra.mxu0 %v3521
    %3542 = vmatprep.subr.mxu0 0.0
    %3543 = vmatpush1.msra.mxu0 %v3522
    %3544 = vmatprep.subr.mxu0 0.0
    %3545 = vmatpush1.msra.mxu0 %v3523
    %3546 = vmatprep.subr.mxu0 0.0
    %3547 = vmatpush1.msra.mxu0 0.0
    %3548 = vmatprep.subr.mxu0 0.0
    %3549 = vmatpush1.msra.mxu0 0.0
    %3550 = vmatprep.subr.mxu0 0.0
    %3551 = vmatpush1.msra.mxu0 0.0
    %3552 = vmatprep.subr.mxu0 0.0
    %3553 = vmatpush1.msra.mxu0 0.0
    %3554 = vmatprep.subr.mxu0 0.0
    %3555 = vmatpush1.msra.mxu0 0.0
    %3556 = vmatprep.subr.mxu0 0.0
    %3557 = vmatpush1.msra.mxu0 0.0
    %3558 = vmatprep.subr.mxu0 0.0
    %3559 = vmatpush1.msra.mxu0 0.0
    %3560 = vmatprep.subr.mxu0 0.0
    %3561 = vmatpush1.msra.mxu0 0.0
    %3562 = vmatprep.subr.mxu0 0.0
    %3563 = vmatpush1.msra.mxu0 0.0
    %3564 = vmatprep.subr.mxu0 0.0
    %3565 = vmatpush1.msra.mxu0 0.0
    %3566 = vmatprep.subr.mxu0 0.0
    %3567 = vmatpush1.msra.mxu0 0.0
    %3568 = vmatprep.subr.mxu0 0.0
    %3569 = vmatpush1.msra.mxu0 0.0
    %3570 = vmatprep.subr.mxu0 0.0
    %3571 = vmatpush1.msra.mxu0 0.0
    %3572 = vmatprep.subr.mxu0 0.0
    %3573 = vmatpush1.msra.mxu0 0.0
    %3574 = vmatprep.subr.mxu0 0.0
    %3575 = vmatpush1.msra.mxu0 0.0
    %3576 = vmatprep.subr.mxu0 0.0
    %3577 = vmatpush1.msra.mxu0 0.0
    %3578 = vmatprep.subr.mxu0 0.0
    %3579 = vmatpush1.msra.mxu0 0.0
    %3580 = vmatprep.subr.mxu0 0.0
    %3581 = vmatpush1.msra.mxu0 0.0
    %3582 = vmatprep.subr.mxu0 0.0
    %3583 = vmatpush1.msra.mxu0 0.0
    %3584 = vmatprep.subr.mxu0 0.0
    %3585 = vmatpush1.msra.mxu0 0.0
    %3586 = vmatprep.subr.mxu0 0.0
    %3587 = vmatpush1.msra.mxu0 0.0
    %3588 = vmatprep.subr.mxu0 0.0
    %3589 = vmatpush1.msra.mxu0 0.0
    %3590 = vmatprep.subr.mxu0 0.0
    %3591 = vmatpush1.msra.mxu0 0.0
    %3592 = vmatprep.subr.mxu0 0.0
    %3593 = vmatpush1.msra.mxu0 0.0
    %3594 = vmatprep.subr.mxu0 0.0
    %3595 = vmatpush1.msra.mxu0 0.0
    %3596 = vmatprep.subr.mxu0 0.0
    %3597 = vmatpush1.msra.mxu0 0.0
    %3598 = vmatprep.subr.mxu0 0.0
    %3599 = vmatpush1.msra.mxu0 0.0
    %3600 = vmatprep.subr.mxu0 0.0
    %3601 = vmatpush1.msra.mxu0 0.0
    %3602 = vmatprep.mubr.f32.mxu0 0.0
    %3603 = vmatmul.mubr.f32.gmra.mrb[0].mxu0 %v3533
    %v3604 = vpop.f32.mrb[0].mxu0
    %v3605 = vadd.f32 %v3530, %v3604
    %v3606 = vpop.f32.mrb[0].mxu0
    %3607 = vmatprep.mubr.f32.mxu0 0.0
    %3608 = vmatmul.mubr.f32.gmra.mrb[0].mxu0 %v3536
    %v3609 = vpop.f32.mrb[0].mxu0
    %v3610 = vadd.f32 %v3530, %v3609
    %v3611 = vpop.f32.mrb[0].mxu0
    %3612 = vdwg.mxu0
    %v3613 = vmul.f32 %v3605, 0.31622776
    %v3614 = vmul.f32 %v3610, 0.31622776
    %s3615 = scalar_lea.vmem %s6, 64
    %v3616 = vld [vmem:[%s3615] sm:$0xff]
    %v3617 = vld [vmem:[%s3615 + $0x8] sm:$0xff]
    %v3618 = vld [vmem:[%s3615 + $0x10] sm:$0xff]
    %v3619 = vld [vmem:[%s3615 + $0x18] sm:$0xff]
    %s3620 = scalar_lea.vmem %s7, 2
    %v3621 = vld [vmem:[%s3620] sm:$0x1]
    %v3623 = vlaneseq
    %v3624 = vshrl.u32 %v3623, 7
    %v3625 = vsub.s32 0, %v3624
    %v3626 = vrot.slane %v3621, %v3625
    %3628 = vmatprep.subr.mxu0 0.0
    %3629 = vmatpush1.msra.mxu0 %v3616
    %3630 = vmatprep.subr.mxu0 0.0
    %3631 = vmatpush1.msra.mxu0 %v3617
    %3632 = vmatprep.subr.mxu0 0.0
    %3633 = vmatpush1.msra.mxu0 %v3618
    %3634 = vmatprep.subr.mxu0 0.0
    %3635 = vmatpush1.msra.mxu0 %v3619
    %3636 = vmatprep.subr.mxu0 0.0
    %3637 = vmatpush1.msra.mxu0 0.0
    %3638 = vmatprep.subr.mxu0 0.0
    %3639 = vmatpush1.msra.mxu0 0.0
    %3640 = vmatprep.subr.mxu0 0.0
    %3641 = vmatpush1.msra.mxu0 0.0
    %3642 = vmatprep.subr.mxu0 0.0
    %3643 = vmatpush1.msra.mxu0 0.0
    %3644 = vmatprep.subr.mxu0 0.0
    %3645 = vmatpush1.msra.mxu0 0.0
    %3646 = vmatprep.subr.mxu0 0.0
    %3647 = vmatpush1.msra.mxu0 0.0
    %3648 = vmatprep.subr.mxu0 0.0
    %3649 = vmatpush1.msra.mxu0 0.0
    %3650 = vmatprep.subr.mxu0 0.0
    %3651 = vmatpush1.msra.mxu0 0.0
    %3652 = vmatprep.subr.mxu0 0.0
    %3653 = vmatpush1.msra.mxu0 0.0
    %3654 = vmatprep.subr.mxu0 0.0
    %3655 = vmatpush1.msra.mxu0 0.0
    %3656 = vmatprep.subr.mxu0 0.0
    %3657 = vmatpush1.msra.mxu0 0.0
    %3658 = vmatprep.subr.mxu0 0.0
    %3659 = vmatpush1.msra.mxu0 0.0
    %3660 = vmatprep.subr.mxu0 0.0
    %3661 = vmatpush1.msra.mxu0 0.0
    %3662 = vmatprep.subr.mxu0 0.0
    %3663 = vmatpush1.msra.mxu0 0.0
    %3664 = vmatprep.subr.mxu0 0.0
    %3665 = vmatpush1.msra.mxu0 0.0
    %3666 = vmatprep.subr.mxu0 0.0
    %3667 = vmatpush1.msra.mxu0 0.0
    %3668 = vmatprep.subr.mxu0 0.0
    %3669 = vmatpush1.msra.mxu0 0.0
    %3670 = vmatprep.subr.mxu0 0.0
    %3671 = vmatpush1.msra.mxu0 0.0
    %3672 = vmatprep.subr.mxu0 0.0
    %3673 = vmatpush1.msra.mxu0 0.0
    %3674 = vmatprep.subr.mxu0 0.0
    %3675 = vmatpush1.msra.mxu0 0.0
    %3676 = vmatprep.subr.mxu0 0.0
    %3677 = vmatpush1.msra.mxu0 0.0
    %3678 = vmatprep.subr.mxu0 0.0
    %3679 = vmatpush1.msra.mxu0 0.0
    %3680 = vmatprep.subr.mxu0 0.0
    %3681 = vmatpush1.msra.mxu0 0.0
    %3682 = vmatprep.subr.mxu0 0.0
    %3683 = vmatpush1.msra.mxu0 0.0
    %3684 = vmatprep.subr.mxu0 0.0
    %3685 = vmatpush1.msra.mxu0 0.0
    %3686 = vmatprep.subr.mxu0 0.0
    %3687 = vmatpush1.msra.mxu0 0.0
    %3688 = vmatprep.subr.mxu0 0.0
    %3689 = vmatpush1.msra.mxu0 0.0
    %3690 = vmatprep.subr.mxu0 0.0
    %3691 = vmatpush1.msra.mxu0 0.0
    %3692 = vmatprep.mubr.f32.mxu0 0.0
    %3693 = vmatmul.mubr.f32.gmra.mrb[0].mxu0 %v3533
    %v3694 = vpop.f32.mrb[0].mxu0
    %v3695 = vadd.f32 %v3626, %v3694
    %v3696 = vpop.f32.mrb[0].mxu0
    %3697 = vmatprep.mubr.f32.mxu0 0.0
    %3698 = vmatmul.mubr.f32.gmra.mrb[0].mxu0 %v3536
    %v3699 = vpop.f32.mrb[0].mxu0
    %v3700 = vadd.f32 %v3626, %v3699
    %v3701 = vpop.f32.mrb[0].mxu0
    %3702 = vdwg.mxu0
    %s3703 = scalar_lea.vmem %s8, 64
    %v3704 = vld [vmem:[%s3703] sm:$0xff]
    %v3705 = vld [vmem:[%s3703 + $0x8] sm:$0xff]
    %v3706 = vld [vmem:[%s3703 + $0x10] sm:$0xff]
    %v3707 = vld [vmem:[%s3703 + $0x18] sm:$0xff]
    %s3708 = scalar_lea.vmem %s9, 2
    %v3709 = vld [vmem:[%s3708] sm:$0x1]
    %v3711 = vlaneseq
    %v3712 = vshrl.u32 %v3711, 7
    %v3713 = vsub.s32 0, %v3712
    %v3714 = vrot.slane %v3709, %v3713
    %3716 = vmatprep.subr.mxu0 0.0
    %3717 = vmatpush1.msra.mxu0 %v3704
    %3718 = vmatprep.subr.mxu0 0.0
    %3719 = vmatpush1.msra.mxu0 %v3705
    %3720 = vmatprep.subr.mxu0 0.0
    %3721 = vmatpush1.msra.mxu0 %v3706
    %3722 = vmatprep.subr.mxu0 0.0
    %3723 = vmatpush1.msra.mxu0 %v3707
    %3724 = vmatprep.subr.mxu0 0.0
    %3725 = vmatpush1.msra.mxu0 0.0
    %3726 = vmatprep.subr.mxu0 0.0
    %3727 = vmatpush1.msra.mxu0 0.0
    %3728 = vmatprep.subr.mxu0 0.0
    %3729 = vmatpush1.msra.mxu0 0.0
    %3730 = vmatprep.subr.mxu0 0.0
    %3731 = vmatpush1.msra.mxu0 0.0
    %3732 = vmatprep.subr.mxu0 0.0
    %3733 = vmatpush1.msra.mxu0 0.0
    %3734 = vmatprep.subr.mxu0 0.0
    %3735 = vmatpush1.msra.mxu0 0.0
    %3736 = vmatprep.subr.mxu0 0.0
    %3737 = vmatpush1.msra.mxu0 0.0
    %3738 = vmatprep.subr.mxu0 0.0
    %3739 = vmatpush1.msra.mxu0 0.0
    %3740 = vmatprep.subr.mxu0 0.0
    %3741 = vmatpush1.msra.mxu0 0.0
    %3742 = vmatprep.subr.mxu0 0.0
    %3743 = vmatpush1.msra.mxu0 0.0
    %3744 = vmatprep.subr.mxu0 0.0
    %3745 = vmatpush1.msra.mxu0 0.0
    %3746 = vmatprep.subr.mxu0 0.0
    %3747 = vmatpush1.msra.mxu0 0.0
    %3748 = vmatprep.subr.mxu0 0.0
    %3749 = vmatpush1.msra.mxu0 0.0
    %3750 = vmatprep.subr.mxu0 0.0
    %3751 = vmatpush1.msra.mxu0 0.0
    %3752 = vmatprep.subr.mxu0 0.0
    %3753 = vmatpush1.msra.mxu0 0.0
    %3754 = vmatprep.subr.mxu0 0.0
    %3755 = vmatpush1.msra.mxu0 0.0
    %3756 = vmatprep.subr.mxu0 0.0
    %3757 = vmatpush1.msra.mxu0 0.0
    %3758 = vmatprep.subr.mxu0 0.0
    %3759 = vmatpush1.msra.mxu0 0.0
    %3760 = vmatprep.subr.mxu0 0.0
    %3761 = vmatpush1.msra.mxu0 0.0
    %3762 = vmatprep.subr.mxu0 0.0
    %3763 = vmatpush1.msra.mxu0 0.0
    %3764 = vmatprep.subr.mxu0 0.0
    %3765 = vmatpush1.msra.mxu0 0.0
    %3766 = vmatprep.subr.mxu0 0.0
    %3767 = vmatpush1.msra.mxu0 0.0
    %3768 = vmatprep.subr.mxu0 0.0
    %3769 = vmatpush1.msra.mxu0 0.0
    %3770 = vmatprep.subr.mxu0 0.0
    %3771 = vmatpush1.msra.mxu0 0.0
    %3772 = vmatprep.subr.mxu0 0.0
    %3773 = vmatpush1.msra.mxu0 0.0
    %3774 = vmatprep.subr.mxu0 0.0
    %3775 = vmatpush1.msra.mxu0 0.0
    %3776 = vmatprep.subr.mxu0 0.0
    %3777 = vmatpush1.msra.mxu0 0.0
    %3778 = vmatprep.subr.mxu0 0.0
    %3779 = vmatpush1.msra.mxu0 0.0
    %3780 = vmatprep.mubr.f32.mxu0 0.0
    %3781 = vmatmul.mubr.f32.gmra.mrb[0].mxu0 %v3533
    %v3782 = vpop.f32.mrb[0].mxu0
    %v3783 = vadd.f32 %v3714, %v3782
    %v3784 = vpop.f32.mrb[0].mxu0
    %3785 = vmatprep.mubr.f32.mxu0 0.0
    %3786 = vmatmul.mubr.f32.gmra.mrb[0].mxu0 %v3536
    %v3787 = vpop.f32.mrb[0].mxu0
    %v3788 = vadd.f32 %v3714, %v3787
    %v3789 = vpop.f32.mrb[0].mxu0
    %3790 = vdwg.mxu0
    %v3792 = vsel %vm472, %v3613, 0
    %v3795 = vsel %vm472, %v3695, 0
    %3797 = vmatprep.subr.mxu0 0.0
    %3798 = vmatpush1.xpose.msra.mxu0 %v3795
    %3799 = vmatprep.subr.mxu0 0.0
    %3800 = vmatpush1.xpose.msra.mxu0 0.0
    %3801 = vmatprep.subr.mxu0 0.0
    %3802 = vmatpush1.xpose.msra.mxu0 0.0
    %3803 = vmatprep.subr.mxu0 0.0
    %3804 = vmatpush1.xpose.msra.mxu0 0.0
    %3805 = vmatprep.subr.mxu0 0.0
    %3806 = vmatpush1.xpose.msra.mxu0 0.0
    %3807 = vmatprep.subr.mxu0 0.0
    %3808 = vmatpush1.xpose.msra.mxu0 0.0
    %3809 = vmatprep.subr.mxu0 0.0
    %3810 = vmatpush1.xpose.msra.mxu0 0.0
    %3811 = vmatprep.subr.mxu0 0.0
    %3812 = vmatpush1.xpose.msra.mxu0 0.0
    %3813 = vmatprep.subr.mxu0 0.0
    %3814 = vmatpush1.xpose.msra.mxu0 0.0
    %3815 = vmatprep.subr.mxu0 0.0
    %3816 = vmatpush1.xpose.msra.mxu0 0.0
    %3817 = vmatprep.subr.mxu0 0.0
    %3818 = vmatpush1.xpose.msra.mxu0 0.0
    %3819 = vmatprep.subr.mxu0 0.0
    %3820 = vmatpush1.xpose.msra.mxu0 0.0
    %3821 = vmatprep.subr.mxu0 0.0
    %3822 = vmatpush1.xpose.msra.mxu0 0.0
    %3823 = vmatprep.subr.mxu0 0.0
    %3824 = vmatpush1.xpose.msra.mxu0 0.0
    %3825 = vmatprep.subr.mxu0 0.0
    %3826 = vmatpush1.xpose.msra.mxu0 0.0
    %3827 = vmatprep.subr.mxu0 0.0
    %3828 = vmatpush1.xpose.msra.mxu0 0.0
    %3829 = vmatprep.subr.mxu0 0.0
    %3830 = vmatpush1.xpose.msra.mxu0 0.0
    %3831 = vmatprep.subr.mxu0 0.0
    %3832 = vmatpush1.xpose.msra.mxu0 0.0
    %3833 = vmatprep.subr.mxu0 0.0
    %3834 = vmatpush1.xpose.msra.mxu0 0.0
    %3835 = vmatprep.subr.mxu0 0.0
    %3836 = vmatpush1.xpose.msra.mxu0 0.0
    %3837 = vmatprep.subr.mxu0 0.0
    %3838 = vmatpush1.xpose.msra.mxu0 0.0
    %3839 = vmatprep.subr.mxu0 0.0
    %3840 = vmatpush1.xpose.msra.mxu0 0.0
    %3841 = vmatprep.subr.mxu0 0.0
    %3842 = vmatpush1.xpose.msra.mxu0 0.0
    %3843 = vmatprep.subr.mxu0 0.0
    %3844 = vmatpush1.xpose.msra.mxu0 0.0
    %3845 = vmatprep.subr.mxu0 0.0
    %3846 = vmatpush1.xpose.msra.mxu0 0.0
    %3847 = vmatprep.subr.mxu0 0.0
    %3848 = vmatpush1.xpose.msra.mxu0 0.0
    %3849 = vmatprep.subr.mxu0 0.0
    %3850 = vmatpush1.xpose.msra.mxu0 0.0
    %3851 = vmatprep.subr.mxu0 0.0
    %3852 = vmatpush1.xpose.msra.mxu0 0.0
    %3853 = vmatprep.subr.mxu0 0.0
    %3854 = vmatpush1.xpose.msra.mxu0 0.0
    %3855 = vmatprep.subr.mxu0 0.0
    %3856 = vmatpush1.xpose.msra.mxu0 0.0
    %3857 = vmatprep.subr.mxu0 0.0
    %3858 = vmatpush1.xpose.msra.mxu0 0.0
    %3859 = vmatprep.subr.mxu0 0.0
    %3860 = vmatpush1.xpose.msra.mxu0 0.0
    %3861 = vmatprep.mubr.f32.mxu0 0.0
    %3862 = vmatmul.mubr.f32.gmra.mrb[0].mxu0 %v3792
    %v3863 = vpop.f32.mrb[0].mxu0
    %v3864 = vadd.f32 0.0, %v3863
    %v3865 = vpop.f32.mrb[0].mxu0
    %3866 = vdwg.mxu0
    %v3868 = vsel %vm472, %v3614, 0
    %v3871 = vsel %vm472, %v3700, 0
    %3873 = vmatprep.subr.mxu0 0.0
    %3874 = vmatpush1.xpose.msra.mxu0 %v3871
    %3875 = vmatprep.subr.mxu0 0.0
    %3876 = vmatpush1.xpose.msra.mxu0 0.0
    %3877 = vmatprep.subr.mxu0 0.0
    %3878 = vmatpush1.xpose.msra.mxu0 0.0
    %3879 = vmatprep.subr.mxu0 0.0
    %3880 = vmatpush1.xpose.msra.mxu0 0.0
    %3881 = vmatprep.subr.mxu0 0.0
    %3882 = vmatpush1.xpose.msra.mxu0 0.0
    %3883 = vmatprep.subr.mxu0 0.0
    %3884 = vmatpush1.xpose.msra.mxu0 0.0
    %3885 = vmatprep.subr.mxu0 0.0
    %3886 = vmatpush1.xpose.msra.mxu0 0.0
    %3887 = vmatprep.subr.mxu0 0.0
    %3888 = vmatpush1.xpose.msra.mxu0 0.0
    %3889 = vmatprep.subr.mxu0 0.0
    %3890 = vmatpush1.xpose.msra.mxu0 0.0
    %3891 = vmatprep.subr.mxu0 0.0
    %3892 = vmatpush1.xpose.msra.mxu0 0.0
    %3893 = vmatprep.subr.mxu0 0.0
    %3894 = vmatpush1.xpose.msra.mxu0 0.0
    %3895 = vmatprep.subr.mxu0 0.0
    %3896 = vmatpush1.xpose.msra.mxu0 0.0
    %3897 = vmatprep.subr.mxu0 0.0
    %3898 = vmatpush1.xpose.msra.mxu0 0.0
    %3899 = vmatprep.subr.mxu0 0.0
    %3900 = vmatpush1.xpose.msra.mxu0 0.0
    %3901 = vmatprep.subr.mxu0 0.0
    %3902 = vmatpush1.xpose.msra.mxu0 0.0
    %3903 = vmatprep.subr.mxu0 0.0
    %3904 = vmatpush1.xpose.msra.mxu0 0.0
    %3905 = vmatprep.subr.mxu0 0.0
    %3906 = vmatpush1.xpose.msra.mxu0 0.0
    %3907 = vmatprep.subr.mxu0 0.0
    %3908 = vmatpush1.xpose.msra.mxu0 0.0
    %3909 = vmatprep.subr.mxu0 0.0
    %3910 = vmatpush1.xpose.msra.mxu0 0.0
    %3911 = vmatprep.subr.mxu0 0.0
    %3912 = vmatpush1.xpose.msra.mxu0 0.0
    %3913 = vmatprep.subr.mxu0 0.0
    %3914 = vmatpush1.xpose.msra.mxu0 0.0
    %3915 = vmatprep.subr.mxu0 0.0
    %3916 = vmatpush1.xpose.msra.mxu0 0.0
    %3917 = vmatprep.subr.mxu0 0.0
    %3918 = vmatpush1.xpose.msra.mxu0 0.0
    %3919 = vmatprep.subr.mxu0 0.0
    %3920 = vmatpush1.xpose.msra.mxu0 0.0
    %3921 = vmatprep.subr.mxu0 0.0
    %3922 = vmatpush1.xpose.msra.mxu0 0.0
    %3923 = vmatprep.subr.mxu0 0.0
    %3924 = vmatpush1.xpose.msra.mxu0 0.0
    %3925 = vmatprep.subr.mxu0 0.0
    %3926 = vmatpush1.xpose.msra.mxu0 0.0
    %3927 = vmatprep.subr.mxu0 0.0
    %3928 = vmatpush1.xpose.msra.mxu0 0.0
    %3929 = vmatprep.subr.mxu0 0.0
    %3930 = vmatpush1.xpose.msra.mxu0 0.0
    %3931 = vmatprep.subr.mxu0 0.0
    %3932 = vmatpush1.xpose.msra.mxu0 0.0
    %3933 = vmatprep.subr.mxu0 0.0
    %3934 = vmatpush1.xpose.msra.mxu0 0.0
    %3935 = vmatprep.subr.mxu0 0.0
    %3936 = vmatpush1.xpose.msra.mxu0 0.0
    %3937 = vmatprep.mubr.f32.mxu0 0.0
    %3938 = vmatmul.mubr.f32.gmra.mrb[0].mxu0 %v3868
    %v3939 = vpop.f32.mrb[0].mxu0
    %v3940 = vadd.f32 0.0, %v3939
    %v3941 = vpop.f32.mrb[0].mxu0
    %3942 = vdwg.mxu0
    %v3943 = vsel %vm625, %v3864, -inf
    %3944 = vmax.xlane.f32.xlu0 %v3943
    %v3945 = vpop.xlane.xlu0 %3944
    %v3946 = vsel %vm625, %v3940, -inf
    %3947 = vmax.xlane.f32.xlu0 %v3946
    %v3948 = vpop.xlane.xlu0 %3947
    %v3949 = vsub.f32 %v3864, %v3945
    %v3950 = vsub.f32 %v3940, %v3948
    %v3951 = vmul.f32 %v3949, 1.442695
    %v3952 = vpow.pop %v3951
    %v3953 = vmul.f32 %v3950, 1.442695
    %v3954 = vpow.pop %v3953
    %v3955 = vsel %vm625, %v3952, 0.0
    %3956 = vadd.xlane.f32.xlu0 %v3955
    %v3957 = vpop.xlane.xlu0 %3956
    %v3958 = vsel %vm625, %v3954, 0.0
    %3959 = vadd.xlane.f32.xlu0 %v3958
    %v3960 = vpop.xlane.xlu0 %3959
    %v3961 = vrcp.pop %v3957
    %v3962 = vrcp.pop %v3960
    %v3963 = vmul.f32 %v3952, %v3961
    %v3964 = vmul.f32 %v3954, %v3962
    %v3966 = vsel %vm625, %v3963, 0
    %3968 = vmatprep.subr.mxu0 0.0
    %3969 = vmatpush1.msra.mxu0 %v3783
    %3970 = vmatprep.subr.mxu0 0.0
    %3971 = vmatpush1.msra.mxu0 0.0
    %3972 = vmatprep.subr.mxu0 0.0
    %3973 = vmatpush1.msra.mxu0 0.0
    %3974 = vmatprep.subr.mxu0 0.0
    %3975 = vmatpush1.msra.mxu0 0.0
    %3976 = vmatprep.subr.mxu0 0.0
    %3977 = vmatpush1.msra.mxu0 0.0
    %3978 = vmatprep.subr.mxu0 0.0
    %3979 = vmatpush1.msra.mxu0 0.0
    %3980 = vmatprep.subr.mxu0 0.0
    %3981 = vmatpush1.msra.mxu0 0.0
    %3982 = vmatprep.subr.mxu0 0.0
    %3983 = vmatpush1.msra.mxu0 0.0
    %3984 = vmatprep.subr.mxu0 0.0
    %3985 = vmatpush1.msra.mxu0 0.0
    %3986 = vmatprep.subr.mxu0 0.0
    %3987 = vmatpush1.msra.mxu0 0.0
    %3988 = vmatprep.subr.mxu0 0.0
    %3989 = vmatpush1.msra.mxu0 0.0
    %3990 = vmatprep.subr.mxu0 0.0
    %3991 = vmatpush1.msra.mxu0 0.0
    %3992 = vmatprep.subr.mxu0 0.0
    %3993 = vmatpush1.msra.mxu0 0.0
    %3994 = vmatprep.subr.mxu0 0.0
    %3995 = vmatpush1.msra.mxu0 0.0
    %3996 = vmatprep.subr.mxu0 0.0
    %3997 = vmatpush1.msra.mxu0 0.0
    %3998 = vmatprep.subr.mxu0 0.0
    %3999 = vmatpush1.msra.mxu0 0.0
    %4000 = vmatprep.subr.mxu0 0.0
    %4001 = vmatpush1.msra.mxu0 0.0
    %4002 = vmatprep.subr.mxu0 0.0
    %4003 = vmatpush1.msra.mxu0 0.0
    %4004 = vmatprep.subr.mxu0 0.0
    %4005 = vmatpush1.msra.mxu0 0.0
    %4006 = vmatprep.subr.mxu0 0.0
    %4007 = vmatpush1.msra.mxu0 0.0
    %4008 = vmatprep.subr.mxu0 0.0
    %4009 = vmatpush1.msra.mxu0 0.0
    %4010 = vmatprep.subr.mxu0 0.0
    %4011 = vmatpush1.msra.mxu0 0.0
    %4012 = vmatprep.subr.mxu0 0.0
    %4013 = vmatpush1.msra.mxu0 0.0
    %4014 = vmatprep.subr.mxu0 0.0
    %4015 = vmatpush1.msra.mxu0 0.0
    %4016 = vmatprep.subr.mxu0 0.0
    %4017 = vmatpush1.msra.mxu0 0.0
    %4018 = vmatprep.subr.mxu0 0.0
    %4019 = vmatpush1.msra.mxu0 0.0
    %4020 = vmatprep.subr.mxu0 0.0
    %4021 = vmatpush1.msra.mxu0 0.0
    %4022 = vmatprep.subr.mxu0 0.0
    %4023 = vmatpush1.msra.mxu0 0.0
    %4024 = vmatprep.subr.mxu0 0.0
    %4025 = vmatpush1.msra.mxu0 0.0
    %4026 = vmatprep.subr.mxu0 0.0
    %4027 = vmatpush1.msra.mxu0 0.0
    %4028 = vmatprep.subr.mxu0 0.0
    %4029 = vmatpush1.msra.mxu0 0.0
    %4030 = vmatprep.subr.mxu0 0.0
    %4031 = vmatpush1.msra.mxu0 0.0
    %4032 = vmatprep.mubr.f32.mxu0 0.0
    %4033 = vmatmul.mubr.f32.gmra.mrb[0].mxu0 %v3966
    %v4034 = vpop.f32.mrb[0].mxu0
    %v4035 = vadd.f32 0.0, %v4034
    %v4036 = vpop.f32.mrb[0].mxu0
    %4037 = vdwg.mxu0
    %v4039 = vsel %vm625, %v3964, 0
    %4041 = vmatprep.subr.mxu0 0.0
    %4042 = vmatpush1.msra.mxu0 %v3788
    %4043 = vmatprep.subr.mxu0 0.0
    %4044 = vmatpush1.msra.mxu0 0.0
    %4045 = vmatprep.subr.mxu0 0.0
    %4046 = vmatpush1.msra.mxu0 0.0
    %4047 = vmatprep.subr.mxu0 0.0
    %4048 = vmatpush1.msra.mxu0 0.0
    %4049 = vmatprep.subr.mxu0 0.0
    %4050 = vmatpush1.msra.mxu0 0.0
    %4051 = vmatprep.subr.mxu0 0.0
    %4052 = vmatpush1.msra.mxu0 0.0
    %4053 = vmatprep.subr.mxu0 0.0
    %4054 = vmatpush1.msra.mxu0 0.0
    %4055 = vmatprep.subr.mxu0 0.0
    %4056 = vmatpush1.msra.mxu0 0.0
    %4057 = vmatprep.subr.mxu0 0.0
    %4058 = vmatpush1.msra.mxu0 0.0
    %4059 = vmatprep.subr.mxu0 0.0
    %4060 = vmatpush1.msra.mxu0 0.0
    %4061 = vmatprep.subr.mxu0 0.0
    %4062 = vmatpush1.msra.mxu0 0.0
    %4063 = vmatprep.subr.mxu0 0.0
    %4064 = vmatpush1.msra.mxu0 0.0
    %4065 = vmatprep.subr.mxu0 0.0
    %4066 = vmatpush1.msra.mxu0 0.0
    %4067 = vmatprep.subr.mxu0 0.0
    %4068 = vmatpush1.msra.mxu0 0.0
    %4069 = vmatprep.subr.mxu0 0.0
    %4070 = vmatpush1.msra.mxu0 0.0
    %4071 = vmatprep.subr.mxu0 0.0
    %4072 = vmatpush1.msra.mxu0 0.0
    %4073 = vmatprep.subr.mxu0 0.0
    %4074 = vmatpush1.msra.mxu0 0.0
    %4075 = vmatprep.subr.mxu0 0.0
    %4076 = vmatpush1.msra.mxu0 0.0
    %4077 = vmatprep.subr.mxu0 0.0
    %4078 = vmatpush1.msra.mxu0 0.0
    %4079 = vmatprep.subr.mxu0 0.0
    %4080 = vmatpush1.msra.mxu0 0.0
    %4081 = vmatprep.subr.mxu0 0.0
    %4082 = vmatpush1.msra.mxu0 0.0
    %4083 = vmatprep.subr.mxu0 0.0
    %4084 = vmatpush1.msra.mxu0 0.0
    %4085 = vmatprep.subr.mxu0 0.0
    %4086 = vmatpush1.msra.mxu0 0.0
    %4087 = vmatprep.subr.mxu0 0.0
    %4088 = vmatpush1.msra.mxu0 0.0
    %4089 = vmatprep.subr.mxu0 0.0
    %4090 = vmatpush1.msra.mxu0 0.0
    %4091 = vmatprep.subr.mxu0 0.0
    %4092 = vmatpush1.msra.mxu0 0.0
    %4093 = vmatprep.subr.mxu0 0.0
    %4094 = vmatpush1.msra.mxu0 0.0
    %4095 = vmatprep.subr.mxu0 0.0
    %4096 = vmatpush1.msra.mxu0 0.0
    %4097 = vmatprep.subr.mxu0 0.0
    %4098 = vmatpush1.msra.mxu0 0.0
    %4099 = vmatprep.subr.mxu0 0.0
    %4100 = vmatpush1.msra.mxu0 0.0
    %4101 = vmatprep.subr.mxu0 0.0
    %4102 = vmatpush1.msra.mxu0 0.0
    %4103 = vmatprep.subr.mxu0 0.0
    %4104 = vmatpush1.msra.mxu0 0.0
    %4105 = vmatprep.mubr.f32.mxu0 0.0
    %4106 = vmatmul.mubr.f32.gmra.mrb[0].mxu0 %v4039
    %v4107 = vpop.f32.mrb[0].mxu0
    %v4108 = vadd.f32 0.0, %v4107
    %v4109 = vpop.f32.mrb[0].mxu0
    %4110 = vdwg.mxu0
    %4111 = vrot.lane.b32.xlu0 %v3613, 118
    %v4112 = vpop.permute.xlu0 %4111
    %4113 = vrot.lane.b32.xlu0 %v3695, 118
    %v4114 = vpop.permute.xlu0 %4113
    %v4115 = vsel %vm472, %v4112, 0
    %v4117 = vsel %vm472, %v4114, 0
    %4119 = vmatprep.subr.mxu0 0.0
    %4120 = vmatpush1.xpose.msra.mxu0 %v4117
    %4121 = vmatprep.subr.mxu0 0.0
    %4122 = vmatpush1.xpose.msra.mxu0 0.0
    %4123 = vmatprep.subr.mxu0 0.0
    %4124 = vmatpush1.xpose.msra.mxu0 0.0
    %4125 = vmatprep.subr.mxu0 0.0
    %4126 = vmatpush1.xpose.msra.mxu0 0.0
    %4127 = vmatprep.subr.mxu0 0.0
    %4128 = vmatpush1.xpose.msra.mxu0 0.0
    %4129 = vmatprep.subr.mxu0 0.0
    %4130 = vmatpush1.xpose.msra.mxu0 0.0
    %4131 = vmatprep.subr.mxu0 0.0
    %4132 = vmatpush1.xpose.msra.mxu0 0.0
    %4133 = vmatprep.subr.mxu0 0.0
    %4134 = vmatpush1.xpose.msra.mxu0 0.0
    %4135 = vmatprep.subr.mxu0 0.0
    %4136 = vmatpush1.xpose.msra.mxu0 0.0
    %4137 = vmatprep.subr.mxu0 0.0
    %4138 = vmatpush1.xpose.msra.mxu0 0.0
    %4139 = vmatprep.subr.mxu0 0.0
    %4140 = vmatpush1.xpose.msra.mxu0 0.0
    %4141 = vmatprep.subr.mxu0 0.0
    %4142 = vmatpush1.xpose.msra.mxu0 0.0
    %4143 = vmatprep.subr.mxu0 0.0
    %4144 = vmatpush1.xpose.msra.mxu0 0.0
    %4145 = vmatprep.subr.mxu0 0.0
    %4146 = vmatpush1.xpose.msra.mxu0 0.0
    %4147 = vmatprep.subr.mxu0 0.0
    %4148 = vmatpush1.xpose.msra.mxu0 0.0
    %4149 = vmatprep.subr.mxu0 0.0
    %4150 = vmatpush1.xpose.msra.mxu0 0.0
    %4151 = vmatprep.subr.mxu0 0.0
    %4152 = vmatpush1.xpose.msra.mxu0 0.0
    %4153 = vmatprep.subr.mxu0 0.0
    %4154 = vmatpush1.xpose.msra.mxu0 0.0
    %4155 = vmatprep.subr.mxu0 0.0
    %4156 = vmatpush1.xpose.msra.mxu0 0.0
    %4157 = vmatprep.subr.mxu0 0.0
    %4158 = vmatpush1.xpose.msra.mxu0 0.0
    %4159 = vmatprep.subr.mxu0 0.0
    %4160 = vmatpush1.xpose.msra.mxu0 0.0
    %4161 = vmatprep.subr.mxu0 0.0
    %4162 = vmatpush1.xpose.msra.mxu0 0.0
    %4163 = vmatprep.subr.mxu0 0.0
    %4164 = vmatpush1.xpose.msra.mxu0 0.0
    %4165 = vmatprep.subr.mxu0 0.0
    %4166 = vmatpush1.xpose.msra.mxu0 0.0
    %4167 = vmatprep.subr.mxu0 0.0
    %4168 = vmatpush1.xpose.msra.mxu0 0.0
    %4169 = vmatprep.subr.mxu0 0.0
    %4170 = vmatpush1.xpose.msra.mxu0 0.0
    %4171 = vmatprep.subr.mxu0 0.0
    %4172 = vmatpush1.xpose.msra.mxu0 0.0
    %4173 = vmatprep.subr.mxu0 0.0
    %4174 = vmatpush1.xpose.msra.mxu0 0.0
    %4175 = vmatprep.subr.mxu0 0.0
    %4176 = vmatpush1.xpose.msra.mxu0 0.0
    %4177 = vmatprep.subr.mxu0 0.0
    %4178 = vmatpush1.xpose.msra.mxu0 0.0
    %4179 = vmatprep.subr.mxu0 0.0
    %4180 = vmatpush1.xpose.msra.mxu0 0.0
    %4181 = vmatprep.subr.mxu0 0.0
    %4182 = vmatpush1.xpose.msra.mxu0 0.0
    %4183 = vmatprep.mubr.f32.mxu0 0.0
    %4184 = vmatmul.mubr.f32.gmra.mrb[0].mxu0 %v4115
    %v4185 = vpop.f32.mrb[0].mxu0
    %v4186 = vadd.f32 0.0, %v4185
    %v4187 = vpop.f32.mrb[0].mxu0
    %4188 = vdwg.mxu0
    %4189 = vrot.lane.b32.xlu0 %v3614, 118
    %v4190 = vpop.permute.xlu0 %4189
    %4191 = vrot.lane.b32.xlu0 %v3700, 118
    %v4192 = vpop.permute.xlu0 %4191
    %v4193 = vsel %vm472, %v4190, 0
    %v4195 = vsel %vm472, %v4192, 0
    %4197 = vmatprep.subr.mxu0 0.0
    %4198 = vmatpush1.xpose.msra.mxu0 %v4195
    %4199 = vmatprep.subr.mxu0 0.0
    %4200 = vmatpush1.xpose.msra.mxu0 0.0
    %4201 = vmatprep.subr.mxu0 0.0
    %4202 = vmatpush1.xpose.msra.mxu0 0.0
    %4203 = vmatprep.subr.mxu0 0.0
    %4204 = vmatpush1.xpose.msra.mxu0 0.0
    %4205 = vmatprep.subr.mxu0 0.0
    %4206 = vmatpush1.xpose.msra.mxu0 0.0
    %4207 = vmatprep.subr.mxu0 0.0
    %4208 = vmatpush1.xpose.msra.mxu0 0.0
    %4209 = vmatprep.subr.mxu0 0.0
    %4210 = vmatpush1.xpose.msra.mxu0 0.0
    %4211 = vmatprep.subr.mxu0 0.0
    %4212 = vmatpush1.xpose.msra.mxu0 0.0
    %4213 = vmatprep.subr.mxu0 0.0
    %4214 = vmatpush1.xpose.msra.mxu0 0.0
    %4215 = vmatprep.subr.mxu0 0.0
    %4216 = vmatpush1.xpose.msra.mxu0 0.0
    %4217 = vmatprep.subr.mxu0 0.0
    %4218 = vmatpush1.xpose.msra.mxu0 0.0
    %4219 = vmatprep.subr.mxu0 0.0
    %4220 = vmatpush1.xpose.msra.mxu0 0.0
    %4221 = vmatprep.subr.mxu0 0.0
    %4222 = vmatpush1.xpose.msra.mxu0 0.0
    %4223 = vmatprep.subr.mxu0 0.0
    %4224 = vmatpush1.xpose.msra.mxu0 0.0
    %4225 = vmatprep.subr.mxu0 0.0
    %4226 = vmatpush1.xpose.msra.mxu0 0.0
    %4227 = vmatprep.subr.mxu0 0.0
    %4228 = vmatpush1.xpose.msra.mxu0 0.0
    %4229 = vmatprep.subr.mxu0 0.0
    %4230 = vmatpush1.xpose.msra.mxu0 0.0
    %4231 = vmatprep.subr.mxu0 0.0
    %4232 = vmatpush1.xpose.msra.mxu0 0.0
    %4233 = vmatprep.subr.mxu0 0.0
    %4234 = vmatpush1.xpose.msra.mxu0 0.0
    %4235 = vmatprep.subr.mxu0 0.0
    %4236 = vmatpush1.xpose.msra.mxu0 0.0
    %4237 = vmatprep.subr.mxu0 0.0
    %4238 = vmatpush1.xpose.msra.mxu0 0.0
    %4239 = vmatprep.subr.mxu0 0.0
    %4240 = vmatpush1.xpose.msra.mxu0 0.0
    %4241 = vmatprep.subr.mxu0 0.0
    %4242 = vmatpush1.xpose.msra.mxu0 0.0
    %4243 = vmatprep.subr.mxu0 0.0
    %4244 = vmatpush1.xpose.msra.mxu0 0.0
    %4245 = vmatprep.subr.mxu0 0.0
    %4246 = vmatpush1.xpose.msra.mxu0 0.0
    %4247 = vmatprep.subr.mxu0 0.0
    %4248 = vmatpush1.xpose.msra.mxu0 0.0
    %4249 = vmatprep.subr.mxu0 0.0
    %4250 = vmatpush1.xpose.msra.mxu0 0.0
    %4251 = vmatprep.subr.mxu0 0.0
    %4252 = vmatpush1.xpose.msra.mxu0 0.0
    %4253 = vmatprep.subr.mxu0 0.0
    %4254 = vmatpush1.xpose.msra.mxu0 0.0
    %4255 = vmatprep.subr.mxu0 0.0
    %4256 = vmatpush1.xpose.msra.mxu0 0.0
    %4257 = vmatprep.subr.mxu0 0.0
    %4258 = vmatpush1.xpose.msra.mxu0 0.0
    %4259 = vmatprep.subr.mxu0 0.0
    %4260 = vmatpush1.xpose.msra.mxu0 0.0
    %4261 = vmatprep.mubr.f32.mxu0 0.0
    %4262 = vmatmul.mubr.f32.gmra.mrb[0].mxu0 %v4193
    %v4263 = vpop.f32.mrb[0].mxu0
    %v4264 = vadd.f32 0.0, %v4263
    %v4265 = vpop.f32.mrb[0].mxu0
    %4266 = vdwg.mxu0
    %v4267 = vsel %vm625, %v4186, -inf
    %4268 = vmax.xlane.f32.xlu0 %v4267
    %v4269 = vpop.xlane.xlu0 %4268
    %v4270 = vsel %vm625, %v4264, -inf
    %4271 = vmax.xlane.f32.xlu0 %v4270
    %v4272 = vpop.xlane.xlu0 %4271
    %v4273 = vsub.f32 %v4186, %v4269
    %v4274 = vsub.f32 %v4264, %v4272
    %v4275 = vmul.f32 %v4273, 1.442695
    %v4276 = vpow.pop %v4275
    %v4277 = vmul.f32 %v4274, 1.442695
    %v4278 = vpow.pop %v4277
    %v4279 = vsel %vm625, %v4276, 0.0
    %4280 = vadd.xlane.f32.xlu0 %v4279
    %v4281 = vpop.xlane.xlu0 %4280
    %v4282 = vsel %vm625, %v4278, 0.0
    %4283 = vadd.xlane.f32.xlu0 %v4282
    %v4284 = vpop.xlane.xlu0 %4283
    %v4285 = vrcp.pop %v4281
    %v4286 = vrcp.pop %v4284
    %v4287 = vmul.f32 %v4276, %v4285
    %v4288 = vmul.f32 %v4278, %v4286
    %4290 = vrot.lane.b32.xlu0 %v3783, 118
    %v4291 = vpop.permute.xlu0 %4290
    %v4294 = vsel %vm625, %v4287, 0
    %4296 = vmatprep.subr.mxu0 0.0
    %4297 = vmatpush1.msra.mxu0 %v4291
    %4298 = vmatprep.subr.mxu0 0.0
    %4299 = vmatpush1.msra.mxu0 0.0
    %4300 = vmatprep.subr.mxu0 0.0
    %4301 = vmatpush1.msra.mxu0 0.0
    %4302 = vmatprep.subr.mxu0 0.0
    %4303 = vmatpush1.msra.mxu0 0.0
    %4304 = vmatprep.subr.mxu0 0.0
    %4305 = vmatpush1.msra.mxu0 0.0
    %4306 = vmatprep.subr.mxu0 0.0
    %4307 = vmatpush1.msra.mxu0 0.0
    %4308 = vmatprep.subr.mxu0 0.0
    %4309 = vmatpush1.msra.mxu0 0.0
    %4310 = vmatprep.subr.mxu0 0.0
    %4311 = vmatpush1.msra.mxu0 0.0
    %4312 = vmatprep.subr.mxu0 0.0
    %4313 = vmatpush1.msra.mxu0 0.0
    %4314 = vmatprep.subr.mxu0 0.0
    %4315 = vmatpush1.msra.mxu0 0.0
    %4316 = vmatprep.subr.mxu0 0.0
    %4317 = vmatpush1.msra.mxu0 0.0
    %4318 = vmatprep.subr.mxu0 0.0
    %4319 = vmatpush1.msra.mxu0 0.0
    %4320 = vmatprep.subr.mxu0 0.0
    %4321 = vmatpush1.msra.mxu0 0.0
    %4322 = vmatprep.subr.mxu0 0.0
    %4323 = vmatpush1.msra.mxu0 0.0
    %4324 = vmatprep.subr.mxu0 0.0
    %4325 = vmatpush1.msra.mxu0 0.0
    %4326 = vmatprep.subr.mxu0 0.0
    %4327 = vmatpush1.msra.mxu0 0.0
    %4328 = vmatprep.subr.mxu0 0.0
    %4329 = vmatpush1.msra.mxu0 0.0
    %4330 = vmatprep.subr.mxu0 0.0
    %4331 = vmatpush1.msra.mxu0 0.0
    %4332 = vmatprep.subr.mxu0 0.0
    %4333 = vmatpush1.msra.mxu0 0.0
    %4334 = vmatprep.subr.mxu0 0.0
    %4335 = vmatpush1.msra.mxu0 0.0
    %4336 = vmatprep.subr.mxu0 0.0
    %4337 = vmatpush1.msra.mxu0 0.0
    %4338 = vmatprep.subr.mxu0 0.0
    %4339 = vmatpush1.msra.mxu0 0.0
    %4340 = vmatprep.subr.mxu0 0.0
    %4341 = vmatpush1.msra.mxu0 0.0
    %4342 = vmatprep.subr.mxu0 0.0
    %4343 = vmatpush1.msra.mxu0 0.0
    %4344 = vmatprep.subr.mxu0 0.0
    %4345 = vmatpush1.msra.mxu0 0.0
    %4346 = vmatprep.subr.mxu0 0.0
    %4347 = vmatpush1.msra.mxu0 0.0
    %4348 = vmatprep.subr.mxu0 0.0
    %4349 = vmatpush1.msra.mxu0 0.0
    %4350 = vmatprep.subr.mxu0 0.0
    %4351 = vmatpush1.msra.mxu0 0.0
    %4352 = vmatprep.subr.mxu0 0.0
    %4353 = vmatpush1.msra.mxu0 0.0
    %4354 = vmatprep.subr.mxu0 0.0
    %4355 = vmatpush1.msra.mxu0 0.0
    %4356 = vmatprep.subr.mxu0 0.0
    %4357 = vmatpush1.msra.mxu0 0.0
    %4358 = vmatprep.subr.mxu0 0.0
    %4359 = vmatpush1.msra.mxu0 0.0
    %4360 = vmatprep.mubr.f32.mxu0 0.0
    %4361 = vmatmul.mubr.f32.gmra.mrb[0].mxu0 %v4294
    %v4362 = vpop.f32.mrb[0].mxu0
    %v4363 = vadd.f32 0.0, %v4362
    %v4364 = vpop.f32.mrb[0].mxu0
    %4365 = vdwg.mxu0
    %4367 = vrot.lane.b32.xlu0 %v3788, 118
    %v4368 = vpop.permute.xlu0 %4367
    %v4371 = vsel %vm625, %v4288, 0
    %4373 = vmatprep.subr.mxu0 0.0
    %4374 = vmatpush1.msra.mxu0 %v4368
    %4375 = vmatprep.subr.mxu0 0.0
    %4376 = vmatpush1.msra.mxu0 0.0
    %4377 = vmatprep.subr.mxu0 0.0
    %4378 = vmatpush1.msra.mxu0 0.0
    %4379 = vmatprep.subr.mxu0 0.0
    %4380 = vmatpush1.msra.mxu0 0.0
    %4381 = vmatprep.subr.mxu0 0.0
    %4382 = vmatpush1.msra.mxu0 0.0
    %4383 = vmatprep.subr.mxu0 0.0
    %4384 = vmatpush1.msra.mxu0 0.0
    %4385 = vmatprep.subr.mxu0 0.0
    %4386 = vmatpush1.msra.mxu0 0.0
    %4387 = vmatprep.subr.mxu0 0.0
    %4388 = vmatpush1.msra.mxu0 0.0
    %4389 = vmatprep.subr.mxu0 0.0
    %4390 = vmatpush1.msra.mxu0 0.0
    %4391 = vmatprep.subr.mxu0 0.0
    %4392 = vmatpush1.msra.mxu0 0.0
    %4393 = vmatprep.subr.mxu0 0.0
    %4394 = vmatpush1.msra.mxu0 0.0
    %4395 = vmatprep.subr.mxu0 0.0
    %4396 = vmatpush1.msra.mxu0 0.0
    %4397 = vmatprep.subr.mxu0 0.0
    %4398 = vmatpush1.msra.mxu0 0.0
    %4399 = vmatprep.subr.mxu0 0.0
    %4400 = vmatpush1.msra.mxu0 0.0
    %4401 = vmatprep.subr.mxu0 0.0
    %4402 = vmatpush1.msra.mxu0 0.0
    %4403 = vmatprep.subr.mxu0 0.0
    %4404 = vmatpush1.msra.mxu0 0.0
    %4405 = vmatprep.subr.mxu0 0.0
    %4406 = vmatpush1.msra.mxu0 0.0
    %4407 = vmatprep.subr.mxu0 0.0
    %4408 = vmatpush1.msra.mxu0 0.0
    %4409 = vmatprep.subr.mxu0 0.0
    %4410 = vmatpush1.msra.mxu0 0.0
    %4411 = vmatprep.subr.mxu0 0.0
    %4412 = vmatpush1.msra.mxu0 0.0
    %4413 = vmatprep.subr.mxu0 0.0
    %4414 = vmatpush1.msra.mxu0 0.0
    %4415 = vmatprep.subr.mxu0 0.0
    %4416 = vmatpush1.msra.mxu0 0.0
    %4417 = vmatprep.subr.mxu0 0.0
    %4418 = vmatpush1.msra.mxu0 0.0
    %4419 = vmatprep.subr.mxu0 0.0
    %4420 = vmatpush1.msra.mxu0 0.0
    %4421 = vmatprep.subr.mxu0 0.0
    %4422 = vmatpush1.msra.mxu0 0.0
    %4423 = vmatprep.subr.mxu0 0.0
    %4424 = vmatpush1.msra.mxu0 0.0
    %4425 = vmatprep.subr.mxu0 0.0
    %4426 = vmatpush1.msra.mxu0 0.0
    %4427 = vmatprep.subr.mxu0 0.0
    %4428 = vmatpush1.msra.mxu0 0.0
    %4429 = vmatprep.subr.mxu0 0.0
    %4430 = vmatpush1.msra.mxu0 0.0
    %4431 = vmatprep.subr.mxu0 0.0
    %4432 = vmatpush1.msra.mxu0 0.0
    %4433 = vmatprep.subr.mxu0 0.0
    %4434 = vmatpush1.msra.mxu0 0.0
    %4435 = vmatprep.subr.mxu0 0.0
    %4436 = vmatpush1.msra.mxu0 0.0
    %4437 = vmatprep.mubr.f32.mxu0 0.0
    %4438 = vmatmul.mubr.f32.gmra.mrb[0].mxu0 %v4371
    %v4439 = vpop.f32.mrb[0].mxu0
    %v4440 = vadd.f32 0.0, %v4439
    %v4441 = vpop.f32.mrb[0].mxu0
    %4442 = vdwg.mxu0
    %4443 = vrot.lane.b32.xlu0 %v3613, 108
    %v4444 = vpop.permute.xlu0 %4443
    %4445 = vrot.lane.b32.xlu0 %v3695, 108
    %v4446 = vpop.permute.xlu0 %4445
    %v4447 = vsel %vm472, %v4444, 0
    %v4449 = vsel %vm472, %v4446, 0
    %4451 = vmatprep.subr.mxu0 0.0
    %4452 = vmatpush1.xpose.msra.mxu0 %v4449
    %4453 = vmatprep.subr.mxu0 0.0
    %4454 = vmatpush1.xpose.msra.mxu0 0.0
    %4455 = vmatprep.subr.mxu0 0.0
    %4456 = vmatpush1.xpose.msra.mxu0 0.0
    %4457 = vmatprep.subr.mxu0 0.0
    %4458 = vmatpush1.xpose.msra.mxu0 0.0
    %4459 = vmatprep.subr.mxu0 0.0
    %4460 = vmatpush1.xpose.msra.mxu0 0.0
    %4461 = vmatprep.subr.mxu0 0.0
    %4462 = vmatpush1.xpose.msra.mxu0 0.0
    %4463 = vmatprep.subr.mxu0 0.0
    %4464 = vmatpush1.xpose.msra.mxu0 0.0
    %4465 = vmatprep.subr.mxu0 0.0
    %4466 = vmatpush1.xpose.msra.mxu0 0.0
    %4467 = vmatprep.subr.mxu0 0.0
    %4468 = vmatpush1.xpose.msra.mxu0 0.0
    %4469 = vmatprep.subr.mxu0 0.0
    %4470 = vmatpush1.xpose.msra.mxu0 0.0
    %4471 = vmatprep.subr.mxu0 0.0
    %4472 = vmatpush1.xpose.msra.mxu0 0.0
    %4473 = vmatprep.subr.mxu0 0.0
    %4474 = vmatpush1.xpose.msra.mxu0 0.0
    %4475 = vmatprep.subr.mxu0 0.0
    %4476 = vmatpush1.xpose.msra.mxu0 0.0
    %4477 = vmatprep.subr.mxu0 0.0
    %4478 = vmatpush1.xpose.msra.mxu0 0.0
    %4479 = vmatprep.subr.mxu0 0.0
    %4480 = vmatpush1.xpose.msra.mxu0 0.0
    %4481 = vmatprep.subr.mxu0 0.0
    %4482 = vmatpush1.xpose.msra.mxu0 0.0
    %4483 = vmatprep.subr.mxu0 0.0
    %4484 = vmatpush1.xpose.msra.mxu0 0.0
    %4485 = vmatprep.subr.mxu0 0.0
    %4486 = vmatpush1.xpose.msra.mxu0 0.0
    %4487 = vmatprep.subr.mxu0 0.0
    %4488 = vmatpush1.xpose.msra.mxu0 0.0
    %4489 = vmatprep.subr.mxu0 0.0
    %4490 = vmatpush1.xpose.msra.mxu0 0.0
    %4491 = vmatprep.subr.mxu0 0.0
    %4492 = vmatpush1.xpose.msra.mxu0 0.0
    %4493 = vmatprep.subr.mxu0 0.0
    %4494 = vmatpush1.xpose.msra.mxu0 0.0
    %4495 = vmatprep.subr.mxu0 0.0
    %4496 = vmatpush1.xpose.msra.mxu0 0.0
    %4497 = vmatprep.subr.mxu0 0.0
    %4498 = vmatpush1.xpose.msra.mxu0 0.0
    %4499 = vmatprep.subr.mxu0 0.0
    %4500 = vmatpush1.xpose.msra.mxu0 0.0
    %4501 = vmatprep.subr.mxu0 0.0
    %4502 = vmatpush1.xpose.msra.mxu0 0.0
    %4503 = vmatprep.subr.mxu0 0.0
    %4504 = vmatpush1.xpose.msra.mxu0 0.0
    %4505 = vmatprep.subr.mxu0 0.0
    %4506 = vmatpush1.xpose.msra.mxu0 0.0
    %4507 = vmatprep.subr.mxu0 0.0
    %4508 = vmatpush1.xpose.msra.mxu0 0.0
    %4509 = vmatprep.subr.mxu0 0.0
    %4510 = vmatpush1.xpose.msra.mxu0 0.0
    %4511 = vmatprep.subr.mxu0 0.0
    %4512 = vmatpush1.xpose.msra.mxu0 0.0
    %4513 = vmatprep.subr.mxu0 0.0
    %4514 = vmatpush1.xpose.msra.mxu0 0.0
    %4515 = vmatprep.mubr.f32.mxu0 0.0
    %4516 = vmatmul.mubr.f32.gmra.mrb[0].mxu0 %v4447
    %v4517 = vpop.f32.mrb[0].mxu0
    %v4518 = vadd.f32 0.0, %v4517
    %v4519 = vpop.f32.mrb[0].mxu0
    %4520 = vdwg.mxu0
    %4521 = vrot.lane.b32.xlu0 %v3614, 108
    %v4522 = vpop.permute.xlu0 %4521
    %4523 = vrot.lane.b32.xlu0 %v3700, 108
    %v4524 = vpop.permute.xlu0 %4523
    %v4525 = vsel %vm472, %v4522, 0
    %v4527 = vsel %vm472, %v4524, 0
    %4529 = vmatprep.subr.mxu0 0.0
    %4530 = vmatpush1.xpose.msra.mxu0 %v4527
    %4531 = vmatprep.subr.mxu0 0.0
    %4532 = vmatpush1.xpose.msra.mxu0 0.0
    %4533 = vmatprep.subr.mxu0 0.0
    %4534 = vmatpush1.xpose.msra.mxu0 0.0
    %4535 = vmatprep.subr.mxu0 0.0
    %4536 = vmatpush1.xpose.msra.mxu0 0.0
    %4537 = vmatprep.subr.mxu0 0.0
    %4538 = vmatpush1.xpose.msra.mxu0 0.0
    %4539 = vmatprep.subr.mxu0 0.0
    %4540 = vmatpush1.xpose.msra.mxu0 0.0
    %4541 = vmatprep.subr.mxu0 0.0
    %4542 = vmatpush1.xpose.msra.mxu0 0.0
    %4543 = vmatprep.subr.mxu0 0.0
    %4544 = vmatpush1.xpose.msra.mxu0 0.0
    %4545 = vmatprep.subr.mxu0 0.0
    %4546 = vmatpush1.xpose.msra.mxu0 0.0
    %4547 = vmatprep.subr.mxu0 0.0
    %4548 = vmatpush1.xpose.msra.mxu0 0.0
    %4549 = vmatprep.subr.mxu0 0.0
    %4550 = vmatpush1.xpose.msra.mxu0 0.0
    %4551 = vmatprep.subr.mxu0 0.0
    %4552 = vmatpush1.xpose.msra.mxu0 0.0
    %4553 = vmatprep.subr.mxu0 0.0
    %4554 = vmatpush1.xpose.msra.mxu0 0.0
    %4555 = vmatprep.subr.mxu0 0.0
    %4556 = vmatpush1.xpose.msra.mxu0 0.0
    %4557 = vmatprep.subr.mxu0 0.0
    %4558 = vmatpush1.xpose.msra.mxu0 0.0
    %4559 = vmatprep.subr.mxu0 0.0
    %4560 = vmatpush1.xpose.msra.mxu0 0.0
    %4561 = vmatprep.subr.mxu0 0.0
    %4562 = vmatpush1.xpose.msra.mxu0 0.0
    %4563 = vmatprep.subr.mxu0 0.0
    %4564 = vmatpush1.xpose.msra.mxu0 0.0
    %4565 = vmatprep.subr.mxu0 0.0
    %4566 = vmatpush1.xpose.msra.mxu0 0.0
    %4567 = vmatprep.subr.mxu0 0.0
    %4568 = vmatpush1.xpose.msra.mxu0 0.0
    %4569 = vmatprep.subr.mxu0 0.0
    %4570 = vmatpush1.xpose.msra.mxu0 0.0
    %4571 = vmatprep.subr.mxu0 0.0
    %4572 = vmatpush1.xpose.msra.mxu0 0.0
    %4573 = vmatprep.subr.mxu0 0.0
    %4574 = vmatpush1.xpose.msra.mxu0 0.0
    %4575 = vmatprep.subr.mxu0 0.0
    %4576 = vmatpush1.xpose.msra.mxu0 0.0
    %4577 = vmatprep.subr.mxu0 0.0
    %4578 = vmatpush1.xpose.msra.mxu0 0.0
    %4579 = vmatprep.subr.mxu0 0.0
    %4580 = vmatpush1.xpose.msra.mxu0 0.0
    %4581 = vmatprep.subr.mxu0 0.0
    %4582 = vmatpush1.xpose.msra.mxu0 0.0
    %4583 = vmatprep.subr.mxu0 0.0
    %4584 = vmatpush1.xpose.msra.mxu0 0.0
    %4585 = vmatprep.subr.mxu0 0.0
    %4586 = vmatpush1.xpose.msra.mxu0 0.0
    %4587 = vmatprep.subr.mxu0 0.0
    %4588 = vmatpush1.xpose.msra.mxu0 0.0
    %4589 = vmatprep.subr.mxu0 0.0
    %4590 = vmatpush1.xpose.msra.mxu0 0.0
    %4591 = vmatprep.subr.mxu0 0.0
    %4592 = vmatpush1.xpose.msra.mxu0 0.0
    %4593 = vmatprep.mubr.f32.mxu0 0.0
    %4594 = vmatmul.mubr.f32.gmra.mrb[0].mxu0 %v4525
    %v4595 = vpop.f32.mrb[0].mxu0
    %v4596 = vadd.f32 0.0, %v4595
    %v4597 = vpop.f32.mrb[0].mxu0
    %4598 = vdwg.mxu0
    %v4599 = vsel %vm625, %v4518, -inf
    %4600 = vmax.xlane.f32.xlu0 %v4599
    %v4601 = vpop.xlane.xlu0 %4600
    %v4602 = vsel %vm625, %v4596, -inf
    %4603 = vmax.xlane.f32.xlu0 %v4602
    %v4604 = vpop.xlane.xlu0 %4603
    %v4605 = vsub.f32 %v4518, %v4601
    %v4606 = vsub.f32 %v4596, %v4604
    %v4607 = vmul.f32 %v4605, 1.442695
    %v4608 = vpow.pop %v4607
    %v4609 = vmul.f32 %v4606, 1.442695
    %v4610 = vpow.pop %v4609
    %v4611 = vsel %vm625, %v4608, 0.0
    %4612 = vadd.xlane.f32.xlu0 %v4611
    %v4613 = vpop.xlane.xlu0 %4612
    %v4614 = vsel %vm625, %v4610, 0.0
    %4615 = vadd.xlane.f32.xlu0 %v4614
    %v4616 = vpop.xlane.xlu0 %4615
    %v4617 = vrcp.pop %v4613
    %v4618 = vrcp.pop %v4616
    %v4619 = vmul.f32 %v4608, %v4617
    %v4620 = vmul.f32 %v4610, %v4618
    %4621 = vrot.lane.b32.xlu0 %v3783, 108
    %v4622 = vpop.permute.xlu0 %4621
    %v4625 = vsel %vm625, %v4619, 0
    %4627 = vmatprep.subr.mxu0 0.0
    %4628 = vmatpush1.msra.mxu0 %v4622
    %4629 = vmatprep.subr.mxu0 0.0
    %4630 = vmatpush1.msra.mxu0 0.0
    %4631 = vmatprep.subr.mxu0 0.0
    %4632 = vmatpush1.msra.mxu0 0.0
    %4633 = vmatprep.subr.mxu0 0.0
    %4634 = vmatpush1.msra.mxu0 0.0
    %4635 = vmatprep.subr.mxu0 0.0
    %4636 = vmatpush1.msra.mxu0 0.0
    %4637 = vmatprep.subr.mxu0 0.0
    %4638 = vmatpush1.msra.mxu0 0.0
    %4639 = vmatprep.subr.mxu0 0.0
    %4640 = vmatpush1.msra.mxu0 0.0
    %4641 = vmatprep.subr.mxu0 0.0
    %4642 = vmatpush1.msra.mxu0 0.0
    %4643 = vmatprep.subr.mxu0 0.0
    %4644 = vmatpush1.msra.mxu0 0.0
    %4645 = vmatprep.subr.mxu0 0.0
    %4646 = vmatpush1.msra.mxu0 0.0
    %4647 = vmatprep.subr.mxu0 0.0
    %4648 = vmatpush1.msra.mxu0 0.0
    %4649 = vmatprep.subr.mxu0 0.0
    %4650 = vmatpush1.msra.mxu0 0.0
    %4651 = vmatprep.subr.mxu0 0.0
    %4652 = vmatpush1.msra.mxu0 0.0
    %4653 = vmatprep.subr.mxu0 0.0
    %4654 = vmatpush1.msra.mxu0 0.0
    %4655 = vmatprep.subr.mxu0 0.0
    %4656 = vmatpush1.msra.mxu0 0.0
    %4657 = vmatprep.subr.mxu0 0.0
    %4658 = vmatpush1.msra.mxu0 0.0
    %4659 = vmatprep.subr.mxu0 0.0
    %4660 = vmatpush1.msra.mxu0 0.0
    %4661 = vmatprep.subr.mxu0 0.0
    %4662 = vmatpush1.msra.mxu0 0.0
    %4663 = vmatprep.subr.mxu0 0.0
    %4664 = vmatpush1.msra.mxu0 0.0
    %4665 = vmatprep.subr.mxu0 0.0
    %4666 = vmatpush1.msra.mxu0 0.0
    %4667 = vmatprep.subr.mxu0 0.0
    %4668 = vmatpush1.msra.mxu0 0.0
    %4669 = vmatprep.subr.mxu0 0.0
    %4670 = vmatpush1.msra.mxu0 0.0
    %4671 = vmatprep.subr.mxu0 0.0
    %4672 = vmatpush1.msra.mxu0 0.0
    %4673 = vmatprep.subr.mxu0 0.0
    %4674 = vmatpush1.msra.mxu0 0.0
    %4675 = vmatprep.subr.mxu0 0.0
    %4676 = vmatpush1.msra.mxu0 0.0
    %4677 = vmatprep.subr.mxu0 0.0
    %4678 = vmatpush1.msra.mxu0 0.0
    %4679 = vmatprep.subr.mxu0 0.0
    %4680 = vmatpush1.msra.mxu0 0.0
    %4681 = vmatprep.subr.mxu0 0.0
    %4682 = vmatpush1.msra.mxu0 0.0
    %4683 = vmatprep.subr.mxu0 0.0
    %4684 = vmatpush1.msra.mxu0 0.0
    %4685 = vmatprep.subr.mxu0 0.0
    %4686 = vmatpush1.msra.mxu0 0.0
    %4687 = vmatprep.subr.mxu0 0.0
    %4688 = vmatpush1.msra.mxu0 0.0
    %4689 = vmatprep.subr.mxu0 0.0
    %4690 = vmatpush1.msra.mxu0 0.0
    %4691 = vmatprep.mubr.f32.mxu0 0.0
    %4692 = vmatmul.mubr.f32.gmra.mrb[0].mxu0 %v4625
    %v4693 = vpop.f32.mrb[0].mxu0
    %v4694 = vadd.f32 0.0, %v4693
    %v4695 = vpop.f32.mrb[0].mxu0
    %4696 = vdwg.mxu0
    %4697 = vrot.lane.b32.xlu0 %v3788, 108
    %v4698 = vpop.permute.xlu0 %4697
    %v4701 = vsel %vm625, %v4620, 0
    %4703 = vmatprep.subr.mxu0 0.0
    %4704 = vmatpush1.msra.mxu0 %v4698
    %4705 = vmatprep.subr.mxu0 0.0
    %4706 = vmatpush1.msra.mxu0 0.0
    %4707 = vmatprep.subr.mxu0 0.0
    %4708 = vmatpush1.msra.mxu0 0.0
    %4709 = vmatprep.subr.mxu0 0.0
    %4710 = vmatpush1.msra.mxu0 0.0
    %4711 = vmatprep.subr.mxu0 0.0
    %4712 = vmatpush1.msra.mxu0 0.0
    %4713 = vmatprep.subr.mxu0 0.0
    %4714 = vmatpush1.msra.mxu0 0.0
    %4715 = vmatprep.subr.mxu0 0.0
    %4716 = vmatpush1.msra.mxu0 0.0
    %4717 = vmatprep.subr.mxu0 0.0
    %4718 = vmatpush1.msra.mxu0 0.0
    %4719 = vmatprep.subr.mxu0 0.0
    %4720 = vmatpush1.msra.mxu0 0.0
    %4721 = vmatprep.subr.mxu0 0.0
    %4722 = vmatpush1.msra.mxu0 0.0
    %4723 = vmatprep.subr.mxu0 0.0
    %4724 = vmatpush1.msra.mxu0 0.0
    %4725 = vmatprep.subr.mxu0 0.0
    %4726 = vmatpush1.msra.mxu0 0.0
    %4727 = vmatprep.subr.mxu0 0.0
    %4728 = vmatpush1.msra.mxu0 0.0
    %4729 = vmatprep.subr.mxu0 0.0
    %4730 = vmatpush1.msra.mxu0 0.0
    %4731 = vmatprep.subr.mxu0 0.0
    %4732 = vmatpush1.msra.mxu0 0.0
    %4733 = vmatprep.subr.mxu0 0.0
    %4734 = vmatpush1.msra.mxu0 0.0
    %4735 = vmatprep.subr.mxu0 0.0
    %4736 = vmatpush1.msra.mxu0 0.0
    %4737 = vmatprep.subr.mxu0 0.0
    %4738 = vmatpush1.msra.mxu0 0.0
    %4739 = vmatprep.subr.mxu0 0.0
    %4740 = vmatpush1.msra.mxu0 0.0
    %4741 = vmatprep.subr.mxu0 0.0
    %4742 = vmatpush1.msra.mxu0 0.0
    %4743 = vmatprep.subr.mxu0 0.0
    %4744 = vmatpush1.msra.mxu0 0.0
    %4745 = vmatprep.subr.mxu0 0.0
    %4746 = vmatpush1.msra.mxu0 0.0
    %4747 = vmatprep.subr.mxu0 0.0
    %4748 = vmatpush1.msra.mxu0 0.0
    %4749 = vmatprep.subr.mxu0 0.0
    %4750 = vmatpush1.msra.mxu0 0.0
    %4751 = vmatprep.subr.mxu0 0.0
    %4752 = vmatpush1.msra.mxu0 0.0
    %4753 = vmatprep.subr.mxu0 0.0
    %4754 = vmatpush1.msra.mxu0 0.0
    %4755 = vmatprep.subr.mxu0 0.0
    %4756 = vmatpush1.msra.mxu0 0.0
    %4757 = vmatprep.subr.mxu0 0.0
    %4758 = vmatpush1.msra.mxu0 0.0
    %4759 = vmatprep.subr.mxu0 0.0
    %4760 = vmatpush1.msra.mxu0 0.0
    %4761 = vmatprep.subr.mxu0 0.0
    %4762 = vmatpush1.msra.mxu0 0.0
    %4763 = vmatprep.subr.mxu0 0.0
    %4764 = vmatpush1.msra.mxu0 0.0
    %4765 = vmatprep.subr.mxu0 0.0
    %4766 = vmatpush1.msra.mxu0 0.0
    %4767 = vmatprep.mubr.f32.mxu0 0.0
    %4768 = vmatmul.mubr.f32.gmra.mrb[0].mxu0 %v4701
    %v4769 = vpop.f32.mrb[0].mxu0
    %v4770 = vadd.f32 0.0, %v4769
    %v4771 = vpop.f32.mrb[0].mxu0
    %4772 = vdwg.mxu0
    %4775 = vrot.lane.b32.xlu0 %v4363, 10
    %v4776 = vpop.permute.xlu0 %4775
    %4777 = vrot.lane.b32.xlu0 %v4440, 10
    %v4778 = vpop.permute.xlu0 %4777
    %4783 = vrot.lane.b32.xlu0 %v4694, 20
    %v4784 = vpop.permute.xlu0 %4783
    %4785 = vrot.lane.b32.xlu0 %v4770, 20
    %v4786 = vpop.permute.xlu0 %4785
    %v4789 = vsel %vm472, %v4035, %v4776
    %v4790 = vsel %vm472, %v4108, %v4778
    %v4791 = vsel %vm1474, %v4789, %v4784
    %v4792 = vsel %vm1474, %v4790, %v4786
    %s4793 = scalar_lea.vmem [#allocation5], 64
    %v4794 = vld [vmem:[%s4793] sm:$0xff]
    %v4795 = vld [vmem:[%s4793 + $0x8] sm:$0xff]
    %v4796 = vld [vmem:[%s4793 + $0x10] sm:$0xff]
    %v4797 = vld [vmem:[%s4793 + $0x18] sm:$0x3f]
    %s4798 = scalar_lea.vmem %s11, 2
    %v4799 = vld [vmem:[%s4798] sm:$0x1]
    %v4801 = vlaneseq
    %v4802 = vshrl.u32 %v4801, 7
    %v4803 = vsub.s32 0, %v4802
    %v4804 = vrot.slane %v4799, %v4803
    %v4807 = vsel %vm1488, %v4791, 0
    %v4810 = vsel %vm1488, %v4792, 0
    %v4813 = vsel %vm1495, %v4797, 0
    %4815 = vmatprep.subr.mxu0 0.0
    %4816 = vmatpush1.msra.mxu0 %v4794
    %4817 = vmatprep.subr.mxu0 0.0
    %4818 = vmatpush1.msra.mxu0 %v4795
    %4819 = vmatprep.subr.mxu0 0.0
    %4820 = vmatpush1.msra.mxu0 %v4796
    %4821 = vmatprep.subr.mxu0 0.0
    %4822 = vmatpush1.msra.mxu0 %v4813
    %4823 = vmatprep.subr.mxu0 0.0
    %4824 = vmatpush1.msra.mxu0 0.0
    %4825 = vmatprep.subr.mxu0 0.0
    %4826 = vmatpush1.msra.mxu0 0.0
    %4827 = vmatprep.subr.mxu0 0.0
    %4828 = vmatpush1.msra.mxu0 0.0
    %4829 = vmatprep.subr.mxu0 0.0
    %4830 = vmatpush1.msra.mxu0 0.0
    %4831 = vmatprep.subr.mxu0 0.0
    %4832 = vmatpush1.msra.mxu0 0.0
    %4833 = vmatprep.subr.mxu0 0.0
    %4834 = vmatpush1.msra.mxu0 0.0
    %4835 = vmatprep.subr.mxu0 0.0
    %4836 = vmatpush1.msra.mxu0 0.0
    %4837 = vmatprep.subr.mxu0 0.0
    %4838 = vmatpush1.msra.mxu0 0.0
    %4839 = vmatprep.subr.mxu0 0.0
    %4840 = vmatpush1.msra.mxu0 0.0
    %4841 = vmatprep.subr.mxu0 0.0
    %4842 = vmatpush1.msra.mxu0 0.0
    %4843 = vmatprep.subr.mxu0 0.0
    %4844 = vmatpush1.msra.mxu0 0.0
    %4845 = vmatprep.subr.mxu0 0.0
    %4846 = vmatpush1.msra.mxu0 0.0
    %4847 = vmatprep.subr.mxu0 0.0
    %4848 = vmatpush1.msra.mxu0 0.0
    %4849 = vmatprep.subr.mxu0 0.0
    %4850 = vmatpush1.msra.mxu0 0.0
    %4851 = vmatprep.subr.mxu0 0.0
    %4852 = vmatpush1.msra.mxu0 0.0
    %4853 = vmatprep.subr.mxu0 0.0
    %4854 = vmatpush1.msra.mxu0 0.0
    %4855 = vmatprep.subr.mxu0 0.0
    %4856 = vmatpush1.msra.mxu0 0.0
    %4857 = vmatprep.subr.mxu0 0.0
    %4858 = vmatpush1.msra.mxu0 0.0
    %4859 = vmatprep.subr.mxu0 0.0
    %4860 = vmatpush1.msra.mxu0 0.0
    %4861 = vmatprep.subr.mxu0 0.0
    %4862 = vmatpush1.msra.mxu0 0.0
    %4863 = vmatprep.subr.mxu0 0.0
    %4864 = vmatpush1.msra.mxu0 0.0
    %4865 = vmatprep.subr.mxu0 0.0
    %4866 = vmatpush1.msra.mxu0 0.0
    %4867 = vmatprep.subr.mxu0 0.0
    %4868 = vmatpush1.msra.mxu0 0.0
    %4869 = vmatprep.subr.mxu0 0.0
    %4870 = vmatpush1.msra.mxu0 0.0
    %4871 = vmatprep.subr.mxu0 0.0
    %4872 = vmatpush1.msra.mxu0 0.0
    %4873 = vmatprep.subr.mxu0 0.0
    %4874 = vmatpush1.msra.mxu0 0.0
    %4875 = vmatprep.subr.mxu0 0.0
    %4876 = vmatpush1.msra.mxu0 0.0
    %4877 = vmatprep.subr.mxu0 0.0
    %4878 = vmatpush1.msra.mxu0 0.0
    %4879 = vmatprep.mubr.f32.mxu0 0.0
    %4880 = vmatmul.mubr.f32.gmra.mrb[0].mxu0 %v4807
    %v4881 = vpop.f32.mrb[0].mxu0
    %v4882 = vadd.f32 %v4804, %v4881
    %v4883 = vpop.f32.mrb[0].mxu0
    %4884 = vmatprep.mubr.f32.mxu0 0.0
    %4885 = vmatmul.mubr.f32.gmra.mrb[0].mxu0 %v4810
    %v4886 = vpop.f32.mrb[0].mxu0
    %v4887 = vadd.f32 %v4804, %v4886
    %v4888 = vpop.f32.mrb[0].mxu0
    %4889 = vdwg.mxu0
    %v4890 = vadd.f32 %v3517, %v4882
    %v4891 = vadd.f32 %v3518, %v4887
    %s4892 = scalar_lea.vmem %s16, 2
    %v4893 = vld [vmem:[%s4892] sm:$0x1]
    %s4894 = scalar_lea.vmem %s17, 2
    %v4895 = vld [vmem:[%s4894] sm:$0x1]
    %v4896 = vsel %vm216, %v4890, 0.0
    %4897 = vadd.xlane.f32.xlu0 %v4896
    %v4898 = vpop.xlane.xlu0 %4897
    %v4899 = vsel %vm216, %v4891, 0.0
    %4900 = vadd.xlane.f32.xlu0 %v4899
    %v4901 = vpop.xlane.xlu0 %4900
    %v4902 = vmul.f32 %v4898, %v1584
    %v4903 = vmul.f32 %v4901, %v1584
    %v4904 = vsub.f32 %v4890, %v4902
    %v4905 = vsub.f32 %v4891, %v4903
    %v4906 = vmul.f32 %v4904, %v4904
    %v4907 = vmul.f32 %v4905, %v4905
    %v4908 = vsel %vm216, %v4906, 0.0
    %4909 = vadd.xlane.f32.xlu0 %v4908
    %v4910 = vpop.xlane.xlu0 %4909
    %v4911 = vsel %vm216, %v4907, 0.0
    %4912 = vadd.xlane.f32.xlu0 %v4911
    %v4913 = vpop.xlane.xlu0 %4912
    %v4914 = vmul.f32 %v4910, %v1584
    %v4915 = vmul.f32 %v4913, %v1584
    %v4916 = vadd.f32 %v4914, 1e-05
    %v4917 = vadd.f32 %v4915, 1e-05
    %v4918 = vrsqrt.pop %v4916
    %v4919 = vrsqrt.pop %v4917
    %v4920 = vmul.f32 %v4904, %v4918
    %v4921 = vmul.f32 %v4905, %v4919
    %v4923 = vlaneseq
    %v4924 = vshrl.u32 %v4923, 7
    %v4925 = vsub.s32 0, %v4924
    %v4926 = vrot.slane %v4893, %v4925
    %v4928 = vmul.f32 %v4920, %v4926
    %v4929 = vmul.f32 %v4921, %v4926
    %v4931 = vlaneseq
    %v4932 = vshrl.u32 %v4931, 7
    %v4933 = vsub.s32 0, %v4932
    %v4934 = vrot.slane %v4895, %v4933
    %v4936 = vadd.f32 %v4928, %v4934
    %v4937 = vadd.f32 %v4929, %v4934
    %s4938 = scalar_lea.vmem [#allocation7], 64
    %v4939 = vld [vmem:[%s4938] sm:$0xff]
    %v4940 = vld [vmem:[%s4938 + $0x8] sm:$0xff]
    %v4941 = vld [vmem:[%s4938 + $0x10] sm:$0xff]
    %v4942 = vld [vmem:[%s4938 + $0x18] sm:$0xff]
    %s4943 = scalar_lea.vmem %s13, 2
    %v4944 = vld [vmem:[%s4943] sm:$0x1]
    %v4946 = vlaneseq
    %v4947 = vshrl.u32 %v4946, 7
    %v4948 = vsub.s32 0, %v4947
    %v4949 = vrot.slane %v4944, %v4948
    %v4952 = vsel %vm216, %v4936, 0
    %v4955 = vsel %vm216, %v4937, 0
    %4957 = vmatprep.subr.mxu0 0.0
    %4958 = vmatpush1.msra.mxu0 %v4939
    %4959 = vmatprep.subr.mxu0 0.0
    %4960 = vmatpush1.msra.mxu0 %v4940
    %4961 = vmatprep.subr.mxu0 0.0
    %4962 = vmatpush1.msra.mxu0 %v4941
    %4963 = vmatprep.subr.mxu0 0.0
    %4964 = vmatpush1.msra.mxu0 %v4942
    %4965 = vmatprep.subr.mxu0 0.0
    %4966 = vmatpush1.msra.mxu0 0.0
    %4967 = vmatprep.subr.mxu0 0.0
    %4968 = vmatpush1.msra.mxu0 0.0
    %4969 = vmatprep.subr.mxu0 0.0
    %4970 = vmatpush1.msra.mxu0 0.0
    %4971 = vmatprep.subr.mxu0 0.0
    %4972 = vmatpush1.msra.mxu0 0.0
    %4973 = vmatprep.subr.mxu0 0.0
    %4974 = vmatpush1.msra.mxu0 0.0
    %4975 = vmatprep.subr.mxu0 0.0
    %4976 = vmatpush1.msra.mxu0 0.0
    %4977 = vmatprep.subr.mxu0 0.0
    %4978 = vmatpush1.msra.mxu0 0.0
    %4979 = vmatprep.subr.mxu0 0.0
    %4980 = vmatpush1.msra.mxu0 0.0
    %4981 = vmatprep.subr.mxu0 0.0
    %4982 = vmatpush1.msra.mxu0 0.0
    %4983 = vmatprep.subr.mxu0 0.0
    %4984 = vmatpush1.msra.mxu0 0.0
    %4985 = vmatprep.subr.mxu0 0.0
    %4986 = vmatpush1.msra.mxu0 0.0
    %4987 = vmatprep.subr.mxu0 0.0
    %4988 = vmatpush1.msra.mxu0 0.0
    %4989 = vmatprep.subr.mxu0 0.0
    %4990 = vmatpush1.msra.mxu0 0.0
    %4991 = vmatprep.subr.mxu0 0.0
    %4992 = vmatpush1.msra.mxu0 0.0
    %4993 = vmatprep.subr.mxu0 0.0
    %4994 = vmatpush1.msra.mxu0 0.0
    %4995 = vmatprep.subr.mxu0 0.0
    %4996 = vmatpush1.msra.mxu0 0.0
    %4997 = vmatprep.subr.mxu0 0.0
    %4998 = vmatpush1.msra.mxu0 0.0
    %4999 = vmatprep.subr.mxu0 0.0
    %5000 = vmatpush1.msra.mxu0 0.0
    %5001 = vmatprep.subr.mxu0 0.0
    %5002 = vmatpush1.msra.mxu0 0.0
    %5003 = vmatprep.subr.mxu0 0.0
    %5004 = vmatpush1.msra.mxu0 0.0
    %5005 = vmatprep.subr.mxu0 0.0
    %5006 = vmatpush1.msra.mxu0 0.0
    %5007 = vmatprep.subr.mxu0 0.0
    %5008 = vmatpush1.msra.mxu0 0.0
    %5009 = vmatprep.subr.mxu0 0.0
    %5010 = vmatpush1.msra.mxu0 0.0
    %5011 = vmatprep.subr.mxu0 0.0
    %5012 = vmatpush1.msra.mxu0 0.0
    %5013 = vmatprep.subr.mxu0 0.0
    %5014 = vmatpush1.msra.mxu0 0.0
    %5015 = vmatprep.subr.mxu0 0.0
    %5016 = vmatpush1.msra.mxu0 0.0
    %5017 = vmatprep.subr.mxu0 0.0
    %5018 = vmatpush1.msra.mxu0 0.0
    %5019 = vmatprep.subr.mxu0 0.0
    %5020 = vmatpush1.msra.mxu0 0.0
    %5021 = vmatprep.mubr.f32.mxu0 0.0
    %5022 = vmatmul.mubr.f32.gmra.mrb[0].mxu0 %v4952
    %v5023 = vpop.f32.mrb[0].mxu0
    %v5024 = vadd.f32 %v4949, %v5023
    %v5025 = vpop.f32.mrb[0].mxu0
    %5026 = vmatprep.mubr.f32.mxu0 0.0
    %5027 = vmatmul.mubr.f32.gmra.mrb[0].mxu0 %v4955
    %v5028 = vpop.f32.mrb[0].mxu0
    %v5029 = vadd.f32 %v4949, %v5028
    %v5030 = vpop.f32.mrb[0].mxu0
    %5031 = vdwg.mxu0
    %v5032 = vmax.f32 %v5024, 0.0
    %v5033 = vmax.f32 %v5029, 0.0
    %s5034 = scalar_lea.vmem %s14, 128
    %v5035 = vld [vmem:[%s5034] sm:$0xff]
    %v5036 = vld [vmem:[%s5034 + $0x8] sm:$0xff]
    %v5037 = vld [vmem:[%s5034 + $0x10] sm:$0xff]
    %v5038 = vld [vmem:[%s5034 + $0x18] sm:$0xff]
    %v5039 = vld [vmem:[%s5034 + $0x20] sm:$0xff]
    %v5040 = vld [vmem:[%s5034 + $0x28] sm:$0xff]
    %v5041 = vld [vmem:[%s5034 + $0x30] sm:$0xff]
    %v5042 = vld [vmem:[%s5034 + $0x38] sm:$0xff]
    %s5043 = scalar_lea.vmem %s15, 2
    %v5044 = vld [vmem:[%s5043] sm:$0x1]
    %v5046 = vlaneseq
    %v5047 = vshrl.u32 %v5046, 7
    %v5048 = vsub.s32 0, %v5047
    %v5049 = vrot.slane %v5044, %v5048
    %v5052 = vsel %vm1730, %v5032, 0
    %v5055 = vsel %vm1730, %v5033, 0
    %5057 = vmatprep.subr.mxu0 0.0
    %5058 = vmatpush1.msra.mxu0 %v5035
    %5059 = vmatprep.subr.mxu0 0.0
    %5060 = vmatpush1.msra.mxu0 %v5036
    %5061 = vmatprep.subr.mxu0 0.0
    %5062 = vmatpush1.msra.mxu0 %v5037
    %5063 = vmatprep.subr.mxu0 0.0
    %5064 = vmatpush1.msra.mxu0 %v5038
    %5065 = vmatprep.subr.mxu0 0.0
    %5066 = vmatpush1.msra.mxu0 %v5039
    %5067 = vmatprep.subr.mxu0 0.0
    %5068 = vmatpush1.msra.mxu0 %v5040
    %5069 = vmatprep.subr.mxu0 0.0
    %5070 = vmatpush1.msra.mxu0 %v5041
    %5071 = vmatprep.subr.mxu0 0.0
    %5072 = vmatpush1.msra.mxu0 %v5042
    %5073 = vmatprep.subr.mxu0 0.0
    %5074 = vmatpush1.msra.mxu0 0.0
    %5075 = vmatprep.subr.mxu0 0.0
    %5076 = vmatpush1.msra.mxu0 0.0
    %5077 = vmatprep.subr.mxu0 0.0
    %5078 = vmatpush1.msra.mxu0 0.0
    %5079 = vmatprep.subr.mxu0 0.0
    %5080 = vmatpush1.msra.mxu0 0.0
    %5081 = vmatprep.subr.mxu0 0.0
    %5082 = vmatpush1.msra.mxu0 0.0
    %5083 = vmatprep.subr.mxu0 0.0
    %5084 = vmatpush1.msra.mxu0 0.0
    %5085 = vmatprep.subr.mxu0 0.0
    %5086 = vmatpush1.msra.mxu0 0.0
    %5087 = vmatprep.subr.mxu0 0.0
    %5088 = vmatpush1.msra.mxu0 0.0
    %5089 = vmatprep.subr.mxu0 0.0
    %5090 = vmatpush1.msra.mxu0 0.0
    %5091 = vmatprep.subr.mxu0 0.0
    %5092 = vmatpush1.msra.mxu0 0.0
    %5093 = vmatprep.subr.mxu0 0.0
    %5094 = vmatpush1.msra.mxu0 0.0
    %5095 = vmatprep.subr.mxu0 0.0
    %5096 = vmatpush1.msra.mxu0 0.0
    %5097 = vmatprep.subr.mxu0 0.0
    %5098 = vmatpush1.msra.mxu0 0.0
    %5099 = vmatprep.subr.mxu0 0.0
    %5100 = vmatpush1.msra.mxu0 0.0
    %5101 = vmatprep.subr.mxu0 0.0
    %5102 = vmatpush1.msra.mxu0 0.0
    %5103 = vmatprep.subr.mxu0 0.0
    %5104 = vmatpush1.msra.mxu0 0.0
    %5105 = vmatprep.subr.mxu0 0.0
    %5106 = vmatpush1.msra.mxu0 0.0
    %5107 = vmatprep.subr.mxu0 0.0
    %5108 = vmatpush1.msra.mxu0 0.0
    %5109 = vmatprep.subr.mxu0 0.0
    %5110 = vmatpush1.msra.mxu0 0.0
    %5111 = vmatprep.subr.mxu0 0.0
    %5112 = vmatpush1.msra.mxu0 0.0
    %5113 = vmatprep.subr.mxu0 0.0
    %5114 = vmatpush1.msra.mxu0 0.0
    %5115 = vmatprep.subr.mxu0 0.0
    %5116 = vmatpush1.msra.mxu0 0.0
    %5117 = vmatprep.subr.mxu0 0.0
    %5118 = vmatpush1.msra.mxu0 0.0
    %5119 = vmatprep.subr.mxu0 0.0
    %5120 = vmatpush1.msra.mxu0 0.0
    %5121 = vmatprep.mubr.f32.mxu0 0.0
    %5122 = vmatmul.mubr.f32.gmra.mrb[0].mxu0 %v5052
    %v5123 = vpop.f32.mrb[0].mxu0
    %v5124 = vadd.f32 %v5049, %v5123
    %v5125 = vpop.f32.mrb[0].mxu0
    %5126 = vmatprep.mubr.f32.mxu0 0.0
    %5127 = vmatmul.mubr.f32.gmra.mrb[0].mxu0 %v5055
    %v5128 = vpop.f32.mrb[0].mxu0
    %v5129 = vadd.f32 %v5049, %v5128
    %v5130 = vpop.f32.mrb[0].mxu0
    %5131 = vdwg.mxu0
    %v5132 = vadd.f32 %v4936, %v5124
    %v5133 = vadd.f32 %v4937, %v5129
    %s5134 = scalar_lea.vmem %s18, 2
    %v5135 = vld [vmem:[%s5134] sm:$0x1]
    %s5136 = scalar_lea.vmem %s19, 2
    %v5137 = vld [vmem:[%s5136] sm:$0x1]
    %v5138 = vsel %vm216, %v5132, 0.0
    %5139 = vadd.xlane.f32.xlu0 %v5138
    %v5140 = vpop.xlane.xlu0 %5139
    %v5141 = vsel %vm216, %v5133, 0.0
    %5142 = vadd.xlane.f32.xlu0 %v5141
    %v5143 = vpop.xlane.xlu0 %5142
    %v5144 = vmul.f32 %v5140, %v1584
    %v5145 = vmul.f32 %v5143, %v1584
    %v5146 = vsub.f32 %v5132, %v5144
    %v5147 = vsub.f32 %v5133, %v5145
    %v5148 = vmul.f32 %v5146, %v5146
    %v5149 = vmul.f32 %v5147, %v5147
    %v5150 = vsel %vm216, %v5148, 0.0
    %5151 = vadd.xlane.f32.xlu0 %v5150
    %v5152 = vpop.xlane.xlu0 %5151
    %v5153 = vsel %vm216, %v5149, 0.0
    %5154 = vadd.xlane.f32.xlu0 %v5153
    %v5155 = vpop.xlane.xlu0 %5154
    %v5156 = vmul.f32 %v5152, %v1584
    %v5157 = vmul.f32 %v5155, %v1584
    %v5158 = vadd.f32 %v5156, 1e-05
    %v5159 = vadd.f32 %v5157, 1e-05
    %v5160 = vrsqrt.pop %v5158
    %v5161 = vrsqrt.pop %v5159
    %v5162 = vmul.f32 %v5146, %v5160
    %v5163 = vmul.f32 %v5147, %v5161
    %v5165 = vlaneseq
    %v5166 = vshrl.u32 %v5165, 7
    %v5167 = vsub.s32 0, %v5166
    %v5168 = vrot.slane %v5135, %v5167
    %v5170 = vmul.f32 %v5162, %v5168
    %v5171 = vmul.f32 %v5163, %v5168
    %v5173 = vlaneseq
    %v5174 = vshrl.u32 %v5173, 7
    %v5175 = vsub.s32 0, %v5174
    %v5176 = vrot.slane %v5137, %v5175
    %v5178 = vadd.f32 %v5170, %v5176
    %v5179 = vadd.f32 %v5171, %v5176
    %5180 = vst.msk [vmem:[#allocation8] sm:$0xff] %vm216, %v5178
    %5181 = vst.msk [vmem:[#allocation8 + $0x8] sm:$0xff] %vm216, %v5179
    // Predicated region
    $region94: #{tpu_custom_call.1} parent=1 // pred_check
      _
    $region95: #{tpu_custom_call.1} parent=1 // pred_check_branch
      %5183 = sbr.rel (0) target = $region97
    $region96: #{tpu_custom_call.1} parent=1 // pred_region
      %s5185 = ssub.s32 256, 256
      %5186 = vsyncadd [#allocation4], %s5185
      %s5187 = sshll.u32 [#allocation8], 4
      %s5188 = int_to_ptr.vmem [resolvable:$true] %s5187
      %5193 = dma.vmem_to_hbm [thread:$0]  %s5188, 256, %s20, [#allocation4], 128, 128, 8
    $region97: #{tpu_custom_call.1} parent=1 // pred_fallthru
      _
    // Predicated region
    $region98: #{tpu_custom_call.1} parent=1 // pred_check
      _
    $region99: #{tpu_custom_call.1} parent=1 // pred_check_branch
      %5195 = sbr.rel (0) target = $region101
    $region100: #{tpu_custom_call.1} parent=1 // pred_region
      %5196 = dma.done [#allocation4], 256
    $region101: #{tpu_custom_call.1} parent=1 // pred_fallthru
      _
    %5197 = vsyncpa [#allocation3], 1
    %5198 = vsyncpa [#allocation6], 1
    %5199 = vsyncpa [#allocation4], 1

</llo_original>
